<compile_context>
chip_gen: v5e
topology: v5e:2x2
jax: 0.10.0
libtpu: 0.0.40
codegen_flags: <defaults>
</compile_context>

<pallas_src>
import jax
import jax.numpy as jnp
from jax import lax
from jax.experimental import pallas as pl
from jax.experimental.pallas import tpu as pltpu


_VMEM_LIMIT = 32 * 1024 * 1024   # explicit scoped-VMEM budget (v7x physical is 64 MiB)


def _round_up(x, m):
    return (x + m - 1) // m * m


def _magic_div(d, qmax):
    """Exact (magic, shift) so that (q * magic) >> shift == q // d for 0 <= q < qmax."""
    for shift in range(8, 31):
        magic = -((-(1 << shift)) // d)            # ceil(2**shift / d)
        if magic * (qmax - 1) < 2 ** 31 and all(
                (q * magic) >> shift == q // d for q in range(qmax)):
            return magic, shift
    raise ValueError("no exact magic divisor found")


def _make_mask_fn(P_out, Wp, H2, W2):
    """Validity mask over anchor lanes, built in-kernel (no HBM mask stream)."""
    magic, shift = _magic_div(Wp, P_out)

    def mask_fn():
        q = lax.broadcasted_iota(jnp.int32, (1, P_out), 1)
        row = (q * magic) >> shift                 # == q // Wp (exact, verified above)
        col = q - row * Wp
        return jnp.logical_and(row < H2, col < W2).astype(jnp.float32)

    return mask_fn


# ----------------------------------------------------------------------------
# Stage 1: ConvTranspose2d(k=2, s=2) as a lane-dense tiled GEMM over pixels.
#   out[(a*2+b)*Cout+co, p] = sum_ci Wt[ci,co,a,b] * x[ci, p] + bias[co]
# ----------------------------------------------------------------------------
def _upconv_kernel(w_ref, x_ref, b_ref, o_ref):
    o_ref[...] = (
        jnp.dot(w_ref[...], x_ref[...], preferred_element_type=jnp.float32)
        + b_ref[...]
    )


def _upconv(wall, xs, bias4, tile_p):
    R, Cin = wall.shape
    _, P = xs.shape
    return pl.pallas_call(
        _upconv_kernel,
        out_shape=jax.ShapeDtypeStruct((R, P), jnp.float32),
        grid=(P // tile_p,),
        in_specs=[
            pl.BlockSpec((R, Cin), lambda i: (0, 0)),
            pl.BlockSpec((Cin, tile_p), lambda i: (0, i)),
            pl.BlockSpec((R, 1), lambda i: (0, 0)),
        ],
        out_specs=pl.BlockSpec((R, tile_p), lambda i: (0, i)),
        compiler_params=pltpu.CompilerParams(
            dimension_semantics=("parallel",), vmem_limit_bytes=_VMEM_LIMIT),
    )(wall, xs, bias4)


# ----------------------------------------------------------------------------
# Stage 2: conv1(3x3, pad=1) over the concatenated slab + bias, plus per-image
#          BN1 partial statistics (phase 1 of two-phase BN).
#   One deep-K matmul: (Cout, 9*Ccat) @ (9*Ccat, P_out) built from 9 shifted
#   ref-level slices of the padded per-image concat slab.
# ----------------------------------------------------------------------------
def _make_conv1_kernel(Cout, Ccat, P_out, Wp, mask_fn):
    def kernel(cat_ref, w_ref, b_ref, out_ref, s_ref, q_ref, stack_ref):
        for t in range(9):
            dy, dx = divmod(t, 3)
            off = dy * Wp + dx
            stack_ref[t * Ccat:(t + 1) * Ccat, :] = cat_ref[0, :, off:off + P_out]
        acc = (jnp.dot(w_ref[...], stack_ref[...],
                       preferred_element_type=jnp.float32) + b_ref[...])
        out_ref[0] = acc
        mask = mask_fn()
        am = acc * mask
        s_ref[0] = jnp.sum(am, axis=1, keepdims=True)        # per-channel sum
        q_ref[0] = jnp.sum(am * acc, axis=1, keepdims=True)  # per-channel sum of squares

    return kernel


# ----------------------------------------------------------------------------
# Stage 3: merged (two-phase) call.
#   phase 0: BN1 finalize + ReLU + conv2(3x3, pad=1) + bias + BN2 partial stats,
#            conv2 output kept in a persistent VMEM scratch.
#   phase 1: BN2 finalize + ReLU from the scratch -> output slab.
# ----------------------------------------------------------------------------
def _make_conv2_bn_kernel(Cout, P_out, Wp, halo, N, n_valid, mask_fn):
    cnt = float(n_valid)

    def kernel(c1_ref, s1_ref, q1_ref, g1_ref, be1_ref, w2_ref, b2_ref,
               g2_ref, be2_ref, out_ref, c2_s, stack_s, hal_s, st2_s):
        ph = pl.program_id(0)
        n = pl.program_id(1)

        @pl.when(jnp.logical_and(ph == 0, n == 0))
        def _init():
            # Zero the conv2 halo strips exactly once (scratch persists across
            # grid steps; the interior is fully overwritten every phase-0 step).
            hal_s[:, :halo] = jnp.zeros((Cout, halo), jnp.float32)
            hal_s[:, halo + P_out:] = jnp.zeros((Cout, halo), jnp.float32)
            st2_s[...] = jnp.zeros((Cout, 2), jnp.float32)

        @pl.when(ph == 0)
        def _conv2_phase():
            mask = mask_fn()
            # BN1 finalize from all images' partial sums (training-mode stats).
            # NOTE: E[x^2]-E[x]^2 in f32 is fine at this scale; switch to a
            # shifted accumulation if reused with large-mean trained weights.
            ssum = s1_ref[0]
            sqs = q1_ref[0]
            for i in range(1, N):
                ssum = ssum + s1_ref[i]
                sqs = sqs + q1_ref[i]
            mean = ssum / cnt
            var = sqs / cnt - mean * mean          # biased batch variance
            rstd = lax.rsqrt(var + 1e-5)
            x = c1_ref[0]
            xn = jnp.maximum((x - mean) * rstd * g1_ref[...] + be1_ref[...],
                             0.0) * mask
            # conv2 as one deep-K matmul over a haloed slab of BN1(x).
            hal_s[:, halo:halo + P_out] = xn
            for t in range(9):
                dy, dx = divmod(t, 3)
                off = halo + (dy - 1) * Wp + (dx - 1)
                stack_s[t * Cout:(t + 1) * Cout, :] = hal_s[:, off:off + P_out]
            acc = (jnp.dot(w2_ref[...], stack_s[...],
                           preferred_element_type=jnp.float32) + b2_ref[...])
            c2_s[n] = acc
            am = acc * mask
            st2_s[:, 0:1] += jnp.sum(am, axis=1, keepdims=True)
            st2_s[:, 1:2] += jnp.sum(am * acc, axis=1, keepdims=True)

        @pl.when(ph == 1)
        def _bn2_phase():
            mean = st2_s[:, 0:1] / cnt
            var = st2_s[:, 1:2] / cnt - mean * mean
            rstd = lax.rsqrt(var + 1e-5)
            out_ref[0] = jnp.maximum(
                (c2_s[n] - mean) * rstd * g2_ref[...] + be2_ref[...], 0.0)

    return kernel


# ----------------------------------------------------------------------------
# Full forward (NCHW in / NCHW out, like the PyTorch module).
# ----------------------------------------------------------------------------
def expander_forward(x_nchw, bridge_nchw, p):
    x = x_nchw
    bridge = bridge_nchw
    N, Cin, H, W = x.shape
    Cout = p["wt_bias"].shape[0]
    H2, W2 = 2 * H, 2 * W
    Hp, Wp = H2 + 2, W2 + 2                       # spatially padded (pad=1) grid
    P_out = _round_up(Hp * Wp, 128)               # lane-dense anchor width per image
    in_halo = _round_up(2 * Wp + 2, 128)          # conv1 reads up to +2*Wp+2 past anchor
    P_in = P_out + in_halo
    halo = _round_up(Wp + 1, 128)                 # conv2 reads +/-(Wp+1) around anchor
    n_valid = N * H2 * W2                         # BN statistics count (over N,H,W)
    mask_fn = _make_mask_fn(P_out, Wp, H2, W2)

    # ---- ConvTranspose2d(k=2, s=2): lane-dense tiled GEMM over pixels -------
    P1 = N * H * W
    # TODO(synk): at production decoder sizes raise tile_p to 512-1024 lanes.
    tile_p = 256 if P1 >= 256 else _round_up(P1, 128)
    P1p = _round_up(P1, tile_p)
    xs = x.reshape(N, Cin, H * W).transpose(1, 0, 2).reshape(Cin, P1)
    xs = jnp.pad(xs, ((0, 0), (0, P1p - P1)))
    wall = jnp.transpose(p["wt"], (2, 3, 1, 0)).reshape(4 * Cout, Cin)  # rows=(a,b,co)
    bias4 = jnp.tile(p["wt_bias"], 4).reshape(4 * Cout, 1)
    y4 = _upconv(wall, xs, bias4, tile_p)                               # (4*Cout, P1p)

    # stride-2 sub-pixel scatter (XLA glue; see module-level TODO).
    y = (y4[:, :P1].reshape(2, 2, Cout, N, H, W)
            .transpose(3, 2, 4, 0, 5, 1).reshape(N, Cout, H2, W2))

    # ---- center crop (keeps the torch indexing quirk) + channel concat ------
    Hb, Wb = bridge.shape[2], bridge.shape[3]
    diff_x = (Hb - H2) // 2
    diff_y = (Wb - W2) // 2
    crop = bridge[:, :, diff_y:diff_y + H2, diff_x:diff_x + W2]
    Cbr = crop.shape[1]
    Ccat = Cout + Cbr

    # one full-sublane concat slab per image: channels-first, spatially padded,
    # flattened in anchor layout, lane-padded to P_in.
    cat = jnp.concatenate([y, crop], axis=1)
    cat = jnp.pad(cat, ((0, 0), (0, 0), (1, 1), (1, 1)))
    cat = cat.reshape(N, Ccat, Hp * Wp)
    cat_slab = jnp.pad(cat, ((0, 0), (0, 0), (0, P_in - Hp * Wp)))

    # weights flattened for the deep-K im2col dots (rows: tap-major, channel-minor)
    w1_flat = jnp.transpose(p["w1"], (0, 2, 3, 1)).reshape(Cout, 9 * Ccat)
    w2_flat = jnp.transpose(p["w2"], (0, 2, 3, 1)).reshape(Cout, 9 * Cout)
    col = lambda v: v.reshape(-1, 1)

    # ---- conv1 + bias + per-image BN1 partial stats --------------------------
    conv1_raw, s1, q1 = pl.pallas_call(
        _make_conv1_kernel(Cout, Ccat, P_out, Wp, mask_fn),
        out_shape=(jax.ShapeDtypeStruct((N, Cout, P_out), jnp.float32),
                   jax.ShapeDtypeStruct((N, Cout, 1), jnp.float32),
                   jax.ShapeDtypeStruct((N, Cout, 1), jnp.float32)),
        grid=(N,),
        in_specs=[
            pl.BlockSpec((1, Ccat, P_in), lambda n: (n, 0, 0)),
            pl.BlockSpec((Cout, 9 * Ccat), lambda n: (0, 0)),
            pl.BlockSpec((Cout, 1), lambda n: (0, 0)),
        ],
        out_specs=(pl.BlockSpec((1, Cout, P_out), lambda n: (n, 0, 0)),
                   pl.BlockSpec((1, Cout, 1), lambda n: (n, 0, 0)),
                   pl.BlockSpec((1, Cout, 1), lambda n: (n, 0, 0))),
        scratch_shapes=[pltpu.VMEM((9 * Ccat, P_out), jnp.float32)],
        compiler_params=pltpu.CompilerParams(
            dimension_semantics=("parallel",), vmem_limit_bytes=_VMEM_LIMIT),
    )(cat_slab, w1_flat, col(p["b1"]))

    # ---- BN1 finalize + ReLU + conv2 + bias + BN2 (two-phase, single call) ---
    out_slab = pl.pallas_call(
        _make_conv2_bn_kernel(Cout, P_out, Wp, halo, N, n_valid, mask_fn),
        out_shape=jax.ShapeDtypeStruct((N, Cout, P_out), jnp.float32),
        grid=(2, N),
        in_specs=[
            # conv1_raw is only consumed in phase 0; pin phase 1 to block 0 so
            # the pipeline skips redundant re-fetches.
            pl.BlockSpec((1, Cout, P_out), lambda ph, n: (n * (1 - ph), 0, 0)),
            pl.BlockSpec((N, Cout, 1), lambda ph, n: (0, 0, 0)),
            pl.BlockSpec((N, Cout, 1), lambda ph, n: (0, 0, 0)),
            pl.BlockSpec((Cout, 1), lambda ph, n: (0, 0)),
            pl.BlockSpec((Cout, 1), lambda ph, n: (0, 0)),
            pl.BlockSpec((Cout, 9 * Cout), lambda ph, n: (0, 0)),
            pl.BlockSpec((Cout, 1), lambda ph, n: (0, 0)),
            pl.BlockSpec((Cout, 1), lambda ph, n: (0, 0)),
            pl.BlockSpec((Cout, 1), lambda ph, n: (0, 0)),
        ],
        # output is only produced in phase 1; keep the block index pinned to 0
        # during phase 0 so no garbage block ever gets written back.
        out_specs=pl.BlockSpec((1, Cout, P_out), lambda ph, n: (n * ph, 0, 0)),
        scratch_shapes=[
            pltpu.VMEM((N, Cout, P_out), jnp.float32),          # conv2 raw (all images)
            pltpu.VMEM((9 * Cout, P_out), jnp.float32),         # conv2 im2col stack
            pltpu.VMEM((Cout, P_out + 2 * halo), jnp.float32),  # haloed BN1(x) slab
            pltpu.VMEM((Cout, 2), jnp.float32),                 # BN2 partial [sum, sumsq]
        ],
        compiler_params=pltpu.CompilerParams(
            dimension_semantics=("arbitrary", "arbitrary"),
            vmem_limit_bytes=_VMEM_LIMIT),
    )(conv1_raw, s1, q1, col(p["g1"]), col(p["be1"]), w2_flat,
      col(p["b2"]), col(p["g2"]), col(p["be2"]))

    # drop pad/junk anchor lanes, restore (N, Cout, 2H, 2W) NCHW.
    out = out_slab[:, :, :Hp * Wp].reshape(N, Cout, Hp, Wp)[:, :, :H2, :W2]
    return out


# ----------------------------------------------------------------------------
# Pure-JAX reference (XLA convs) for correctness checking
# ----------------------------------------------------------------------------
def _ref_conv3x3_bn_relu(x, w_oihw, bias, gamma, beta):
    w_hwio = jnp.transpose(w_oihw, (2, 3, 1, 0))
    y = jax.lax.conv_general_dilated(
        x, w_hwio, (1, 1), ((1, 1), (1, 1)),
        dimension_numbers=("NHWC", "HWIO", "NHWC")) + bias
    mean = jnp.mean(y, axis=(0, 1, 2), keepdims=True)
    var = jnp.mean((y - mean) ** 2, axis=(0, 1, 2), keepdims=True)
    y = (y - mean) * jax.lax.rsqrt(var + 1e-5) * gamma + beta
    return jnp.maximum(y, 0.0)


def _reference(x_nchw, bridge_nchw, p):
    x = jnp.transpose(x_nchw, (0, 2, 3, 1))
    bridge = jnp.transpose(bridge_nchw, (0, 2, 3, 1))
    # ConvTranspose2d == lhs-dilated conv with spatially flipped, IO-swapped kernel.
    w_hwio = jnp.transpose(p["wt"], (2, 3, 0, 1))[::-1, ::-1, :, :]
    y = jax.lax.conv_general_dilated(
        x, w_hwio, window_strides=(1, 1), padding=((1, 1), (1, 1)),
        lhs_dilation=(2, 2),
        dimension_numbers=("NHWC", "HWIO", "NHWC")) + p["wt_bias"]
    th, tw = y.shape[1], y.shape[2]
    Hb, Wb = bridge.shape[1], bridge.shape[2]
    diff_x = (Hb - th) // 2
    diff_y = (Wb - tw) // 2
    crop = bridge[:, diff_y:diff_y + th, diff_x:diff_x + tw, :]
    h = jnp.concatenate([y, crop], axis=-1)
    h = _ref_conv3x3_bn_relu(h, p["w1"], p["b1"], p["g1"], p["be1"])
    h = _ref_conv3x3_bn_relu(h, p["w2"], p["b2"], p["g2"], p["be2"])
    return jnp.transpose(h, (0, 3, 1, 2))


# ----------------------------------------------------------------------------
# Main
# ----------------------------------------------------------------------------
if __name__ == "__main__":
    # Expander(in_channels=8, out_channels=4)
    IN_CH, OUT_CH = 8, 4
    N, H, W = 2, 16, 16               # x: (2, 8, 16, 16) NCHW -> upsampled 32x32
    HB, WB = 36, 36                   # bridge slightly larger -> exercises center_crop

    key = jax.random.PRNGKey(0)
    keys = jax.random.split(key, 12)

    params = {
        # ConvTranspose2d(in=8, out=4, k=2, s=2): weight (Cin, Cout, 2, 2), bias (Cout,)
        "wt": 0.1 * jax.random.normal(keys[0], (IN_CH, OUT_CH, 2, 2), jnp.float32),
        "wt_bias": 0.1 * jax.random.normal(keys[1], (OUT_CH,), jnp.float32),
        # DoubleConvolver(in=8, out=4)
        "w1": 0.1 * jax.random.normal(keys[2], (OUT_CH, IN_CH, 3, 3), jnp.float32),
        "b1": 0.1 * jax.random.normal(keys[3], (OUT_CH,), jnp.float32),
        "g1": 1.0 + 0.1 * jax.random.normal(keys[4], (OUT_CH,), jnp.float32),
        "be1": 0.1 * jax.random.normal(keys[5], (OUT_CH,), jnp.float32),
        "w2": 0.1 * jax.random.normal(keys[6], (OUT_CH, OUT_CH, 3, 3), jnp.float32),
        "b2": 0.1 * jax.random.normal(keys[7], (OUT_CH,), jnp.float32),
        "g2": 1.0 + 0.1 * jax.random.normal(keys[8], (OUT_CH,), jnp.float32),
        "be2": 0.1 * jax.random.normal(keys[9], (OUT_CH,), jnp.float32),
    }

    x = jax.random.normal(keys[10], (N, IN_CH, H, W), jnp.float32)           # NCHW
    bridge = jax.random.normal(keys[11], (N, OUT_CH, HB, WB), jnp.float32)   # NCHW

    fwd = jax.jit(expander_forward)
    out = fwd(x, bridge, params)
    out = jax.block_until_ready(out)

    assert out.shape == (N, OUT_CH, 2 * H, 2 * W), out.shape

    ref = jax.block_until_ready(_reference(x, bridge, params))
    err = float(jnp.max(jnp.abs(out - ref)))
    assert jnp.allclose(out, ref, rtol=1e-3, atol=1e-3), err

    print("KERNEL_OK")
</pallas_src>

<mosaic_0001>
module attributes {stable_mosaic.version = 11 : i64} {
  func.func @_upconv_kernel(%arg0: i32, %arg1: memref<16x8xf32, #tpu.memory_space<vmem>>, %arg2: memref<8x256xf32, #tpu.memory_space<vmem>>, %arg3: memref<16x1xf32, #tpu.memory_space<vmem>>, %arg4: memref<16x256xf32, #tpu.memory_space<vmem>>) attributes {dimension_semantics = [#tpu.dimension_semantics<parallel>], iteration_bounds = array<i64: 2>, scalar_prefetch = 0 : i64, scratch_operands = 0 : i64, tpu.core_type = #tpu.core_type<tc>, window_params = [{pipeline_mode = #tpu.pipeline_mode<synchronous>, transform_indices = @transform_0, window_bounds = array<i64: 16, 8>}, {transform_indices = @transform_1, window_bounds = array<i64: 8, 256>}, {pipeline_mode = #tpu.pipeline_mode<synchronous>, transform_indices = @transform_2, window_bounds = array<i64: 16, 1>}, {transform_indices = @transform_3, window_bounds = array<i64: 16, 256>}]} {
    %c0 = arith.constant 0 : index
    %c0_0 = arith.constant 0 : index
    %0 = vector.load %arg1[%c0, %c0_0] : memref<16x8xf32, #tpu.memory_space<vmem>>, vector<16x8xf32>
    %c0_1 = arith.constant 0 : index
    %c0_2 = arith.constant 0 : index
    %1 = vector.load %arg2[%c0_1, %c0_2] : memref<8x256xf32, #tpu.memory_space<vmem>>, vector<8x256xf32>
    %cst = arith.constant dense<0.000000e+00> : vector<16x256xf32>
    %2 = tpu.matmul %0, %1, %cst {dimension_numbers = #tpu.dot_dimension_numbers<[1], [0], [0], [1], [0, 0, 1, 1], [], []>} : vector<16x8xf32>, vector<8x256xf32>, vector<16x256xf32> -> vector<16x256xf32>
    %c0_3 = arith.constant 0 : index
    %c0_4 = arith.constant 0 : index
    %3 = vector.load %arg3[%c0_3, %c0_4] : memref<16x1xf32, #tpu.memory_space<vmem>>, vector<16x1xf32>
    %4 = vector.broadcast %3 : vector<16x1xf32> to vector<16x256xf32>
    %5 = arith.addf %2, %4 : vector<16x256xf32>
    %c0_5 = arith.constant 0 : index
    %c0_6 = arith.constant 0 : index
    %6 = vector.load %arg4[%c0_5, %c0_6] : memref<16x256xf32, #tpu.memory_space<vmem>>, vector<16x256xf32>
    tpu.vector_store %arg4[%c0_5, %c0_6], %5 {strides = array<i32>} : memref<16x256xf32, #tpu.memory_space<vmem>>, vector<16x256xf32>,
    return
  }
  func.func @transform_0(%arg0: i32) -> (i32, i32) {
    %c0_i32 = arith.constant 0 : i32
    %c0_i32_0 = arith.constant 0 : i32
    %c0_i32_1 = arith.constant 0 : i32
    return %c0_i32, %c0_i32_0 : i32, i32
  }
  func.func @transform_1(%arg0: i32) -> (i32, i32) {
    %c0_i32 = arith.constant 0 : i32
    %c0_i32_0 = arith.constant 0 : i32
    return %c0_i32, %arg0 : i32, i32
  }
  func.func @transform_2(%arg0: i32) -> (i32, i32) {
    %c0_i32 = arith.constant 0 : i32
    %c0_i32_0 = arith.constant 0 : i32
    %c0_i32_1 = arith.constant 0 : i32
    return %c0_i32, %c0_i32_0 : i32, i32
  }
  func.func @transform_3(%arg0: i32) -> (i32, i32) {
    %c0_i32 = arith.constant 0 : i32
    %c0_i32_0 = arith.constant 0 : i32
    return %c0_i32, %arg0 : i32, i32
  }
}

module attributes {stable_mosaic.version = 11 : i64} {
  func.func @kernel(%arg0: i32, %arg1: memref<1x8x1408xf32, #tpu.memory_space<vmem>>, %arg2: memref<4x72xf32, #tpu.memory_space<vmem>>, %arg3: memref<4x1xf32, #tpu.memory_space<vmem>>, %arg4: memref<1x4x1280xf32, #tpu.memory_space<vmem>>, %arg5: memref<1x4x1xf32, #tpu.memory_space<vmem>>, %arg6: memref<1x4x1xf32, #tpu.memory_space<vmem>>, %arg7: memref<72x1280xf32, #tpu.memory_space<vmem>>) attributes {dimension_semantics = [#tpu.dimension_semantics<parallel>], iteration_bounds = array<i64: 2>, scalar_prefetch = 0 : i64, scratch_operands = 1 : i64, tpu.core_type = #tpu.core_type<tc>, window_params = [{transform_indices = @transform_0, window_bounds = array<i64: 1, 8, 1408>}, {pipeline_mode = #tpu.pipeline_mode<synchronous>, transform_indices = @transform_1, window_bounds = array<i64: 4, 72>}, {pipeline_mode = #tpu.pipeline_mode<synchronous>, transform_indices = @transform_2, window_bounds = array<i64: 4, 1>}, {transform_indices = @transform_3, window_bounds = array<i64: 1, 4, 1280>}, {transform_indices = @transform_4, window_bounds = array<i64: 1, 4, 1>}, {transform_indices = @transform_5, window_bounds = array<i64: 1, 4, 1>}]} {
    %c0 = arith.constant 0 : index
    %c0_0 = arith.constant 0 : index
    %c0_1 = arith.constant 0 : index
    %0 = vector.load %arg1[%c0, %c0_0, %c0_1] : memref<1x8x1408xf32, #tpu.memory_space<vmem>>, vector<1x8x1280xf32>
    %1 = vector.shape_cast %0 : vector<1x8x1280xf32> to vector<8x1280xf32>
    %c0_2 = arith.constant 0 : index
    %c0_3 = arith.constant 0 : index
    %2 = vector.load %arg7[%c0_2, %c0_3] : memref<72x1280xf32, #tpu.memory_space<vmem>>, vector<8x1280xf32>
    tpu.vector_store %arg7[%c0_2, %c0_3], %1 {strides = array<i32>} : memref<72x1280xf32, #tpu.memory_space<vmem>>, vector<8x1280xf32>,
    %c0_4 = arith.constant 0 : index
    %c0_5 = arith.constant 0 : index
    %c1 = arith.constant 1 : index
    %3 = vector.load %arg1[%c0_4, %c0_5, %c1] : memref<1x8x1408xf32, #tpu.memory_space<vmem>>, vector<1x8x1280xf32>
    %4 = vector.shape_cast %3 : vector<1x8x1280xf32> to vector<8x1280xf32>
    %c8 = arith.constant 8 : index
    %c0_6 = arith.constant 0 : index
    %5 = vector.load %arg7[%c8, %c0_6] : memref<72x1280xf32, #tpu.memory_space<vmem>>, vector<8x1280xf32>
    tpu.vector_store %arg7[%c8, %c0_6], %4 {strides = array<i32>} : memref<72x1280xf32, #tpu.memory_space<vmem>>, vector<8x1280xf32>,
    %c0_7 = arith.constant 0 : index
    %c0_8 = arith.constant 0 : index
    %c2 = arith.constant 2 : index
    %6 = vector.load %arg1[%c0_7, %c0_8, %c2] : memref<1x8x1408xf32, #tpu.memory_space<vmem>>, vector<1x8x1280xf32>
    %7 = vector.shape_cast %6 : vector<1x8x1280xf32> to vector<8x1280xf32>
    %c16 = arith.constant 16 : index
    %c0_9 = arith.constant 0 : index
    %8 = vector.load %arg7[%c16, %c0_9] : memref<72x1280xf32, #tpu.memory_space<vmem>>, vector<8x1280xf32>
    tpu.vector_store %arg7[%c16, %c0_9], %7 {strides = array<i32>} : memref<72x1280xf32, #tpu.memory_space<vmem>>, vector<8x1280xf32>,
    %c0_10 = arith.constant 0 : index
    %c0_11 = arith.constant 0 : index
    %c34 = arith.constant 34 : index
    %9 = vector.load %arg1[%c0_10, %c0_11, %c34] : memref<1x8x1408xf32, #tpu.memory_space<vmem>>, vector<1x8x1280xf32>
    %10 = vector.shape_cast %9 : vector<1x8x1280xf32> to vector<8x1280xf32>
    %c24 = arith.constant 24 : index
    %c0_12 = arith.constant 0 : index
    %11 = vector.load %arg7[%c24, %c0_12] : memref<72x1280xf32, #tpu.memory_space<vmem>>, vector<8x1280xf32>
    tpu.vector_store %arg7[%c24, %c0_12], %10 {strides = array<i32>} : memref<72x1280xf32, #tpu.memory_space<vmem>>, vector<8x1280xf32>,
    %c0_13 = arith.constant 0 : index
    %c0_14 = arith.constant 0 : index
    %c35 = arith.constant 35 : index
    %12 = vector.load %arg1[%c0_13, %c0_14, %c35] : memref<1x8x1408xf32, #tpu.memory_space<vmem>>, vector<1x8x1280xf32>
    %13 = vector.shape_cast %12 : vector<1x8x1280xf32> to vector<8x1280xf32>
    %c32 = arith.constant 32 : index
    %c0_15 = arith.constant 0 : index
    %14 = vector.load %arg7[%c32, %c0_15] : memref<72x1280xf32, #tpu.memory_space<vmem>>, vector<8x1280xf32>
    tpu.vector_store %arg7[%c32, %c0_15], %13 {strides = array<i32>} : memref<72x1280xf32, #tpu.memory_space<vmem>>, vector<8x1280xf32>,
    %c0_16 = arith.constant 0 : index
    %c0_17 = arith.constant 0 : index
    %c36 = arith.constant 36 : index
    %15 = vector.load %arg1[%c0_16, %c0_17, %c36] : memref<1x8x1408xf32, #tpu.memory_space<vmem>>, vector<1x8x1280xf32>
    %16 = vector.shape_cast %15 : vector<1x8x1280xf32> to vector<8x1280xf32>
    %c40 = arith.constant 40 : index
    %c0_18 = arith.constant 0 : index
    %17 = vector.load %arg7[%c40, %c0_18] : memref<72x1280xf32, #tpu.memory_space<vmem>>, vector<8x1280xf32>
    tpu.vector_store %arg7[%c40, %c0_18], %16 {strides = array<i32>} : memref<72x1280xf32, #tpu.memory_space<vmem>>, vector<8x1280xf32>,
    %c0_19 = arith.constant 0 : index
    %c0_20 = arith.constant 0 : index
    %c68 = arith.constant 68 : index
    %18 = vector.load %arg1[%c0_19, %c0_20, %c68] : memref<1x8x1408xf32, #tpu.memory_space<vmem>>, vector<1x8x1280xf32>
    %19 = vector.shape_cast %18 : vector<1x8x1280xf32> to vector<8x1280xf32>
    %c48 = arith.constant 48 : index
    %c0_21 = arith.constant 0 : index
    %20 = vector.load %arg7[%c48, %c0_21] : memref<72x1280xf32, #tpu.memory_space<vmem>>, vector<8x1280xf32>
    tpu.vector_store %arg7[%c48, %c0_21], %19 {strides = array<i32>} : memref<72x1280xf32, #tpu.memory_space<vmem>>, vector<8x1280xf32>,
    %c0_22 = arith.constant 0 : index
    %c0_23 = arith.constant 0 : index
    %c69 = arith.constant 69 : index
    %21 = vector.load %arg1[%c0_22, %c0_23, %c69] : memref<1x8x1408xf32, #tpu.memory_space<vmem>>, vector<1x8x1280xf32>
    %22 = vector.shape_cast %21 : vector<1x8x1280xf32> to vector<8x1280xf32>
    %c56 = arith.constant 56 : index
    %c0_24 = arith.constant 0 : index
    %23 = vector.load %arg7[%c56, %c0_24] : memref<72x1280xf32, #tpu.memory_space<vmem>>, vector<8x1280xf32>
    tpu.vector_store %arg7[%c56, %c0_24], %22 {strides = array<i32>} : memref<72x1280xf32, #tpu.memory_space<vmem>>, vector<8x1280xf32>,
    %c0_25 = arith.constant 0 : index
    %c0_26 = arith.constant 0 : index
    %c70 = arith.constant 70 : index
    %24 = vector.load %arg1[%c0_25, %c0_26, %c70] : memref<1x8x1408xf32, #tpu.memory_space<vmem>>, vector<1x8x1280xf32>
    %25 = vector.shape_cast %24 : vector<1x8x1280xf32> to vector<8x1280xf32>
    %c64 = arith.constant 64 : index
    %c0_27 = arith.constant 0 : index
    %26 = vector.load %arg7[%c64, %c0_27] : memref<72x1280xf32, #tpu.memory_space<vmem>>, vector<8x1280xf32>
    tpu.vector_store %arg7[%c64, %c0_27], %25 {strides = array<i32>} : memref<72x1280xf32, #tpu.memory_space<vmem>>, vector<8x1280xf32>,
    %c0_28 = arith.constant 0 : index
    %c0_29 = arith.constant 0 : index
    %27 = vector.load %arg2[%c0_28, %c0_29] : memref<4x72xf32, #tpu.memory_space<vmem>>, vector<4x72xf32>
    %c0_30 = arith.constant 0 : index
    %c0_31 = arith.constant 0 : index
    %28 = vector.load %arg7[%c0_30, %c0_31] : memref<72x1280xf32, #tpu.memory_space<vmem>>, vector<72x1280xf32>
    %cst = arith.constant dense<0.000000e+00> : vector<4x1280xf32>
    %29 = tpu.matmul %27, %28, %cst {dimension_numbers = #tpu.dot_dimension_numbers<[1], [0], [0], [1], [0, 0, 1, 1], [], []>} : vector<4x72xf32>, vector<72x1280xf32>, vector<4x1280xf32> -> vector<4x1280xf32>
    %c0_32 = arith.constant 0 : index
    %c0_33 = arith.constant 0 : index
    %30 = vector.load %arg3[%c0_32, %c0_33] : memref<4x1xf32, #tpu.memory_space<vmem>>, vector<4x1xf32>
    %31 = vector.broadcast %30 : vector<4x1xf32> to vector<4x1280xf32>
    %32 = arith.addf %29, %31 : vector<4x1280xf32>
    %c0_34 = arith.constant 0 : index
    %c0_35 = arith.constant 0 : index
    %c0_36 = arith.constant 0 : index
    %33 = vector.load %arg4[%c0_34, %c0_35, %c0_36] : memref<1x4x1280xf32, #tpu.memory_space<vmem>>, vector<1x4x1280xf32>
    %34 = vector.shape_cast %33 : vector<1x4x1280xf32> to vector<4x1280xf32>
    %35 = vector.shape_cast %32 : vector<4x1280xf32> to vector<1x4x1280xf32>
    tpu.vector_store %arg4[%c0_34, %c0_35, %c0_36], %35 {strides = array<i32>} : memref<1x4x1280xf32, #tpu.memory_space<vmem>>, vector<1x4x1280xf32>,
    %36 = tpu.iota {dimensions = array<i32: 1>} : vector<1x1280xi32>
    %c241_i32 = arith.constant 241 : i32
    %37 = vector.broadcast %c241_i32 : i32 to vector<1x1280xi32>
    %38 = arith.muli %36, %37 : vector<1x1280xi32>
    %c13_i32 = arith.constant 13 : i32
    %39 = vector.broadcast %c13_i32 : i32 to vector<1x1280xi32>
    %40 = arith.shrsi %38, %39 : vector<1x1280xi32>
    %c34_i32 = arith.constant 34 : i32
    %41 = vector.broadcast %c34_i32 : i32 to vector<1x1280xi32>
    %42 = arith.muli %40, %41 : vector<1x1280xi32>
    %43 = arith.subi %36, %42 : vector<1x1280xi32>
    %c32_i32 = arith.constant 32 : i32
    %44 = vector.broadcast %c32_i32 : i32 to vector<1x1280xi32>
    %45 = arith.cmpi slt, %40, %44 : vector<1x1280xi32>
    %c32_i32_37 = arith.constant 32 : i32
    %46 = vector.broadcast %c32_i32_37 : i32 to vector<1x1280xi32>
    %47 = arith.cmpi slt, %43, %46 : vector<1x1280xi32>
    %48 = arith.andi %45, %47 : vector<1x1280xi1>
    %49 = arith.extui %48 : vector<1x1280xi1> to vector<1x1280xi32>
    %50 = arith.sitofp %49 : vector<1x1280xi32> to vector<1x1280xf32>
    %51 = vector.broadcast %50 : vector<1x1280xf32> to vector<4x1280xf32>
    %52 = arith.mulf %32, %51 : vector<4x1280xf32>
    %cst_38 = arith.constant dense<0.000000e+00> : vector<4xf32>
    %53 = vector.multi_reduction <add>, %52, %cst_38 [1] : vector<4x1280xf32> to vector<4xf32>
    %54 = vector.shape_cast %53 : vector<4xf32> to vector<4x1xf32>
    %c0_39 = arith.constant 0 : index
    %c0_40 = arith.constant 0 : index
    %c0_41 = arith.constant 0 : index
    %55 = vector.load %arg5[%c0_39, %c0_40, %c0_41] : memref<1x4x1xf32, #tpu.memory_space<vmem>>, vector<1x4x1xf32>
    %56 = vector.shape_cast %55 : vector<1x4x1xf32> to vector<4x1xf32>
    %57 = vector.shape_cast %54 : vector<4x1xf32> to vector<1x4x1xf32>
    tpu.vector_store %arg5[%c0_39, %c0_40, %c0_41], %57 {strides = array<i32>} : memref<1x4x1xf32, #tpu.memory_space<vmem>>, vector<1x4x1xf32>,
    %58 = arith.mulf %52, %32 : vector<4x1280xf32>
    %cst_42 = arith.constant dense<0.000000e+00> : vector<4xf32>
    %59 = vector.multi_reduction <add>, %58, %cst_42 [1] : vector<4x1280xf32> to vector<4xf32>
    %60 = vector.shape_cast %59 : vector<4xf32> to vector<4x1xf32>
    %c0_43 = arith.constant 0 : index
    %c0_44 = arith.constant 0 : index
    %c0_45 = arith.constant 0 : index
    %61 = vector.load %arg6[%c0_43, %c0_44, %c0_45] : memref<1x4x1xf32, #tpu.memory_space<vmem>>, vector<1x4x1xf32>
    %62 = vector.shape_cast %61 : vector<1x4x1xf32> to vector<4x1xf32>
    %63 = vector.shape_cast %60 : vector<4x1xf32> to vector<1x4x1xf32>
    tpu.vector_store %arg6[%c0_43, %c0_44, %c0_45], %63 {strides = array<i32>} : memref<1x4x1xf32, #tpu.memory_space<vmem>>, vector<1x4x1xf32>,
    return
  }
  func.func @transform_0(%arg0: i32) -> (i32, i32, i32) {
    %c0_i32 = arith.constant 0 : i32
    %c0_i32_0 = arith.constant 0 : i32
    %c0_i32_1 = arith.constant 0 : i32
    return %arg0, %c0_i32, %c0_i32_0 : i32, i32, i32
  }
  func.func @transform_1(%arg0: i32) -> (i32, i32) {
    %c0_i32 = arith.constant 0 : i32
    %c0_i32_0 = arith.constant 0 : i32
    %c0_i32_1 = arith.constant 0 : i32
    return %c0_i32, %c0_i32_0 : i32, i32
  }
  func.func @transform_2(%arg0: i32) -> (i32, i32) {
    %c0_i32 = arith.constant 0 : i32
    %c0_i32_0 = arith.constant 0 : i32
    %c0_i32_1 = arith.constant 0 : i32
    return %c0_i32, %c0_i32_0 : i32, i32
  }
  func.func @transform_3(%arg0: i32) -> (i32, i32, i32) {
    %c0_i32 = arith.constant 0 : i32
    %c0_i32_0 = arith.constant 0 : i32
    %c0_i32_1 = arith.constant 0 : i32
    return %arg0, %c0_i32, %c0_i32_0 : i32, i32, i32
  }
  func.func @transform_4(%arg0: i32) -> (i32, i32, i32) {
    %c0_i32 = arith.constant 0 : i32
    %c0_i32_0 = arith.constant 0 : i32
    %c0_i32_1 = arith.constant 0 : i32
    return %arg0, %c0_i32, %c0_i32_0 : i32, i32, i32
  }
  func.func @transform_5(%arg0: i32) -> (i32, i32, i32) {
    %c0_i32 = arith.constant 0 : i32
    %c0_i32_0 = arith.constant 0 : i32
    %c0_i32_1 = arith.constant 0 : i32
    return %arg0, %c0_i32, %c0_i32_0 : i32, i32, i32
  }
}

module attributes {stable_mosaic.version = 11 : i64} {
  func.func @kernel(%arg0: i32, %arg1: i32, %arg2: memref<1x4x1280xf32, #tpu.memory_space<vmem>>, %arg3: memref<2x4x1xf32, #tpu.memory_space<vmem>>, %arg4: memref<2x4x1xf32, #tpu.memory_space<vmem>>, %arg5: memref<4x1xf32, #tpu.memory_space<vmem>>, %arg6: memref<4x1xf32, #tpu.memory_space<vmem>>, %arg7: memref<4x36xf32, #tpu.memory_space<vmem>>, %arg8: memref<4x1xf32, #tpu.memory_space<vmem>>, %arg9: memref<4x1xf32, #tpu.memory_space<vmem>>, %arg10: memref<4x1xf32, #tpu.memory_space<vmem>>, %arg11: memref<1x4x1280xf32, #tpu.memory_space<vmem>>, %arg12: memref<2x4x1280xf32, #tpu.memory_space<vmem>>, %arg13: memref<36x1280xf32, #tpu.memory_space<vmem>>, %arg14: memref<4x1536xf32, #tpu.memory_space<vmem>>, %arg15: memref<4x2xf32, #tpu.memory_space<vmem>>) attributes {dimension_semantics = [#tpu.dimension_semantics<arbitrary>, #tpu.dimension_semantics<arbitrary>], iteration_bounds = array<i64: 2, 2>, scalar_prefetch = 0 : i64, scratch_operands = 4 : i64, tpu.core_type = #tpu.core_type<tc>, window_params = [{transform_indices = @transform_0, window_bounds = array<i64: 1, 4, 1280>}, {pipeline_mode = #tpu.pipeline_mode<synchronous>, transform_indices = @transform_1, window_bounds = array<i64: 2, 4, 1>}, {pipeline_mode = #tpu.pipeline_mode<synchronous>, transform_indices = @transform_2, window_bounds = array<i64: 2, 4, 1>}, {pipeline_mode = #tpu.pipeline_mode<synchronous>, transform_indices = @transform_3, window_bounds = array<i64: 4, 1>}, {pipeline_mode = #tpu.pipeline_mode<synchronous>, transform_indices = @transform_4, window_bounds = array<i64: 4, 1>}, {pipeline_mode = #tpu.pipeline_mode<synchronous>, transform_indices = @transform_5, window_bounds = array<i64: 4, 36>}, {pipeline_mode = #tpu.pipeline_mode<synchronous>, transform_indices = @transform_6, window_bounds = array<i64: 4, 1>}, {pipeline_mode = #tpu.pipeline_mode<synchronous>, transform_indices = @transform_7, window_bounds = array<i64: 4, 1>}, {pipeline_mode = #tpu.pipeline_mode<synchronous>, transform_indices = @transform_8, window_bounds = array<i64: 4, 1>}, {transform_indices = @transform_9, window_bounds = array<i64: 1, 4, 1280>}]} {
    %c0_i32 = arith.constant 0 : i32
    %0 = arith.cmpi eq, %arg0, %c0_i32 : i32
    %c0_i32_0 = arith.constant 0 : i32
    %1 = arith.cmpi eq, %arg1, %c0_i32_0 : i32
    %2 = arith.andi %0, %1 : i1
    %3 = arith.extui %2 : i1 to i32
    %c0_i32_1 = arith.constant 0 : i32
    %4 = arith.cmpi ne, %3, %c0_i32_1 : i32
    scf.if %4 {
      %cst = arith.constant 0.000000e+00 : f32
      %11 = vector.broadcast %cst : f32 to vector<4x128xf32>
      %c0 = arith.constant 0 : index
      %c0_5 = arith.constant 0 : index
      %12 = vector.load %arg14[%c0, %c0_5] : memref<4x1536xf32, #tpu.memory_space<vmem>>, vector<4x128xf32>
      tpu.vector_store %arg14[%c0, %c0_5], %11 {strides = array<i32>} : memref<4x1536xf32, #tpu.memory_space<vmem>>, vector<4x128xf32>,
      %cst_6 = arith.constant 0.000000e+00 : f32
      %13 = vector.broadcast %cst_6 : f32 to vector<4x128xf32>
      %c0_7 = arith.constant 0 : index
      %c1408 = arith.constant 1408 : index
      %14 = vector.load %arg14[%c0_7, %c1408] : memref<4x1536xf32, #tpu.memory_space<vmem>>, vector<4x128xf32>
      tpu.vector_store %arg14[%c0_7, %c1408], %13 {strides = array<i32>} : memref<4x1536xf32, #tpu.memory_space<vmem>>, vector<4x128xf32>,
      %cst_8 = arith.constant 0.000000e+00 : f32
      %15 = vector.broadcast %cst_8 : f32 to vector<4x2xf32>
      %c0_9 = arith.constant 0 : index
      %c0_10 = arith.constant 0 : index
      %16 = vector.load %arg15[%c0_9, %c0_10] : memref<4x2xf32, #tpu.memory_space<vmem>>, vector<4x2xf32>
      tpu.vector_store %arg15[%c0_9, %c0_10], %15 {strides = array<i32>} : memref<4x2xf32, #tpu.memory_space<vmem>>, vector<4x2xf32>,
    } else {
    }
    %c0_i32_2 = arith.constant 0 : i32
    %5 = arith.cmpi eq, %arg0, %c0_i32_2 : i32
    %6 = arith.extui %5 : i1 to i32
    %c0_i32_3 = arith.constant 0 : i32
    %7 = arith.cmpi ne, %6, %c0_i32_3 : i32
    scf.if %7 {
      %11 = tpu.iota {dimensions = array<i32: 1>} : vector<1x1280xi32>
      %c241_i32 = arith.constant 241 : i32
      %12 = vector.broadcast %c241_i32 : i32 to vector<1x1280xi32>
      %13 = arith.muli %11, %12 : vector<1x1280xi32>
      %c13_i32 = arith.constant 13 : i32
      %14 = vector.broadcast %c13_i32 : i32 to vector<1x1280xi32>
      %15 = arith.shrsi %13, %14 : vector<1x1280xi32>
      %c34_i32 = arith.constant 34 : i32
      %16 = vector.broadcast %c34_i32 : i32 to vector<1x1280xi32>
      %17 = arith.muli %15, %16 : vector<1x1280xi32>
      %18 = arith.subi %11, %17 : vector<1x1280xi32>
      %c32_i32 = arith.constant 32 : i32
      %19 = vector.broadcast %c32_i32 : i32 to vector<1x1280xi32>
      %20 = arith.cmpi slt, %15, %19 : vector<1x1280xi32>
      %c32_i32_5 = arith.constant 32 : i32
      %21 = vector.broadcast %c32_i32_5 : i32 to vector<1x1280xi32>
      %22 = arith.cmpi slt, %18, %21 : vector<1x1280xi32>
      %23 = arith.andi %20, %22 : vector<1x1280xi1>
      %24 = arith.extui %23 : vector<1x1280xi1> to vector<1x1280xi32>
      %25 = arith.sitofp %24 : vector<1x1280xi32> to vector<1x1280xf32>
      %c0 = arith.constant 0 : index
      %c0_6 = arith.constant 0 : index
      %c0_7 = arith.constant 0 : index
      %26 = vector.load %arg3[%c0, %c0_6, %c0_7] : memref<2x4x1xf32, #tpu.memory_space<vmem>>, vector<1x4x1xf32>
      %27 = vector.shape_cast %26 : vector<1x4x1xf32> to vector<4x1xf32>
      %c0_8 = arith.constant 0 : index
      %c0_9 = arith.constant 0 : index
      %c0_10 = arith.constant 0 : index
      %28 = vector.load %arg4[%c0_8, %c0_9, %c0_10] : memref<2x4x1xf32, #tpu.memory_space<vmem>>, vector<1x4x1xf32>
      %29 = vector.shape_cast %28 : vector<1x4x1xf32> to vector<4x1xf32>
      %c1 = arith.constant 1 : index
      %c0_11 = arith.constant 0 : index
      %c0_12 = arith.constant 0 : index
      %30 = vector.load %arg3[%c1, %c0_11, %c0_12] : memref<2x4x1xf32, #tpu.memory_space<vmem>>, vector<1x4x1xf32>
      %31 = vector.shape_cast %30 : vector<1x4x1xf32> to vector<4x1xf32>
      %32 = arith.addf %27, %31 : vector<4x1xf32>
      %c1_13 = arith.constant 1 : index
      %c0_14 = arith.constant 0 : index
      %c0_15 = arith.constant 0 : index
      %33 = vector.load %arg4[%c1_13, %c0_14, %c0_15] : memref<2x4x1xf32, #tpu.memory_space<vmem>>, vector<1x4x1xf32>
      %34 = vector.shape_cast %33 : vector<1x4x1xf32> to vector<4x1xf32>
      %35 = arith.addf %29, %34 : vector<4x1xf32>
      %cst = arith.constant 2.048000e+03 : f32
      %36 = vector.broadcast %cst : f32 to vector<4x1xf32>
      %37 = arith.divf %32, %36 : vector<4x1xf32>
      %cst_16 = arith.constant 2.048000e+03 : f32
      %38 = vector.broadcast %cst_16 : f32 to vector<4x1xf32>
      %39 = arith.divf %35, %38 : vector<4x1xf32>
      %40 = arith.mulf %37, %37 : vector<4x1xf32>
      %41 = arith.subf %39, %40 : vector<4x1xf32>
      %cst_17 = arith.constant 9.99999974E-6 : f32
      %42 = vector.broadcast %cst_17 : f32 to vector<4x1xf32>
      %43 = arith.addf %41, %42 : vector<4x1xf32>
      %44 = math.rsqrt %43 : vector<4x1xf32>
      %c0_18 = arith.constant 0 : index
      %c0_19 = arith.constant 0 : index
      %c0_20 = arith.constant 0 : index
      %45 = vector.load %arg2[%c0_18, %c0_19, %c0_20] : memref<1x4x1280xf32, #tpu.memory_space<vmem>>, vector<1x4x1280xf32>
      %46 = vector.shape_cast %45 : vector<1x4x1280xf32> to vector<4x1280xf32>
      %47 = vector.broadcast %37 : vector<4x1xf32> to vector<4x1280xf32>
      %48 = arith.subf %46, %47 : vector<4x1280xf32>
      %49 = vector.broadcast %44 : vector<4x1xf32> to vector<4x1280xf32>
      %50 = arith.mulf %48, %49 : vector<4x1280xf32>
      %c0_21 = arith.constant 0 : index
      %c0_22 = arith.constant 0 : index
      %51 = vector.load %arg5[%c0_21, %c0_22] : memref<4x1xf32, #tpu.memory_space<vmem>>, vector<4x1xf32>
      %52 = vector.broadcast %51 : vector<4x1xf32> to vector<4x1280xf32>
      %53 = arith.mulf %50, %52 : vector<4x1280xf32>
      %c0_23 = arith.constant 0 : index
      %c0_24 = arith.constant 0 : index
      %54 = vector.load %arg6[%c0_23, %c0_24] : memref<4x1xf32, #tpu.memory_space<vmem>>, vector<4x1xf32>
      %55 = vector.broadcast %54 : vector<4x1xf32> to vector<4x1280xf32>
      %56 = arith.addf %53, %55 : vector<4x1280xf32>
      %cst_25 = arith.constant 0.000000e+00 : f32
      %57 = vector.broadcast %cst_25 : f32 to vector<4x1280xf32>
      %58 = arith.maximumf %56, %57 : vector<4x1280xf32>
      %59 = vector.broadcast %25 : vector<1x1280xf32> to vector<4x1280xf32>
      %60 = arith.mulf %58, %59 : vector<4x1280xf32>
      %c0_26 = arith.constant 0 : index
      %c128 = arith.constant 128 : index
      %61 = vector.load %arg14[%c0_26, %c128] : memref<4x1536xf32, #tpu.memory_space<vmem>>, vector<4x1280xf32>
      tpu.vector_store %arg14[%c0_26, %c128], %60 {strides = array<i32>} : memref<4x1536xf32, #tpu.memory_space<vmem>>, vector<4x1280xf32>,
      %c0_27 = arith.constant 0 : index
      %c93 = arith.constant 93 : index
      %62 = vector.load %arg14[%c0_27, %c93] : memref<4x1536xf32, #tpu.memory_space<vmem>>, vector<4x1280xf32>
      %c0_28 = arith.constant 0 : index
      %c0_29 = arith.constant 0 : index
      %63 = vector.load %arg13[%c0_28, %c0_29] : memref<36x1280xf32, #tpu.memory_space<vmem>>, vector<4x1280xf32>
      tpu.vector_store %arg13[%c0_28, %c0_29], %62 {strides = array<i32>} : memref<36x1280xf32, #tpu.memory_space<vmem>>, vector<4x1280xf32>,
      %c0_30 = arith.constant 0 : index
      %c94 = arith.constant 94 : index
      %64 = vector.load %arg14[%c0_30, %c94] : memref<4x1536xf32, #tpu.memory_space<vmem>>, vector<4x1280xf32>
      %c4 = arith.constant 4 : index
      %c0_31 = arith.constant 0 : index
      %65 = vector.load %arg13[%c4, %c0_31] : memref<36x1280xf32, #tpu.memory_space<vmem>>, vector<4x1280xf32>
      tpu.vector_store %arg13[%c4, %c0_31], %64 {strides = array<i32>} : memref<36x1280xf32, #tpu.memory_space<vmem>>, vector<4x1280xf32>,
      %c0_32 = arith.constant 0 : index
      %c95 = arith.constant 95 : index
      %66 = vector.load %arg14[%c0_32, %c95] : memref<4x1536xf32, #tpu.memory_space<vmem>>, vector<4x1280xf32>
      %c8 = arith.constant 8 : index
      %c0_33 = arith.constant 0 : index
      %67 = vector.load %arg13[%c8, %c0_33] : memref<36x1280xf32, #tpu.memory_space<vmem>>, vector<4x1280xf32>
      tpu.vector_store %arg13[%c8, %c0_33], %66 {strides = array<i32>} : memref<36x1280xf32, #tpu.memory_space<vmem>>, vector<4x1280xf32>,
      %c0_34 = arith.constant 0 : index
      %c127 = arith.constant 127 : index
      %68 = vector.load %arg14[%c0_34, %c127] : memref<4x1536xf32, #tpu.memory_space<vmem>>, vector<4x1280xf32>
      %c12 = arith.constant 12 : index
      %c0_35 = arith.constant 0 : index
      %69 = vector.load %arg13[%c12, %c0_35] : memref<36x1280xf32, #tpu.memory_space<vmem>>, vector<4x1280xf32>
      tpu.vector_store %arg13[%c12, %c0_35], %68 {strides = array<i32>} : memref<36x1280xf32, #tpu.memory_space<vmem>>, vector<4x1280xf32>,
      %c0_36 = arith.constant 0 : index
      %c128_37 = arith.constant 128 : index
      %70 = vector.load %arg14[%c0_36, %c128_37] : memref<4x1536xf32, #tpu.memory_space<vmem>>, vector<4x1280xf32>
      %c16 = arith.constant 16 : index
      %c0_38 = arith.constant 0 : index
      %71 = vector.load %arg13[%c16, %c0_38] : memref<36x1280xf32, #tpu.memory_space<vmem>>, vector<4x1280xf32>
      tpu.vector_store %arg13[%c16, %c0_38], %70 {strides = array<i32>} : memref<36x1280xf32, #tpu.memory_space<vmem>>, vector<4x1280xf32>,
      %c0_39 = arith.constant 0 : index
      %c129 = arith.constant 129 : index
      %72 = vector.load %arg14[%c0_39, %c129] : memref<4x1536xf32, #tpu.memory_space<vmem>>, vector<4x1280xf32>
      %c20 = arith.constant 20 : index
      %c0_40 = arith.constant 0 : index
      %73 = vector.load %arg13[%c20, %c0_40] : memref<36x1280xf32, #tpu.memory_space<vmem>>, vector<4x1280xf32>
      tpu.vector_store %arg13[%c20, %c0_40], %72 {strides = array<i32>} : memref<36x1280xf32, #tpu.memory_space<vmem>>, vector<4x1280xf32>,
      %c0_41 = arith.constant 0 : index
      %c161 = arith.constant 161 : index
      %74 = vector.load %arg14[%c0_41, %c161] : memref<4x1536xf32, #tpu.memory_space<vmem>>, vector<4x1280xf32>
      %c24 = arith.constant 24 : index
      %c0_42 = arith.constant 0 : index
      %75 = vector.load %arg13[%c24, %c0_42] : memref<36x1280xf32, #tpu.memory_space<vmem>>, vector<4x1280xf32>
      tpu.vector_store %arg13[%c24, %c0_42], %74 {strides = array<i32>} : memref<36x1280xf32, #tpu.memory_space<vmem>>, vector<4x1280xf32>,
      %c0_43 = arith.constant 0 : index
      %c162 = arith.constant 162 : index
      %76 = vector.load %arg14[%c0_43, %c162] : memref<4x1536xf32, #tpu.memory_space<vmem>>, vector<4x1280xf32>
      %c28 = arith.constant 28 : index
      %c0_44 = arith.constant 0 : index
      %77 = vector.load %arg13[%c28, %c0_44] : memref<36x1280xf32, #tpu.memory_space<vmem>>, vector<4x1280xf32>
      tpu.vector_store %arg13[%c28, %c0_44], %76 {strides = array<i32>} : memref<36x1280xf32, #tpu.memory_space<vmem>>, vector<4x1280xf32>,
      %c0_45 = arith.constant 0 : index
      %c163 = arith.constant 163 : index
      %78 = vector.load %arg14[%c0_45, %c163] : memref<4x1536xf32, #tpu.memory_space<vmem>>, vector<4x1280xf32>
      %c32 = arith.constant 32 : index
      %c0_46 = arith.constant 0 : index
      %79 = vector.load %arg13[%c32, %c0_46] : memref<36x1280xf32, #tpu.memory_space<vmem>>, vector<4x1280xf32>
      tpu.vector_store %arg13[%c32, %c0_46], %78 {strides = array<i32>} : memref<36x1280xf32, #tpu.memory_space<vmem>>, vector<4x1280xf32>,
      %c0_47 = arith.constant 0 : index
      %c0_48 = arith.constant 0 : index
      %80 = vector.load %arg7[%c0_47, %c0_48] : memref<4x36xf32, #tpu.memory_space<vmem>>, vector<4x36xf32>
      %c0_49 = arith.constant 0 : index
      %c0_50 = arith.constant 0 : index
      %81 = vector.load %arg13[%c0_49, %c0_50] : memref<36x1280xf32, #tpu.memory_space<vmem>>, vector<36x1280xf32>
      %cst_51 = arith.constant dense<0.000000e+00> : vector<4x1280xf32>
      %82 = tpu.matmul %80, %81, %cst_51 {dimension_numbers = #tpu.dot_dimension_numbers<[1], [0], [0], [1], [0, 0, 1, 1], [], []>} : vector<4x36xf32>, vector<36x1280xf32>, vector<4x1280xf32> -> vector<4x1280xf32>
      %c0_52 = arith.constant 0 : index
      %c0_53 = arith.constant 0 : index
      %83 = vector.load %arg8[%c0_52, %c0_53] : memref<4x1xf32, #tpu.memory_space<vmem>>, vector<4x1xf32>
      %84 = vector.broadcast %83 : vector<4x1xf32> to vector<4x1280xf32>
      %85 = arith.addf %82, %84 : vector<4x1280xf32>
      %86 = arith.index_cast %arg1 : i32 to index
      %c0_54 = arith.constant 0 : index
      %c0_55 = arith.constant 0 : index
      %87 = vector.load %arg12[%86, %c0_54, %c0_55] : memref<2x4x1280xf32, #tpu.memory_space<vmem>>, vector<1x4x1280xf32>
      %88 = vector.shape_cast %87 : vector<1x4x1280xf32> to vector<4x1280xf32>
      %89 = vector.shape_cast %85 : vector<4x1280xf32> to vector<1x4x1280xf32>
      tpu.vector_store %arg12[%86, %c0_54, %c0_55], %89 {strides = array<i32>} : memref<2x4x1280xf32, #tpu.memory_space<vmem>>, vector<1x4x1280xf32>,
      %90 = vector.broadcast %25 : vector<1x1280xf32> to vector<4x1280xf32>
      %91 = arith.mulf %85, %90 : vector<4x1280xf32>
      %c0_56 = arith.constant 0 : index
      %c0_57 = arith.constant 0 : index
      %92 = vector.load %arg15[%c0_56, %c0_57] : memref<4x2xf32, #tpu.memory_space<vmem>>, vector<4x1xf32>
      %cst_58 = arith.constant dense<0.000000e+00> : vector<4xf32>
      %93 = vector.multi_reduction <add>, %91, %cst_58 [1] : vector<4x1280xf32> to vector<4xf32>
      %94 = vector.shape_cast %93 : vector<4xf32> to vector<4x1xf32>
      %95 = arith.addf %92, %94 : vector<4x1xf32>
      %c0_59 = arith.constant 0 : index
      %c0_60 = arith.constant 0 : index
      %96 = vector.load %arg15[%c0_59, %c0_60] : memref<4x2xf32, #tpu.memory_space<vmem>>, vector<4x1xf32>
      tpu.vector_store %arg15[%c0_59, %c0_60], %95 {strides = array<i32>} : memref<4x2xf32, #tpu.memory_space<vmem>>, vector<4x1xf32>,
      %c0_61 = arith.constant 0 : index
      %c1_62 = arith.constant 1 : index
      %97 = vector.load %arg15[%c0_61, %c1_62] : memref<4x2xf32, #tpu.memory_space<vmem>>, vector<4x1xf32>
      %98 = arith.mulf %91, %85 : vector<4x1280xf32>
      %cst_63 = arith.constant dense<0.000000e+00> : vector<4xf32>
      %99 = vector.multi_reduction <add>, %98, %cst_63 [1] : vector<4x1280xf32> to vector<4xf32>
      %100 = vector.shape_cast %99 : vector<4xf32> to vector<4x1xf32>
      %101 = arith.addf %97, %100 : vector<4x1xf32>
      %c0_64 = arith.constant 0 : index
      %c1_65 = arith.constant 1 : index
      %102 = vector.load %arg15[%c0_64, %c1_65] : memref<4x2xf32, #tpu.memory_space<vmem>>, vector<4x1xf32>
      tpu.vector_store %arg15[%c0_64, %c1_65], %101 {strides = array<i32>} : memref<4x2xf32, #tpu.memory_space<vmem>>, vector<4x1xf32>,
    } else {
    }
    %c1_i32 = arith.constant 1 : i32
    %8 = arith.cmpi eq, %arg0, %c1_i32 : i32
    %9 = arith.extui %8 : i1 to i32
    %c0_i32_4 = arith.constant 0 : i32
    %10 = arith.cmpi ne, %9, %c0_i32_4 : i32
    scf.if %10 {
      %c0 = arith.constant 0 : index
      %c0_5 = arith.constant 0 : index
      %11 = vector.load %arg15[%c0, %c0_5] : memref<4x2xf32, #tpu.memory_space<vmem>>, vector<4x1xf32>
      %cst = arith.constant 2.048000e+03 : f32
      %12 = vector.broadcast %cst : f32 to vector<4x1xf32>
      %13 = arith.divf %11, %12 : vector<4x1xf32>
      %c0_6 = arith.constant 0 : index
      %c1 = arith.constant 1 : index
      %14 = vector.load %arg15[%c0_6, %c1] : memref<4x2xf32, #tpu.memory_space<vmem>>, vector<4x1xf32>
      %cst_7 = arith.constant 2.048000e+03 : f32
      %15 = vector.broadcast %cst_7 : f32 to vector<4x1xf32>
      %16 = arith.divf %14, %15 : vector<4x1xf32>
      %17 = arith.mulf %13, %13 : vector<4x1xf32>
      %18 = arith.subf %16, %17 : vector<4x1xf32>
      %cst_8 = arith.constant 9.99999974E-6 : f32
      %19 = vector.broadcast %cst_8 : f32 to vector<4x1xf32>
      %20 = arith.addf %18, %19 : vector<4x1xf32>
      %21 = math.rsqrt %20 : vector<4x1xf32>
      %22 = arith.index_cast %arg1 : i32 to index
      %c0_9 = arith.constant 0 : index
      %c0_10 = arith.constant 0 : index
      %23 = vector.load %arg12[%22, %c0_9, %c0_10] : memref<2x4x1280xf32, #tpu.memory_space<vmem>>, vector<1x4x1280xf32>
      %24 = vector.shape_cast %23 : vector<1x4x1280xf32> to vector<4x1280xf32>
      %25 = vector.broadcast %13 : vector<4x1xf32> to vector<4x1280xf32>
      %26 = arith.subf %24, %25 : vector<4x1280xf32>
      %27 = vector.broadcast %21 : vector<4x1xf32> to vector<4x1280xf32>
      %28 = arith.mulf %26, %27 : vector<4x1280xf32>
      %c0_11 = arith.constant 0 : index
      %c0_12 = arith.constant 0 : index
      %29 = vector.load %arg9[%c0_11, %c0_12] : memref<4x1xf32, #tpu.memory_space<vmem>>, vector<4x1xf32>
      %30 = vector.broadcast %29 : vector<4x1xf32> to vector<4x1280xf32>
      %31 = arith.mulf %28, %30 : vector<4x1280xf32>
      %c0_13 = arith.constant 0 : index
      %c0_14 = arith.constant 0 : index
      %32 = vector.load %arg10[%c0_13, %c0_14] : memref<4x1xf32, #tpu.memory_space<vmem>>, vector<4x1xf32>
      %33 = vector.broadcast %32 : vector<4x1xf32> to vector<4x1280xf32>
      %34 = arith.addf %31, %33 : vector<4x1280xf32>
      %cst_15 = arith.constant 0.000000e+00 : f32
      %35 = vector.broadcast %cst_15 : f32 to vector<4x1280xf32>
      %36 = arith.maximumf %34, %35 : vector<4x1280xf32>
      %c0_16 = arith.constant 0 : index
      %c0_17 = arith.constant 0 : index
      %c0_18 = arith.constant 0 : index
      %37 = vector.load %arg11[%c0_16, %c0_17, %c0_18] : memref<1x4x1280xf32, #tpu.memory_space<vmem>>, vector<1x4x1280xf32>
      %38 = vector.shape_cast %37 : vector<1x4x1280xf32> to vector<4x1280xf32>
      %39 = vector.shape_cast %36 : vector<4x1280xf32> to vector<1x4x1280xf32>
      tpu.vector_store %arg11[%c0_16, %c0_17, %c0_18], %39 {strides = array<i32>} : memref<1x4x1280xf32, #tpu.memory_space<vmem>>, vector<1x4x1280xf32>,
    } else {
    }
    return
  }
  func.func @transform_0(%arg0: i32, %arg1: i32) -> (i32, i32, i32) {
    %c1_i32 = arith.constant 1 : i32
    %0 = arith.subi %c1_i32, %arg0 : i32
    %1 = arith.muli %arg1, %0 : i32
    %c0_i32 = arith.constant 0 : i32
    %c0_i32_0 = arith.constant 0 : i32
    %c0_i32_1 = arith.constant 0 : i32
    return %1, %c0_i32, %c0_i32_0 : i32, i32, i32
  }
  func.func @transform_1(%arg0: i32, %arg1: i32) -> (i32, i32, i32) {
    %c0_i32 = arith.constant 0 : i32
    %c0_i32_0 = arith.constant 0 : i32
    %c0_i32_1 = arith.constant 0 : i32
    %c0_i32_2 = arith.constant 0 : i32
    return %c0_i32, %c0_i32_0, %c0_i32_1 : i32, i32, i32
  }
  func.func @transform_2(%arg0: i32, %arg1: i32) -> (i32, i32, i32) {
    %c0_i32 = arith.constant 0 : i32
    %c0_i32_0 = arith.constant 0 : i32
    %c0_i32_1 = arith.constant 0 : i32
    %c0_i32_2 = arith.constant 0 : i32
    return %c0_i32, %c0_i32_0, %c0_i32_1 : i32, i32, i32
  }
  func.func @transform_3(%arg0: i32, %arg1: i32) -> (i32, i32) {
    %c0_i32 = arith.constant 0 : i32
    %c0_i32_0 = arith.constant 0 : i32
    %c0_i32_1 = arith.constant 0 : i32
    return %c0_i32, %c0_i32_0 : i32, i32
  }
  func.func @transform_4(%arg0: i32, %arg1: i32) -> (i32, i32) {
    %c0_i32 = arith.constant 0 : i32
    %c0_i32_0 = arith.constant 0 : i32
    %c0_i32_1 = arith.constant 0 : i32
    return %c0_i32, %c0_i32_0 : i32, i32
  }
  func.func @transform_5(%arg0: i32, %arg1: i32) -> (i32, i32) {
    %c0_i32 = arith.constant 0 : i32
    %c0_i32_0 = arith.constant 0 : i32
    %c0_i32_1 = arith.constant 0 : i32
    return %c0_i32, %c0_i32_0 : i32, i32
  }
  func.func @transform_6(%arg0: i32, %arg1: i32) -> (i32, i32) {
    %c0_i32 = arith.constant 0 : i32
    %c0_i32_0 = arith.constant 0 : i32
    %c0_i32_1 = arith.constant 0 : i32
    return %c0_i32, %c0_i32_0 : i32, i32
  }
  func.func @transform_7(%arg0: i32, %arg1: i32) -> (i32, i32) {
    %c0_i32 = arith.constant 0 : i32
    %c0_i32_0 = arith.constant 0 : i32
    %c0_i32_1 = arith.constant 0 : i32
    return %c0_i32, %c0_i32_0 : i32, i32
  }
  func.func @transform_8(%arg0: i32, %arg1: i32) -> (i32, i32) {
    %c0_i32 = arith.constant 0 : i32
    %c0_i32_0 = arith.constant 0 : i32
    %c0_i32_1 = arith.constant 0 : i32
    return %c0_i32, %c0_i32_0 : i32, i32
  }
  func.func @transform_9(%arg0: i32, %arg1: i32) -> (i32, i32, i32) {
    %0 = arith.muli %arg1, %arg0 : i32
    %c0_i32 = arith.constant 0 : i32
    %c0_i32_0 = arith.constant 0 : i32
    %c0_i32_1 = arith.constant 0 : i32
    return %0, %c0_i32, %c0_i32_0 : i32, i32, i32
  }
}

</mosaic_0001>

<llo_original>
// kernel: tile.8
$region0: #{tile.8}
  #allocation0 [shape = 's32[1]{0}', space=sflag, size = 0x4, scoped, tag = 'scoped memory for tile.8']
  %s0 = inlined_call_operand.vmem [shape: f32[4], index: 0, kind: input, shape index: {}]
  %s1 = inlined_call_operand.vmem [shape: f32[4,4], index: 1, kind: output, shape index: {}]
  // Predicated region
  $region2: #{tile.8} parent=0 // pred_check
    _
  $region3: #{tile.8} parent=0 // pred_check_branch
    %3 = sbr.rel (0) target = $region5
  $region4: #{tile.8} parent=0 // pred_region
    _
  $region5: #{tile.8} parent=0 // pred_fallthru
    _
  %v4 = vld [vmem:[%s0] ss:$0 sm:$0xff]
  %5 = vst [vmem:[%s1] sm:$0xf] %v4

// kernel: tile.0
$region0: #{tile.0}
  %s0 = inlined_call_operand.vmem [shape: f32[4,4], index: 0, kind: input, shape index: {}]
  %s1 = inlined_call_operand.vmem [shape: f32[16,1], index: 1, kind: output, shape index: {}]
  $region1: #{tile.0} parent=0
    #allocation0 [shape = 'u8[4096]{0}', space=vmem, size = 0x1000, scoped, tag = 'scoped mem for input reshape']
    %s3 = ssub.s32 16, 1
    %v4 = vld [vmem:[%s0] sm:%s3]
    %5 = vst [vmem:[#allocation0] sm:%s3] %v4
    %v6 = vld [vmem:[#allocation0] sm:$0xf]
    %vm7 = vcmask 7168
    %8 = vst.msk [vmem:[%s1] ss:$4 sm:$0xf] %vm7, %v6
    %v9 = vld [vmem:[#allocation0] sm:$0xf]
    %10 = vrot.lane.b32.xlu0 %v9, 127
    %v11 = vpop.permute.xlu0 %10
    %vm12 = vcmask 7168
    %s13 = scalar_lea.vmem %s1, 1
    %14 = vst.msk [vmem:[%s13] ss:$4 sm:$0xf] %vm12, %v11
    %v15 = vld [vmem:[#allocation0] sm:$0xf]
    %16 = vrot.lane.b32.xlu0 %v15, 126
    %v17 = vpop.permute.xlu0 %16
    %vm18 = vcmask 7168
    %s19 = scalar_lea.vmem %s1, 2
    %20 = vst.msk [vmem:[%s19] ss:$4 sm:$0xf] %vm18, %v17
    %v21 = vld [vmem:[#allocation0] sm:$0xf]
    %22 = vrot.lane.b32.xlu0 %v21, 125
    %v23 = vpop.permute.xlu0 %22
    %vm24 = vcmask 7168
    %s25 = scalar_lea.vmem %s1, 3
    %26 = vst.msk [vmem:[%s25] ss:$4 sm:$0xf] %vm24, %v23

// kernel: expander_forward.3
$region0: #{expander_forward.3}
  #allocation0 [shape = 'u32[]', space=smem, size = 0x4, offset = 0x4, fixed_abs, tag = 'smem constant byte address 0x4 - core index']
  #allocation1 [shape = 'u32[72,128]{1,0:T(1,128)}', space=vmem, size = 0x9000, scoped, tag = 'internal scratch']
  %s0 = inlined_call_operand.vmem [shape: f32[16,8], index: 0, kind: input, shape index: {}]
  %s1 = inlined_call_operand.vmem [shape: f32[8,512], index: 1, kind: input, shape index: {}]
  %s2 = inlined_call_operand.vmem [shape: f32[16,1], index: 2, kind: input, shape index: {}]
  %s3 = inlined_call_operand.vmem [shape: f32[16,512], index: 3, kind: output, shape index: {}]
  %s4 = sld [smem:[#allocation0]]
  $region64: #{expander_forward.3} parent=0
    _
  %s6 = ssub.s32 1, %s4
  %s7 = scalar_select 0, %s6, %s4
  $region1: #{expander_forward.3} parent=0
    #allocation2 [shape = 'u8[32768]{0}', space=vmem, size = 0x8000, scoped, tag = 'output window, operand 0']
    loop: start=0, step=1, limit=4
    $region2: #{expander_forward.3} parent=1 // loop_pre_header
      _
    $region3: #{expander_forward.3} parent=1 // loop_header
      %s9 = sphi 0, %s13
      %p10 = scmp.ge.s32.totalorder %s9, 4
      %s17 = sphi 0, %s17
      %s19 = sphi 0, %s17
      %s20 = sphi 0, %s19
      %s34 = sphi 0, %s20
      %s40 = sphi 0, %s42
      %s43 = sphi 0, %s40
      %s44 = sphi 0, %s43
      %s60 = sphi 0, %s44
      %s64 = sphi 0, %s64
      %s66 = sphi 0, %s64
      %s67 = sphi 0, %s66
      %s81 = sphi 0, %s67
      %s87 = sphi 0, %s89
      %s90 = sphi 0, %s87
      %s91 = sphi 0, %s90
      %s107 = sphi 0, %s91
    $region4: #{expander_forward.3} parent=1 // loop_header_branch
      %12 = sbr.rel (%p10) target = $region8
    $region5: #{expander_forward.3} parent=1 // loop_body
      %s14 = ssub.s32 %s9, 1
      %s15 = ssub.s32 %s9, 2
      %s16 = sadd.s32 %s9, 1
      %s18 = sadd.s32 %s17, 1
      %p21 = scmp.eq.s32.totalorder %s9, 1
      %p22 = scmp.ne.s32.totalorder %s17, %s19
      %p23 = scmp.eq.s32.totalorder %s9, 0
      %p24 = por %p22, %p23
      %p25 = scmp.ne.s32.totalorder %s17, %s19
      %p26 = scmp.eq.s32.totalorder %s14, 1
      %p27 = por %p25, %p26
      %p28 = scmp.ne.s32.totalorder %s19, %s20
      %p29 = scmp.eq.s32.totalorder %s14, 0
      %p30 = por %p28, %p29
      %p31 = scmp.ne.s32.totalorder %s19, %s20
      %p32 = scmp.eq.s32.totalorder %s15, 1
      %p33 = por %p31, %p32
      %p35 = scmp.ne.s32.totalorder %s20, %s34
      %p36 = scmp.eq.s32.totalorder %s15, 0
      %p37 = por %p35, %p36
      %s38 = ssub.s32 %s9, %s16
      %p39 = scmp.eq.s32.totalorder %s38, 0
      %s41 = sadd.s32 %s40, 1
      %s42 = scalar_select %p39, %s40, %s41
      %p45 = pneg %p39
      %p46 = scmp.eq.s32.totalorder %s9, 1
      %p47 = por %p45, %p46
      %p48 = scmp.ne.s32.totalorder %s40, %s43
      %p49 = scmp.eq.s32.totalorder %s9, 0
      %p50 = por %p48, %p49
      %p51 = scmp.ne.s32.totalorder %s40, %s43
      %p52 = scmp.eq.s32.totalorder %s14, 1
      %p53 = por %p51, %p52
      %p54 = scmp.ne.s32.totalorder %s43, %s44
      %p55 = scmp.eq.s32.totalorder %s14, 0
      %p56 = por %p54, %p55
      %p57 = scmp.ne.s32.totalorder %s43, %s44
      %p58 = scmp.eq.s32.totalorder %s15, 1
      %p59 = por %p57, %p58
      %p61 = scmp.ne.s32.totalorder %s44, %s60
      %p62 = scmp.eq.s32.totalorder %s15, 0
      %p63 = por %p61, %p62
      %s65 = sadd.s32 %s64, 1
      %p68 = scmp.eq.s32.totalorder %s9, 1
      %p69 = scmp.ne.s32.totalorder %s64, %s66
      %p70 = scmp.eq.s32.totalorder %s9, 0
      %p71 = por %p69, %p70
      %p72 = scmp.ne.s32.totalorder %s64, %s66
      %p73 = scmp.eq.s32.totalorder %s14, 1
      %p74 = por %p72, %p73
      %p75 = scmp.ne.s32.totalorder %s66, %s67
      %p76 = scmp.eq.s32.totalorder %s14, 0
      %p77 = por %p75, %p76
      %p78 = scmp.ne.s32.totalorder %s66, %s67
      %p79 = scmp.eq.s32.totalorder %s15, 1
      %p80 = por %p78, %p79
      %p82 = scmp.ne.s32.totalorder %s67, %s81
      %p83 = scmp.eq.s32.totalorder %s15, 0
      %p84 = por %p82, %p83
      %s85 = ssub.s32 %s9, %s16
      %p86 = scmp.eq.s32.totalorder %s85, 0
      %s88 = sadd.s32 %s87, 1
      %s89 = scalar_select %p86, %s87, %s88
      %p92 = pneg %p86
      %p93 = scmp.eq.s32.totalorder %s9, 1
      %p94 = por %p92, %p93
      %p95 = scmp.ne.s32.totalorder %s87, %s90
      %p96 = scmp.eq.s32.totalorder %s9, 0
      %p97 = por %p95, %p96
      %p98 = scmp.ne.s32.totalorder %s87, %s90
      %p99 = scmp.eq.s32.totalorder %s14, 1
      %p100 = por %p98, %p99
      %p101 = scmp.ne.s32.totalorder %s90, %s91
      %p102 = scmp.eq.s32.totalorder %s14, 0
      %p103 = por %p101, %p102
      %p104 = scmp.ne.s32.totalorder %s90, %s91
      %p105 = scmp.eq.s32.totalorder %s15, 1
      %p106 = por %p104, %p105
      %p108 = scmp.ne.s32.totalorder %s91, %s107
      %p109 = scmp.eq.s32.totalorder %s15, 0
      %p110 = por %p108, %p109
      %p111 = scmp.le.s32.totalorder 1, %s9
      %p112 = scmp.lt.s32.totalorder %s9, 3
      %p113 = pnand %p111, %p112
      %p114 = pneg %p113
      // Predicated region
      $region9: #{expander_forward.3} parent=5 // pred_check
        _
      $region10: #{expander_forward.3} parent=5 // pred_check_branch
        %116 = sbr.rel (%p113) target = $region12
      $region11: #{expander_forward.3} parent=5 // pred_region
        %s117 = ssub.s32 %s9, 1
        // Predicated region
        $region13: #{expander_forward.3} parent=11 // pred_check
          %p118 = pneg %p30
        $region14: #{expander_forward.3} parent=11 // pred_check_branch
          %120 = sbr.rel (%p118) target = $region16
        $region15: #{expander_forward.3} parent=11 // pred_region
          _
        $region16: #{expander_forward.3} parent=11 // pred_fallthru
          _
        // Predicated region
        $region17: #{expander_forward.3} parent=11 // pred_check
          %p121 = pneg %p77
        $region18: #{expander_forward.3} parent=11 // pred_check_branch
          %123 = sbr.rel (%p121) target = $region20
        $region19: #{expander_forward.3} parent=11 // pred_region
          _
        $region20: #{expander_forward.3} parent=11 // pred_fallthru
          _
      $region12: #{expander_forward.3} parent=5 // pred_fallthru
        _
      %p124 = scmp.lt.s32.totalorder %s9, 2
      // Predicated region
      $region21: #{expander_forward.3} parent=5 // pred_check
        %p125 = pneg %p124
      $region22: #{expander_forward.3} parent=5 // pred_check_branch
        %127 = sbr.rel (%p125) target = $region24
      $region23: #{expander_forward.3} parent=5 // pred_region
        // Predicated region
        $region25: #{expander_forward.3} parent=23 // pred_check
          %p128 = pneg %p50
        $region26: #{expander_forward.3} parent=23 // pred_check_branch
          %130 = sbr.rel (%p128) target = $region28
        $region27: #{expander_forward.3} parent=23 // pred_region
          %s131 = smul.u32 2, %s9
          %p132 = scmp.lt.s32.totalorder %s131, 3
          %s133 = scalar_select %p132, %s131, 3
          %s134 = smul.addr %s133, 8
          %s135 = scalar_lea.vmem %s1, %s134
          %s136 = smul.u32 2, %s9
        $region28: #{expander_forward.3} parent=23 // pred_fallthru
          _
      $region24: #{expander_forward.3} parent=5 // pred_fallthru
        _
      %p137 = scmp.le.s32.totalorder 1, %s9
      %p138 = scmp.lt.s32.totalorder %s9, 3
      %p139 = pnand %p137, %p138
      %p140 = pneg %p139
      // Predicated region
      $region29: #{expander_forward.3} parent=5 // pred_check
        _
      $region30: #{expander_forward.3} parent=5 // pred_check_branch
        %142 = sbr.rel (%p139) target = $region32
      $region31: #{expander_forward.3} parent=5 // pred_region
        %s143 = ssub.s32 %s9, 1
        %p144 = pneg %p30
        %p145 = pneg %p27
        %s146 = smul.u32 2, %s14
        %p147 = scmp.lt.s32.totalorder %s146, 3
        %s148 = scalar_select %p147, %s146, 3
        %s149 = smul.addr %s148, 8
        %s150 = scalar_lea.vmem %s1, %s149
        %p151 = pneg %p56
        %p152 = pneg %p53
        %p153 = pneg %p77
        %p154 = pneg %p74
        %p155 = pneg %p103
        %p156 = pneg %p100
        %s157 = sand.u32 %s90, 1
        %s158 = sand.u32 %s90, 1
        %s159 = smul.addr %s158, 32
        %s160 = scalar_lea.vmem [#allocation2], %s159
        %s161 = smul.u32 2, %s14
        %p162 = scmp.lt.s32.totalorder %s161, 3
        %s163 = scalar_select %p162, %s161, 3
        %s164 = smul.addr %s163, 8
        %s165 = scalar_lea.vmem %s1, %s164
        %s166 = smul.u32 2, %s14
        %s167 = smul.u32 2, %s14
        %v168 = vld [vmem:[%s0] sm:$0xff]
        %v169 = vld [vmem:[%s0 + $0x8] sm:$0xff]
        %v170 = vld [vmem:[%s165] sm:$0xff]
        %v171 = vld [vmem:[%s165 + $0x8] sm:$0xff]
        %v172 = vld [vmem:[%s2] sm:$0xff]
        %v173 = vld [vmem:[%s2 + $0x8] sm:$0xff]
        %175 = vset.pattern.permute.xlu0 0
        %176 = vperm.xlu0 %175, %v172
        %v177 = vpop.permute.xlu0 %176
        %180 = vset.pattern.permute.xlu0 0
        %181 = vperm.xlu0 %180, %v173
        %v182 = vpop.permute.xlu0 %181
        %vm184 = vcmask 64512
        %v186 = vsel %vm184, %v168, 0
        %v189 = vsel %vm184, %v169, 0
        %191 = vmatpush.msra.mxu0 0.0
        %192 = vmatpush.msra.mxu0 0.0
        %193 = vmatpush.msra.mxu0 0.0
        %194 = vmatpush.msra.mxu0 0.0
        %195 = vmatpush.msra.mxu0 0.0
        %196 = vmatpush.msra.mxu0 0.0
        %197 = vmatpush.msra.mxu0 0.0
        %198 = vmatpush.msra.mxu0 0.0
        %199 = vmatpush.msra.mxu0 0.0
        %200 = vmatpush.msra.mxu0 0.0
        %201 = vmatpush.msra.mxu0 0.0
        %202 = vmatpush.msra.mxu0 0.0
        %203 = vmatpush.msra.mxu0 0.0
        %204 = vmatpush.msra.mxu0 0.0
        %205 = vmatpush.msra.mxu0 0.0
        %206 = vmatpush.msra.mxu0 %v170
        %207 = vmatmul.f32.gmra.mxu0 %v186
        %v208 = vpop.f32.mrf.mxu0
        %v209 = vadd.f32 %v177, %v208
        %210 = vmatmul.f32.gmra.mxu0 %v189
        %v211 = vpop.f32.mrf.mxu0
        %v212 = vadd.f32 %v182, %v211
        %213 = vdwg.mxu0
        %214 = vmatpush.msra.mxu0 0.0
        %215 = vmatpush.msra.mxu0 0.0
        %216 = vmatpush.msra.mxu0 0.0
        %217 = vmatpush.msra.mxu0 0.0
        %218 = vmatpush.msra.mxu0 0.0
        %219 = vmatpush.msra.mxu0 0.0
        %220 = vmatpush.msra.mxu0 0.0
        %221 = vmatpush.msra.mxu0 0.0
        %222 = vmatpush.msra.mxu0 0.0
        %223 = vmatpush.msra.mxu0 0.0
        %224 = vmatpush.msra.mxu0 0.0
        %225 = vmatpush.msra.mxu0 0.0
        %226 = vmatpush.msra.mxu0 0.0
        %227 = vmatpush.msra.mxu0 0.0
        %228 = vmatpush.msra.mxu0 0.0
        %229 = vmatpush.msra.mxu0 %v171
        %230 = vmatmul.f32.gmra.mxu0 %v186
        %v231 = vpop.f32.mrf.mxu0
        %v232 = vadd.f32 %v177, %v231
        %233 = vmatmul.f32.gmra.mxu0 %v189
        %v234 = vpop.f32.mrf.mxu0
        %v235 = vadd.f32 %v182, %v234
        %236 = vdwg.mxu0
        %237 = vst [vmem:[%s160] sm:$0xff] %v209
        %238 = vst [vmem:[%s160 + $0x8] sm:$0xff] %v232
        %239 = vst [vmem:[%s160 + $0x10] sm:$0xff] %v212
        %240 = vst [vmem:[%s160 + $0x18] sm:$0xff] %v235
        %s241 = sand.u32 %s90, 1
        %s242 = sand.u32 %s90, 1
        %s243 = smul.addr %s242, 32
        %s244 = scalar_lea.vmem [#allocation2], %s243
        // Predicated region
        $region33: #{expander_forward.3} parent=31 // pred_check
          %p245 = pneg %p100
        $region34: #{expander_forward.3} parent=31 // pred_check_branch
          %247 = sbr.rel (%p245) target = $region36
        $region35: #{expander_forward.3} parent=31 // pred_region
          %s248 = smul.u32 2, %s14
          %s249 = smul.addr %s248, 8
          %s250 = scalar_lea.vmem %s3, %s249
          // Predicated region
          $region37: #{expander_forward.3} parent=35 // pred_check
            _
          $region38: #{expander_forward.3} parent=35 // pred_check_branch
            %252 = sbr.rel (0) target = $region40
          $region39: #{expander_forward.3} parent=35 // pred_region
            // Predicated region
            $region41: #{expander_forward.3} parent=39 // pred_check
              _
            $region42: #{expander_forward.3} parent=39 // pred_check_branch
              %254 = sbr.rel (0) target = $region44
            $region43: #{expander_forward.3} parent=39 // pred_region
              loop: start=0, step=1, limit=1
              $region45: #{expander_forward.3} parent=43 // loop_pre_header
                _
              $region46: #{expander_forward.3} parent=43 // loop_header
                %s256 = sphi 0, %s260
                %p257 = scmp.ge.s32.totalorder %s256, 1
                %s261 = sphi %s244, %s244
                %s262 = sphi %s250, %s250
              $region47: #{expander_forward.3} parent=43 // loop_header_branch
                %259 = sbr.rel (%p257) target = $region51
              $region48: #{expander_forward.3} parent=43 // loop_body
                %v263 = vld [vmem:[%s261] sm:$0xff]
                %264 = vst [vmem:[%s262] sm:$0xff] %v263
                %v265 = vld [vmem:[%s261 + $0x8] sm:$0xff]
                %266 = vst [vmem:[%s262 + $0x8] sm:$0xff] %v265
                %v267 = vld [vmem:[%s261 + $0x10] sm:$0xff]
                %268 = vst [vmem:[%s262 + $0x20] sm:$0xff] %v267
                %v269 = vld [vmem:[%s261 + $0x18] sm:$0xff]
                %270 = vst [vmem:[%s262 + $0x28] sm:$0xff] %v269
              $region49: #{expander_forward.3} parent=43 // loop_footer
                %s260 = sadd.s32 1, %s256
              $region50: #{expander_forward.3} parent=43 // loop_footer_branch
                %255 = sbr.rel target = $region46
              $region51: #{expander_forward.3} parent=43 // loop_exit
                _
            $region44: #{expander_forward.3} parent=39 // pred_fallthru
              _
            // Predicated region
            $region52: #{expander_forward.3} parent=39 // pred_check
              _
            $region53: #{expander_forward.3} parent=39 // pred_check_branch
              %272 = sbr.rel target = $region55
            $region54: #{expander_forward.3} parent=39 // pred_region
              _
            $region55: #{expander_forward.3} parent=39 // pred_fallthru
              _
          $region40: #{expander_forward.3} parent=35 // pred_fallthru
            _
          %273 = vnop
        $region36: #{expander_forward.3} parent=31 // pred_fallthru
          _
      $region32: #{expander_forward.3} parent=5 // pred_fallthru
        _
      %p274 = scmp.le.s32.totalorder 2, %s9
      // Predicated region
      $region56: #{expander_forward.3} parent=5 // pred_check
        %p275 = pneg %p274
      $region57: #{expander_forward.3} parent=5 // pred_check_branch
        %277 = sbr.rel (%p275) target = $region59
      $region58: #{expander_forward.3} parent=5 // pred_region
        %s278 = ssub.s32 %s9, 2
        // Predicated region
        $region60: #{expander_forward.3} parent=58 // pred_check
          %p279 = pneg %p106
        $region61: #{expander_forward.3} parent=58 // pred_check_branch
          %281 = sbr.rel (%p279) target = $region63
        $region62: #{expander_forward.3} parent=58 // pred_region
          %s282 = sand.u32 %s91, 1
          %s283 = sand.u32 %s91, 1
          %s284 = smul.addr %s283, 32
          %s285 = scalar_lea.vmem [#allocation2], %s284
        $region63: #{expander_forward.3} parent=58 // pred_fallthru
          _
      $region59: #{expander_forward.3} parent=5 // pred_fallthru
        _
    $region6: #{expander_forward.3} parent=1 // loop_footer
      %s13 = sadd.s32 1, %s9
    $region7: #{expander_forward.3} parent=1 // loop_footer_branch
      %8 = sbr.rel target = $region3
    $region8: #{expander_forward.3} parent=1 // loop_exit
      _

// kernel: expander_forward.4
$region0: #{expander_forward.4}
  #allocation0 [shape = 'u32[]', space=smem, size = 0x4, offset = 0x4, fixed_abs, tag = 'smem constant byte address 0x4 - core index']
  #allocation1 [shape = 'u32[72,128]{1,0:T(1,128)}', space=vmem, size = 0x9000, scoped, tag = 'internal scratch']
  #allocation2 [shape = 'f32[72,1280]{1,0:T(8,128)}', space=vmem, size = 0x5a000, scoped, tag = 'scratch operand']
  %s0 = inlined_call_operand.vmem [shape: f32[2,8,1408], index: 0, kind: input, shape index: {}]
  %s1 = inlined_call_operand.vmem [shape: f32[4,72], index: 1, kind: input, shape index: {}]
  %s2 = inlined_call_operand.vmem [shape: f32[4,1], index: 2, kind: input, shape index: {}]
  %s3 = inlined_call_operand.vmem [shape: f32[2,4,1280], index: 3, kind: output, shape index: {0}]
  %s4 = inlined_call_operand.vmem [shape: f32[2,4,1], index: 4, kind: output, shape index: {1}]
  %s5 = inlined_call_operand.vmem [shape: f32[2,4,1], index: 5, kind: output, shape index: {2}]
  %6 = xla_tuple %s3, %s4, %s5
  %s7 = sld [smem:[#allocation0]]
  $region61: #{expander_forward.4} parent=0
    _
  %s9 = ssub.s32 1, %s7
  %s10 = scalar_select 0, %s9, %s7
  loop: start=0, step=1, limit=4
  $region2: #{expander_forward.4} parent=0 // loop_pre_header
    _
  $region3: #{expander_forward.4} parent=0 // loop_header
    %s12 = sphi 0, %s16
    %p13 = scmp.ge.s32.totalorder %s12, 4
    %s22 = sphi 0, %s24
    %s25 = sphi 0, %s22
    %s26 = sphi 0, %s25
    %s42 = sphi 0, %s26
    %s46 = sphi 0, %s46
    %s48 = sphi 0, %s46
    %s49 = sphi 0, %s48
    %s63 = sphi 0, %s49
    %s67 = sphi 0, %s67
    %s69 = sphi 0, %s67
    %s70 = sphi 0, %s69
    %s84 = sphi 0, %s70
    %s90 = sphi 0, %s92
    %s93 = sphi 0, %s90
    %s94 = sphi 0, %s93
    %s110 = sphi 0, %s94
    %s116 = sphi 0, %s118
    %s119 = sphi 0, %s116
    %s120 = sphi 0, %s119
    %s136 = sphi 0, %s120
    %s142 = sphi 0, %s144
    %s145 = sphi 0, %s142
    %s146 = sphi 0, %s145
    %s162 = sphi 0, %s146
  $region4: #{expander_forward.4} parent=0 // loop_header_branch
    %15 = sbr.rel (%p13) target = $region8
  $region5: #{expander_forward.4} parent=0 // loop_body
    %s17 = ssub.s32 %s12, 1
    %s18 = ssub.s32 %s12, 2
    %s19 = sadd.s32 %s12, 1
    %s20 = ssub.s32 %s12, %s19
    %p21 = scmp.eq.s32.totalorder %s20, 0
    %s23 = sadd.s32 %s22, 1
    %s24 = scalar_select %p21, %s22, %s23
    %p27 = pneg %p21
    %p28 = scmp.eq.s32.totalorder %s12, 1
    %p29 = por %p27, %p28
    %p30 = scmp.ne.s32.totalorder %s22, %s25
    %p31 = scmp.eq.s32.totalorder %s12, 0
    %p32 = por %p30, %p31
    %p33 = scmp.ne.s32.totalorder %s22, %s25
    %p34 = scmp.eq.s32.totalorder %s17, 1
    %p35 = por %p33, %p34
    %p36 = scmp.ne.s32.totalorder %s25, %s26
    %p37 = scmp.eq.s32.totalorder %s17, 0
    %p38 = por %p36, %p37
    %p39 = scmp.ne.s32.totalorder %s25, %s26
    %p40 = scmp.eq.s32.totalorder %s18, 1
    %p41 = por %p39, %p40
    %p43 = scmp.ne.s32.totalorder %s26, %s42
    %p44 = scmp.eq.s32.totalorder %s18, 0
    %p45 = por %p43, %p44
    %s47 = sadd.s32 %s46, 1
    %p50 = scmp.eq.s32.totalorder %s12, 1
    %p51 = scmp.ne.s32.totalorder %s46, %s48
    %p52 = scmp.eq.s32.totalorder %s12, 0
    %p53 = por %p51, %p52
    %p54 = scmp.ne.s32.totalorder %s46, %s48
    %p55 = scmp.eq.s32.totalorder %s17, 1
    %p56 = por %p54, %p55
    %p57 = scmp.ne.s32.totalorder %s48, %s49
    %p58 = scmp.eq.s32.totalorder %s17, 0
    %p59 = por %p57, %p58
    %p60 = scmp.ne.s32.totalorder %s48, %s49
    %p61 = scmp.eq.s32.totalorder %s18, 1
    %p62 = por %p60, %p61
    %p64 = scmp.ne.s32.totalorder %s49, %s63
    %p65 = scmp.eq.s32.totalorder %s18, 0
    %p66 = por %p64, %p65
    %s68 = sadd.s32 %s67, 1
    %p71 = scmp.eq.s32.totalorder %s12, 1
    %p72 = scmp.ne.s32.totalorder %s67, %s69
    %p73 = scmp.eq.s32.totalorder %s12, 0
    %p74 = por %p72, %p73
    %p75 = scmp.ne.s32.totalorder %s67, %s69
    %p76 = scmp.eq.s32.totalorder %s17, 1
    %p77 = por %p75, %p76
    %p78 = scmp.ne.s32.totalorder %s69, %s70
    %p79 = scmp.eq.s32.totalorder %s17, 0
    %p80 = por %p78, %p79
    %p81 = scmp.ne.s32.totalorder %s69, %s70
    %p82 = scmp.eq.s32.totalorder %s18, 1
    %p83 = por %p81, %p82
    %p85 = scmp.ne.s32.totalorder %s70, %s84
    %p86 = scmp.eq.s32.totalorder %s18, 0
    %p87 = por %p85, %p86
    %s88 = ssub.s32 %s12, %s19
    %p89 = scmp.eq.s32.totalorder %s88, 0
    %s91 = sadd.s32 %s90, 1
    %s92 = scalar_select %p89, %s90, %s91
    %p95 = pneg %p89
    %p96 = scmp.eq.s32.totalorder %s12, 1
    %p97 = por %p95, %p96
    %p98 = scmp.ne.s32.totalorder %s90, %s93
    %p99 = scmp.eq.s32.totalorder %s12, 0
    %p100 = por %p98, %p99
    %p101 = scmp.ne.s32.totalorder %s90, %s93
    %p102 = scmp.eq.s32.totalorder %s17, 1
    %p103 = por %p101, %p102
    %p104 = scmp.ne.s32.totalorder %s93, %s94
    %p105 = scmp.eq.s32.totalorder %s17, 0
    %p106 = por %p104, %p105
    %p107 = scmp.ne.s32.totalorder %s93, %s94
    %p108 = scmp.eq.s32.totalorder %s18, 1
    %p109 = por %p107, %p108
    %p111 = scmp.ne.s32.totalorder %s94, %s110
    %p112 = scmp.eq.s32.totalorder %s18, 0
    %p113 = por %p111, %p112
    %s114 = ssub.s32 %s12, %s19
    %p115 = scmp.eq.s32.totalorder %s114, 0
    %s117 = sadd.s32 %s116, 1
    %s118 = scalar_select %p115, %s116, %s117
    %p121 = pneg %p115
    %p122 = scmp.eq.s32.totalorder %s12, 1
    %p123 = por %p121, %p122
    %p124 = scmp.ne.s32.totalorder %s116, %s119
    %p125 = scmp.eq.s32.totalorder %s12, 0
    %p126 = por %p124, %p125
    %p127 = scmp.ne.s32.totalorder %s116, %s119
    %p128 = scmp.eq.s32.totalorder %s17, 1
    %p129 = por %p127, %p128
    %p130 = scmp.ne.s32.totalorder %s119, %s120
    %p131 = scmp.eq.s32.totalorder %s17, 0
    %p132 = por %p130, %p131
    %p133 = scmp.ne.s32.totalorder %s119, %s120
    %p134 = scmp.eq.s32.totalorder %s18, 1
    %p135 = por %p133, %p134
    %p137 = scmp.ne.s32.totalorder %s120, %s136
    %p138 = scmp.eq.s32.totalorder %s18, 0
    %p139 = por %p137, %p138
    %s140 = ssub.s32 %s12, %s19
    %p141 = scmp.eq.s32.totalorder %s140, 0
    %s143 = sadd.s32 %s142, 1
    %s144 = scalar_select %p141, %s142, %s143
    %p147 = pneg %p141
    %p148 = scmp.eq.s32.totalorder %s12, 1
    %p149 = por %p147, %p148
    %p150 = scmp.ne.s32.totalorder %s142, %s145
    %p151 = scmp.eq.s32.totalorder %s12, 0
    %p152 = por %p150, %p151
    %p153 = scmp.ne.s32.totalorder %s142, %s145
    %p154 = scmp.eq.s32.totalorder %s17, 1
    %p155 = por %p153, %p154
    %p156 = scmp.ne.s32.totalorder %s145, %s146
    %p157 = scmp.eq.s32.totalorder %s17, 0
    %p158 = por %p156, %p157
    %p159 = scmp.ne.s32.totalorder %s145, %s146
    %p160 = scmp.eq.s32.totalorder %s18, 1
    %p161 = por %p159, %p160
    %p163 = scmp.ne.s32.totalorder %s146, %s162
    %p164 = scmp.eq.s32.totalorder %s18, 0
    %p165 = por %p163, %p164
    %p166 = scmp.le.s32.totalorder 1, %s12
    %p167 = scmp.lt.s32.totalorder %s12, 3
    %p168 = pnand %p166, %p167
    %p169 = pneg %p168
    // Predicated region
    $region9: #{expander_forward.4} parent=5 // pred_check
      _
    $region10: #{expander_forward.4} parent=5 // pred_check_branch
      %171 = sbr.rel (%p168) target = $region12
    $region11: #{expander_forward.4} parent=5 // pred_region
      %s172 = ssub.s32 %s12, 1
      // Predicated region
      $region13: #{expander_forward.4} parent=11 // pred_check
        %p173 = pneg %p59
      $region14: #{expander_forward.4} parent=11 // pred_check_branch
        %175 = sbr.rel (%p173) target = $region16
      $region15: #{expander_forward.4} parent=11 // pred_region
        _
      $region16: #{expander_forward.4} parent=11 // pred_fallthru
        _
      // Predicated region
      $region17: #{expander_forward.4} parent=11 // pred_check
        %p176 = pneg %p80
      $region18: #{expander_forward.4} parent=11 // pred_check_branch
        %178 = sbr.rel (%p176) target = $region20
      $region19: #{expander_forward.4} parent=11 // pred_region
        _
      $region20: #{expander_forward.4} parent=11 // pred_fallthru
        _
    $region12: #{expander_forward.4} parent=5 // pred_fallthru
      _
    %p179 = scmp.lt.s32.totalorder %s12, 2
    // Predicated region
    $region21: #{expander_forward.4} parent=5 // pred_check
      %p180 = pneg %p179
    $region22: #{expander_forward.4} parent=5 // pred_check_branch
      %182 = sbr.rel (%p180) target = $region24
    $region23: #{expander_forward.4} parent=5 // pred_region
      // Predicated region
      $region25: #{expander_forward.4} parent=23 // pred_check
        %p183 = pneg %p32
      $region26: #{expander_forward.4} parent=23 // pred_check_branch
        %185 = sbr.rel (%p183) target = $region28
      $region27: #{expander_forward.4} parent=23 // pred_region
        %p186 = scmp.lt.s32.totalorder %s12, 1
        %s187 = scalar_select %p186, %s12, 1
        %s188 = smul.addr %s187, 11
        %s189 = smul.addr %s188, 8
        %s190 = scalar_lea.vmem %s0, %s189
      $region28: #{expander_forward.4} parent=23 // pred_fallthru
        _
    $region24: #{expander_forward.4} parent=5 // pred_fallthru
      _
    %p191 = scmp.le.s32.totalorder 1, %s12
    %p192 = scmp.lt.s32.totalorder %s12, 3
    %p193 = pnand %p191, %p192
    %p194 = pneg %p193
    // Predicated region
    $region29: #{expander_forward.4} parent=5 // pred_check
      _
    $region30: #{expander_forward.4} parent=5 // pred_check_branch
      %196 = sbr.rel (%p193) target = $region32
    $region31: #{expander_forward.4} parent=5 // pred_region
      %s197 = ssub.s32 %s12, 1
      %p198 = scmp.lt.s32.totalorder %s17, 1
      %s199 = scalar_select %p198, %s17, 1
      %s200 = smul.addr %s199, 11
      %s201 = smul.addr %s200, 8
      %s202 = scalar_lea.vmem %s0, %s201
      %p203 = pneg %p38
      %p204 = pneg %p35
      %p205 = pneg %p59
      %p206 = pneg %p56
      %p207 = pneg %p80
      %p208 = pneg %p77
      %p209 = pneg %p106
      %p210 = pneg %p103
      %p211 = scmp.lt.s32.totalorder %s17, 1
      %s212 = scalar_select %p211, %s17, 1
      %s213 = smul.addr %s212, 10
      %s214 = smul.addr %s213, 4
      %s215 = scalar_lea.vmem %s3, %s214
      %p216 = pneg %p132
      %p217 = pneg %p129
      %p218 = scmp.lt.s32.totalorder %s17, 1
      %s219 = scalar_select %p218, %s17, 1
      %s220 = smul.addr %s219, 4
      %s221 = scalar_lea.vmem %s4, %s220
      %p222 = pneg %p158
      %p223 = pneg %p155
      %p224 = scmp.lt.s32.totalorder %s17, 1
      %s225 = scalar_select %p224, %s17, 1
      %s226 = smul.addr %s225, 4
      %s227 = scalar_lea.vmem %s5, %s226
      %p228 = scmp.lt.s32.totalorder %s17, 1
      %s229 = scalar_select %p228, %s17, 1
      %s230 = smul.addr %s229, 11
      %s231 = smul.addr %s230, 8
      %s232 = scalar_lea.vmem %s0, %s231
      %p233 = scmp.lt.s32.totalorder %s17, 1
      %s234 = scalar_select %p233, %s17, 1
      %s235 = smul.addr %s234, 10
      %s236 = smul.addr %s235, 4
      %s237 = scalar_lea.vmem %s3, %s236
      %p238 = scmp.lt.s32.totalorder %s17, 1
      %s239 = scalar_select %p238, %s17, 1
      %s240 = smul.addr %s239, 4
      %s241 = scalar_lea.vmem %s4, %s240
      %p242 = scmp.lt.s32.totalorder %s17, 1
      %s243 = scalar_select %p242, %s17, 1
      %s244 = smul.addr %s243, 4
      %s245 = scalar_lea.vmem %s5, %s244
      %v246 = vld [vmem:[%s232] sm:$0xff]
      %v247 = vld [vmem:[%s232 + $0x8] sm:$0xff]
      %v248 = vld [vmem:[%s232 + $0x10] sm:$0xff]
      %v249 = vld [vmem:[%s232 + $0x18] sm:$0xff]
      %v250 = vld [vmem:[%s232 + $0x20] sm:$0xff]
      %v251 = vld [vmem:[%s232 + $0x28] sm:$0xff]
      %v252 = vld [vmem:[%s232 + $0x30] sm:$0xff]
      %v253 = vld [vmem:[%s232 + $0x38] sm:$0xff]
      %v254 = vld [vmem:[%s232 + $0x40] sm:$0xff]
      %v255 = vld [vmem:[%s232 + $0x48] sm:$0xff]
      %256 = vst [vmem:[#allocation2] sm:$0xff] %v246
      %257 = vst [vmem:[#allocation2 + $0x8] sm:$0xff] %v247
      %258 = vst [vmem:[#allocation2 + $0x10] sm:$0xff] %v248
      %259 = vst [vmem:[#allocation2 + $0x18] sm:$0xff] %v249
      %260 = vst [vmem:[#allocation2 + $0x20] sm:$0xff] %v250
      %261 = vst [vmem:[#allocation2 + $0x28] sm:$0xff] %v251
      %262 = vst [vmem:[#allocation2 + $0x30] sm:$0xff] %v252
      %263 = vst [vmem:[#allocation2 + $0x38] sm:$0xff] %v253
      %264 = vst [vmem:[#allocation2 + $0x40] sm:$0xff] %v254
      %265 = vst [vmem:[#allocation2 + $0x48] sm:$0xff] %v255
      %v266 = vld [vmem:[%s232] sm:$0xff]
      %v267 = vld [vmem:[%s232 + $0x8] sm:$0xff]
      %v268 = vld [vmem:[%s232 + $0x10] sm:$0xff]
      %v269 = vld [vmem:[%s232 + $0x18] sm:$0xff]
      %v270 = vld [vmem:[%s232 + $0x20] sm:$0xff]
      %v271 = vld [vmem:[%s232 + $0x28] sm:$0xff]
      %v272 = vld [vmem:[%s232 + $0x30] sm:$0xff]
      %v273 = vld [vmem:[%s232 + $0x38] sm:$0xff]
      %v274 = vld [vmem:[%s232 + $0x40] sm:$0xff]
      %v275 = vld [vmem:[%s232 + $0x48] sm:$0xff]
      %v276 = vld [vmem:[%s232 + $0x50] sm:$0xff]
      %288 = vrot.lane.b32.xlu0 %v266, 127
      %v289 = vpop.permute.xlu0 %288
      %290 = vrot.lane.b32.xlu0 %v267, 127
      %v291 = vpop.permute.xlu0 %290
      %292 = vrot.lane.b32.xlu0 %v268, 127
      %v293 = vpop.permute.xlu0 %292
      %294 = vrot.lane.b32.xlu0 %v269, 127
      %v295 = vpop.permute.xlu0 %294
      %296 = vrot.lane.b32.xlu0 %v270, 127
      %v297 = vpop.permute.xlu0 %296
      %298 = vrot.lane.b32.xlu0 %v271, 127
      %v299 = vpop.permute.xlu0 %298
      %300 = vrot.lane.b32.xlu0 %v272, 127
      %v301 = vpop.permute.xlu0 %300
      %302 = vrot.lane.b32.xlu0 %v273, 127
      %v303 = vpop.permute.xlu0 %302
      %304 = vrot.lane.b32.xlu0 %v274, 127
      %v305 = vpop.permute.xlu0 %304
      %306 = vrot.lane.b32.xlu0 %v275, 127
      %v307 = vpop.permute.xlu0 %306
      %308 = vrot.lane.b32.xlu0 %v276, 127
      %v309 = vpop.permute.xlu0 %308
      %vm310 = vcmask 1039360
      %v311 = vsel %vm310, %v289, %v291
      %v312 = vsel %vm310, %v291, %v293
      %v313 = vsel %vm310, %v293, %v295
      %v314 = vsel %vm310, %v295, %v297
      %v315 = vsel %vm310, %v297, %v299
      %v316 = vsel %vm310, %v299, %v301
      %v317 = vsel %vm310, %v301, %v303
      %v318 = vsel %vm310, %v303, %v305
      %v319 = vsel %vm310, %v305, %v307
      %v320 = vsel %vm310, %v307, %v309
      %331 = vst [vmem:[#allocation2 + $0x50] sm:$0xff] %v311
      %332 = vst [vmem:[#allocation2 + $0x58] sm:$0xff] %v312
      %333 = vst [vmem:[#allocation2 + $0x60] sm:$0xff] %v313
      %334 = vst [vmem:[#allocation2 + $0x68] sm:$0xff] %v314
      %335 = vst [vmem:[#allocation2 + $0x70] sm:$0xff] %v315
      %336 = vst [vmem:[#allocation2 + $0x78] sm:$0xff] %v316
      %337 = vst [vmem:[#allocation2 + $0x80] sm:$0xff] %v317
      %338 = vst [vmem:[#allocation2 + $0x88] sm:$0xff] %v318
      %339 = vst [vmem:[#allocation2 + $0x90] sm:$0xff] %v319
      %340 = vst [vmem:[#allocation2 + $0x98] sm:$0xff] %v320
      %v341 = vld [vmem:[%s232] sm:$0xff]
      %v342 = vld [vmem:[%s232 + $0x8] sm:$0xff]
      %v343 = vld [vmem:[%s232 + $0x10] sm:$0xff]
      %v344 = vld [vmem:[%s232 + $0x18] sm:$0xff]
      %v345 = vld [vmem:[%s232 + $0x20] sm:$0xff]
      %v346 = vld [vmem:[%s232 + $0x28] sm:$0xff]
      %v347 = vld [vmem:[%s232 + $0x30] sm:$0xff]
      %v348 = vld [vmem:[%s232 + $0x38] sm:$0xff]
      %v349 = vld [vmem:[%s232 + $0x40] sm:$0xff]
      %v350 = vld [vmem:[%s232 + $0x48] sm:$0xff]
      %v351 = vld [vmem:[%s232 + $0x50] sm:$0xff]
      %363 = vrot.lane.b32.xlu0 %v341, 126
      %v364 = vpop.permute.xlu0 %363
      %365 = vrot.lane.b32.xlu0 %v342, 126
      %v366 = vpop.permute.xlu0 %365
      %367 = vrot.lane.b32.xlu0 %v343, 126
      %v368 = vpop.permute.xlu0 %367
      %369 = vrot.lane.b32.xlu0 %v344, 126
      %v370 = vpop.permute.xlu0 %369
      %371 = vrot.lane.b32.xlu0 %v345, 126
      %v372 = vpop.permute.xlu0 %371
      %373 = vrot.lane.b32.xlu0 %v346, 126
      %v374 = vpop.permute.xlu0 %373
      %375 = vrot.lane.b32.xlu0 %v347, 126
      %v376 = vpop.permute.xlu0 %375
      %377 = vrot.lane.b32.xlu0 %v348, 126
      %v378 = vpop.permute.xlu0 %377
      %379 = vrot.lane.b32.xlu0 %v349, 126
      %v380 = vpop.permute.xlu0 %379
      %381 = vrot.lane.b32.xlu0 %v350, 126
      %v382 = vpop.permute.xlu0 %381
      %383 = vrot.lane.b32.xlu0 %v351, 126
      %v384 = vpop.permute.xlu0 %383
      %vm385 = vcmask 1031168
      %v386 = vsel %vm385, %v364, %v366
      %v387 = vsel %vm385, %v366, %v368
      %v388 = vsel %vm385, %v368, %v370
      %v389 = vsel %vm385, %v370, %v372
      %v390 = vsel %vm385, %v372, %v374
      %v391 = vsel %vm385, %v374, %v376
      %v392 = vsel %vm385, %v376, %v378
      %v393 = vsel %vm385, %v378, %v380
      %v394 = vsel %vm385, %v380, %v382
      %v395 = vsel %vm385, %v382, %v384
      %406 = vst [vmem:[#allocation2 + $0xa0] sm:$0xff] %v386
      %407 = vst [vmem:[#allocation2 + $0xa8] sm:$0xff] %v387
      %408 = vst [vmem:[#allocation2 + $0xb0] sm:$0xff] %v388
      %409 = vst [vmem:[#allocation2 + $0xb8] sm:$0xff] %v389
      %410 = vst [vmem:[#allocation2 + $0xc0] sm:$0xff] %v390
      %411 = vst [vmem:[#allocation2 + $0xc8] sm:$0xff] %v391
      %412 = vst [vmem:[#allocation2 + $0xd0] sm:$0xff] %v392
      %413 = vst [vmem:[#allocation2 + $0xd8] sm:$0xff] %v393
      %414 = vst [vmem:[#allocation2 + $0xe0] sm:$0xff] %v394
      %415 = vst [vmem:[#allocation2 + $0xe8] sm:$0xff] %v395
      %v416 = vld [vmem:[%s232] sm:$0xff]
      %v417 = vld [vmem:[%s232 + $0x8] sm:$0xff]
      %v418 = vld [vmem:[%s232 + $0x10] sm:$0xff]
      %v419 = vld [vmem:[%s232 + $0x18] sm:$0xff]
      %v420 = vld [vmem:[%s232 + $0x20] sm:$0xff]
      %v421 = vld [vmem:[%s232 + $0x28] sm:$0xff]
      %v422 = vld [vmem:[%s232 + $0x30] sm:$0xff]
      %v423 = vld [vmem:[%s232 + $0x38] sm:$0xff]
      %v424 = vld [vmem:[%s232 + $0x40] sm:$0xff]
      %v425 = vld [vmem:[%s232 + $0x48] sm:$0xff]
      %v426 = vld [vmem:[%s232 + $0x50] sm:$0xff]
      %438 = vrot.lane.b32.xlu0 %v416, 94
      %v439 = vpop.permute.xlu0 %438
      %440 = vrot.lane.b32.xlu0 %v417, 94
      %v441 = vpop.permute.xlu0 %440
      %442 = vrot.lane.b32.xlu0 %v418, 94
      %v443 = vpop.permute.xlu0 %442
      %444 = vrot.lane.b32.xlu0 %v419, 94
      %v445 = vpop.permute.xlu0 %444
      %446 = vrot.lane.b32.xlu0 %v420, 94
      %v447 = vpop.permute.xlu0 %446
      %448 = vrot.lane.b32.xlu0 %v421, 94
      %v449 = vpop.permute.xlu0 %448
      %450 = vrot.lane.b32.xlu0 %v422, 94
      %v451 = vpop.permute.xlu0 %450
      %452 = vrot.lane.b32.xlu0 %v423, 94
      %v453 = vpop.permute.xlu0 %452
      %454 = vrot.lane.b32.xlu0 %v424, 94
      %v455 = vpop.permute.xlu0 %454
      %456 = vrot.lane.b32.xlu0 %v425, 94
      %v457 = vpop.permute.xlu0 %456
      %458 = vrot.lane.b32.xlu0 %v426, 94
      %v459 = vpop.permute.xlu0 %458
      %vm460 = vcmask 769024
      %v461 = vsel %vm460, %v439, %v441
      %v462 = vsel %vm460, %v441, %v443
      %v463 = vsel %vm460, %v443, %v445
      %v464 = vsel %vm460, %v445, %v447
      %v465 = vsel %vm460, %v447, %v449
      %v466 = vsel %vm460, %v449, %v451
      %v467 = vsel %vm460, %v451, %v453
      %v468 = vsel %vm460, %v453, %v455
      %v469 = vsel %vm460, %v455, %v457
      %v470 = vsel %vm460, %v457, %v459
      %481 = vst [vmem:[#allocation2 + $0xf0] sm:$0xff] %v461
      %482 = vst [vmem:[#allocation2 + $0xf8] sm:$0xff] %v462
      %483 = vst [vmem:[#allocation2 + $0x100] sm:$0xff] %v463
      %484 = vst [vmem:[#allocation2 + $0x108] sm:$0xff] %v464
      %485 = vst [vmem:[#allocation2 + $0x110] sm:$0xff] %v465
      %486 = vst [vmem:[#allocation2 + $0x118] sm:$0xff] %v466
      %487 = vst [vmem:[#allocation2 + $0x120] sm:$0xff] %v467
      %488 = vst [vmem:[#allocation2 + $0x128] sm:$0xff] %v468
      %489 = vst [vmem:[#allocation2 + $0x130] sm:$0xff] %v469
      %490 = vst [vmem:[#allocation2 + $0x138] sm:$0xff] %v470
      %v491 = vld [vmem:[%s232] sm:$0xff]
      %v492 = vld [vmem:[%s232 + $0x8] sm:$0xff]
      %v493 = vld [vmem:[%s232 + $0x10] sm:$0xff]
      %v494 = vld [vmem:[%s232 + $0x18] sm:$0xff]
      %v495 = vld [vmem:[%s232 + $0x20] sm:$0xff]
      %v496 = vld [vmem:[%s232 + $0x28] sm:$0xff]
      %v497 = vld [vmem:[%s232 + $0x30] sm:$0xff]
      %v498 = vld [vmem:[%s232 + $0x38] sm:$0xff]
      %v499 = vld [vmem:[%s232 + $0x40] sm:$0xff]
      %v500 = vld [vmem:[%s232 + $0x48] sm:$0xff]
      %v501 = vld [vmem:[%s232 + $0x50] sm:$0xff]
      %513 = vrot.lane.b32.xlu0 %v491, 93
      %v514 = vpop.permute.xlu0 %513
      %515 = vrot.lane.b32.xlu0 %v492, 93
      %v516 = vpop.permute.xlu0 %515
      %517 = vrot.lane.b32.xlu0 %v493, 93
      %v518 = vpop.permute.xlu0 %517
      %519 = vrot.lane.b32.xlu0 %v494, 93
      %v520 = vpop.permute.xlu0 %519
      %521 = vrot.lane.b32.xlu0 %v495, 93
      %v522 = vpop.permute.xlu0 %521
      %523 = vrot.lane.b32.xlu0 %v496, 93
      %v524 = vpop.permute.xlu0 %523
      %525 = vrot.lane.b32.xlu0 %v497, 93
      %v526 = vpop.permute.xlu0 %525
      %527 = vrot.lane.b32.xlu0 %v498, 93
      %v528 = vpop.permute.xlu0 %527
      %529 = vrot.lane.b32.xlu0 %v499, 93
      %v530 = vpop.permute.xlu0 %529
      %531 = vrot.lane.b32.xlu0 %v500, 93
      %v532 = vpop.permute.xlu0 %531
      %533 = vrot.lane.b32.xlu0 %v501, 93
      %v534 = vpop.permute.xlu0 %533
      %vm535 = vcmask 760832
      %v536 = vsel %vm535, %v514, %v516
      %v537 = vsel %vm535, %v516, %v518
      %v538 = vsel %vm535, %v518, %v520
      %v539 = vsel %vm535, %v520, %v522
      %v540 = vsel %vm535, %v522, %v524
      %v541 = vsel %vm535, %v524, %v526
      %v542 = vsel %vm535, %v526, %v528
      %v543 = vsel %vm535, %v528, %v530
      %v544 = vsel %vm535, %v530, %v532
      %v545 = vsel %vm535, %v532, %v534
      %556 = vst [vmem:[#allocation2 + $0x140] sm:$0xff] %v536
      %557 = vst [vmem:[#allocation2 + $0x148] sm:$0xff] %v537
      %558 = vst [vmem:[#allocation2 + $0x150] sm:$0xff] %v538
      %559 = vst [vmem:[#allocation2 + $0x158] sm:$0xff] %v539
      %560 = vst [vmem:[#allocation2 + $0x160] sm:$0xff] %v540
      %561 = vst [vmem:[#allocation2 + $0x168] sm:$0xff] %v541
      %562 = vst [vmem:[#allocation2 + $0x170] sm:$0xff] %v542
      %563 = vst [vmem:[#allocation2 + $0x178] sm:$0xff] %v543
      %564 = vst [vmem:[#allocation2 + $0x180] sm:$0xff] %v544
      %565 = vst [vmem:[#allocation2 + $0x188] sm:$0xff] %v545
      %v566 = vld [vmem:[%s232] sm:$0xff]
      %v567 = vld [vmem:[%s232 + $0x8] sm:$0xff]
      %v568 = vld [vmem:[%s232 + $0x10] sm:$0xff]
      %v569 = vld [vmem:[%s232 + $0x18] sm:$0xff]
      %v570 = vld [vmem:[%s232 + $0x20] sm:$0xff]
      %v571 = vld [vmem:[%s232 + $0x28] sm:$0xff]
      %v572 = vld [vmem:[%s232 + $0x30] sm:$0xff]
      %v573 = vld [vmem:[%s232 + $0x38] sm:$0xff]
      %v574 = vld [vmem:[%s232 + $0x40] sm:$0xff]
      %v575 = vld [vmem:[%s232 + $0x48] sm:$0xff]
      %v576 = vld [vmem:[%s232 + $0x50] sm:$0xff]
      %588 = vrot.lane.b32.xlu0 %v566, 92
      %v589 = vpop.permute.xlu0 %588
      %590 = vrot.lane.b32.xlu0 %v567, 92
      %v591 = vpop.permute.xlu0 %590
      %592 = vrot.lane.b32.xlu0 %v568, 92
      %v593 = vpop.permute.xlu0 %592
      %594 = vrot.lane.b32.xlu0 %v569, 92
      %v595 = vpop.permute.xlu0 %594
      %596 = vrot.lane.b32.xlu0 %v570, 92
      %v597 = vpop.permute.xlu0 %596
      %598 = vrot.lane.b32.xlu0 %v571, 92
      %v599 = vpop.permute.xlu0 %598
      %600 = vrot.lane.b32.xlu0 %v572, 92
      %v601 = vpop.permute.xlu0 %600
      %602 = vrot.lane.b32.xlu0 %v573, 92
      %v603 = vpop.permute.xlu0 %602
      %604 = vrot.lane.b32.xlu0 %v574, 92
      %v605 = vpop.permute.xlu0 %604
      %606 = vrot.lane.b32.xlu0 %v575, 92
      %v607 = vpop.permute.xlu0 %606
      %608 = vrot.lane.b32.xlu0 %v576, 92
      %v609 = vpop.permute.xlu0 %608
      %vm610 = vcmask 752640
      %v611 = vsel %vm610, %v589, %v591
      %v612 = vsel %vm610, %v591, %v593
      %v613 = vsel %vm610, %v593, %v595
      %v614 = vsel %vm610, %v595, %v597
      %v615 = vsel %vm610, %v597, %v599
      %v616 = vsel %vm610, %v599, %v601
      %v617 = vsel %vm610, %v601, %v603
      %v618 = vsel %vm610, %v603, %v605
      %v619 = vsel %vm610, %v605, %v607
      %v620 = vsel %vm610, %v607, %v609
      %631 = vst [vmem:[#allocation2 + $0x190] sm:$0xff] %v611
      %632 = vst [vmem:[#allocation2 + $0x198] sm:$0xff] %v612
      %633 = vst [vmem:[#allocation2 + $0x1a0] sm:$0xff] %v613
      %634 = vst [vmem:[#allocation2 + $0x1a8] sm:$0xff] %v614
      %635 = vst [vmem:[#allocation2 + $0x1b0] sm:$0xff] %v615
      %636 = vst [vmem:[#allocation2 + $0x1b8] sm:$0xff] %v616
      %637 = vst [vmem:[#allocation2 + $0x1c0] sm:$0xff] %v617
      %638 = vst [vmem:[#allocation2 + $0x1c8] sm:$0xff] %v618
      %639 = vst [vmem:[#allocation2 + $0x1d0] sm:$0xff] %v619
      %640 = vst [vmem:[#allocation2 + $0x1d8] sm:$0xff] %v620
      %v641 = vld [vmem:[%s232] sm:$0xff]
      %v642 = vld [vmem:[%s232 + $0x8] sm:$0xff]
      %v643 = vld [vmem:[%s232 + $0x10] sm:$0xff]
      %v644 = vld [vmem:[%s232 + $0x18] sm:$0xff]
      %v645 = vld [vmem:[%s232 + $0x20] sm:$0xff]
      %v646 = vld [vmem:[%s232 + $0x28] sm:$0xff]
      %v647 = vld [vmem:[%s232 + $0x30] sm:$0xff]
      %v648 = vld [vmem:[%s232 + $0x38] sm:$0xff]
      %v649 = vld [vmem:[%s232 + $0x40] sm:$0xff]
      %v650 = vld [vmem:[%s232 + $0x48] sm:$0xff]
      %v651 = vld [vmem:[%s232 + $0x50] sm:$0xff]
      %663 = vrot.lane.b32.xlu0 %v641, 60
      %v664 = vpop.permute.xlu0 %663
      %665 = vrot.lane.b32.xlu0 %v642, 60
      %v666 = vpop.permute.xlu0 %665
      %667 = vrot.lane.b32.xlu0 %v643, 60
      %v668 = vpop.permute.xlu0 %667
      %669 = vrot.lane.b32.xlu0 %v644, 60
      %v670 = vpop.permute.xlu0 %669
      %671 = vrot.lane.b32.xlu0 %v645, 60
      %v672 = vpop.permute.xlu0 %671
      %673 = vrot.lane.b32.xlu0 %v646, 60
      %v674 = vpop.permute.xlu0 %673
      %675 = vrot.lane.b32.xlu0 %v647, 60
      %v676 = vpop.permute.xlu0 %675
      %677 = vrot.lane.b32.xlu0 %v648, 60
      %v678 = vpop.permute.xlu0 %677
      %679 = vrot.lane.b32.xlu0 %v649, 60
      %v680 = vpop.permute.xlu0 %679
      %681 = vrot.lane.b32.xlu0 %v650, 60
      %v682 = vpop.permute.xlu0 %681
      %683 = vrot.lane.b32.xlu0 %v651, 60
      %v684 = vpop.permute.xlu0 %683
      %vm685 = vcmask 490496
      %v686 = vsel %vm685, %v664, %v666
      %v687 = vsel %vm685, %v666, %v668
      %v688 = vsel %vm685, %v668, %v670
      %v689 = vsel %vm685, %v670, %v672
      %v690 = vsel %vm685, %v672, %v674
      %v691 = vsel %vm685, %v674, %v676
      %v692 = vsel %vm685, %v676, %v678
      %v693 = vsel %vm685, %v678, %v680
      %v694 = vsel %vm685, %v680, %v682
      %v695 = vsel %vm685, %v682, %v684
      %706 = vst [vmem:[#allocation2 + $0x1e0] sm:$0xff] %v686
      %707 = vst [vmem:[#allocation2 + $0x1e8] sm:$0xff] %v687
      %708 = vst [vmem:[#allocation2 + $0x1f0] sm:$0xff] %v688
      %709 = vst [vmem:[#allocation2 + $0x1f8] sm:$0xff] %v689
      %710 = vst [vmem:[#allocation2 + $0x200] sm:$0xff] %v690
      %711 = vst [vmem:[#allocation2 + $0x208] sm:$0xff] %v691
      %712 = vst [vmem:[#allocation2 + $0x210] sm:$0xff] %v692
      %713 = vst [vmem:[#allocation2 + $0x218] sm:$0xff] %v693
      %714 = vst [vmem:[#allocation2 + $0x220] sm:$0xff] %v694
      %715 = vst [vmem:[#allocation2 + $0x228] sm:$0xff] %v695
      %v716 = vld [vmem:[%s232] sm:$0xff]
      %v717 = vld [vmem:[%s232 + $0x8] sm:$0xff]
      %v718 = vld [vmem:[%s232 + $0x10] sm:$0xff]
      %v719 = vld [vmem:[%s232 + $0x18] sm:$0xff]
      %v720 = vld [vmem:[%s232 + $0x20] sm:$0xff]
      %v721 = vld [vmem:[%s232 + $0x28] sm:$0xff]
      %v722 = vld [vmem:[%s232 + $0x30] sm:$0xff]
      %v723 = vld [vmem:[%s232 + $0x38] sm:$0xff]
      %v724 = vld [vmem:[%s232 + $0x40] sm:$0xff]
      %v725 = vld [vmem:[%s232 + $0x48] sm:$0xff]
      %v726 = vld [vmem:[%s232 + $0x50] sm:$0xff]
      %738 = vrot.lane.b32.xlu0 %v716, 59
      %v739 = vpop.permute.xlu0 %738
      %740 = vrot.lane.b32.xlu0 %v717, 59
      %v741 = vpop.permute.xlu0 %740
      %742 = vrot.lane.b32.xlu0 %v718, 59
      %v743 = vpop.permute.xlu0 %742
      %744 = vrot.lane.b32.xlu0 %v719, 59
      %v745 = vpop.permute.xlu0 %744
      %746 = vrot.lane.b32.xlu0 %v720, 59
      %v747 = vpop.permute.xlu0 %746
      %748 = vrot.lane.b32.xlu0 %v721, 59
      %v749 = vpop.permute.xlu0 %748
      %750 = vrot.lane.b32.xlu0 %v722, 59
      %v751 = vpop.permute.xlu0 %750
      %752 = vrot.lane.b32.xlu0 %v723, 59
      %v753 = vpop.permute.xlu0 %752
      %754 = vrot.lane.b32.xlu0 %v724, 59
      %v755 = vpop.permute.xlu0 %754
      %756 = vrot.lane.b32.xlu0 %v725, 59
      %v757 = vpop.permute.xlu0 %756
      %758 = vrot.lane.b32.xlu0 %v726, 59
      %v759 = vpop.permute.xlu0 %758
      %vm760 = vcmask 482304
      %v761 = vsel %vm760, %v739, %v741
      %v762 = vsel %vm760, %v741, %v743
      %v763 = vsel %vm760, %v743, %v745
      %v764 = vsel %vm760, %v745, %v747
      %v765 = vsel %vm760, %v747, %v749
      %v766 = vsel %vm760, %v749, %v751
      %v767 = vsel %vm760, %v751, %v753
      %v768 = vsel %vm760, %v753, %v755
      %v769 = vsel %vm760, %v755, %v757
      %v770 = vsel %vm760, %v757, %v759
      %781 = vst [vmem:[#allocation2 + $0x230] sm:$0xff] %v761
      %782 = vst [vmem:[#allocation2 + $0x238] sm:$0xff] %v762
      %783 = vst [vmem:[#allocation2 + $0x240] sm:$0xff] %v763
      %784 = vst [vmem:[#allocation2 + $0x248] sm:$0xff] %v764
      %785 = vst [vmem:[#allocation2 + $0x250] sm:$0xff] %v765
      %786 = vst [vmem:[#allocation2 + $0x258] sm:$0xff] %v766
      %787 = vst [vmem:[#allocation2 + $0x260] sm:$0xff] %v767
      %788 = vst [vmem:[#allocation2 + $0x268] sm:$0xff] %v768
      %789 = vst [vmem:[#allocation2 + $0x270] sm:$0xff] %v769
      %790 = vst [vmem:[#allocation2 + $0x278] sm:$0xff] %v770
      %v791 = vld [vmem:[%s232] sm:$0xff]
      %v792 = vld [vmem:[%s232 + $0x8] sm:$0xff]
      %v793 = vld [vmem:[%s232 + $0x10] sm:$0xff]
      %v794 = vld [vmem:[%s232 + $0x18] sm:$0xff]
      %v795 = vld [vmem:[%s232 + $0x20] sm:$0xff]
      %v796 = vld [vmem:[%s232 + $0x28] sm:$0xff]
      %v797 = vld [vmem:[%s232 + $0x30] sm:$0xff]
      %v798 = vld [vmem:[%s232 + $0x38] sm:$0xff]
      %v799 = vld [vmem:[%s232 + $0x40] sm:$0xff]
      %v800 = vld [vmem:[%s232 + $0x48] sm:$0xff]
      %v801 = vld [vmem:[%s232 + $0x50] sm:$0xff]
      %813 = vrot.lane.b32.xlu0 %v791, 58
      %v814 = vpop.permute.xlu0 %813
      %815 = vrot.lane.b32.xlu0 %v792, 58
      %v816 = vpop.permute.xlu0 %815
      %817 = vrot.lane.b32.xlu0 %v793, 58
      %v818 = vpop.permute.xlu0 %817
      %819 = vrot.lane.b32.xlu0 %v794, 58
      %v820 = vpop.permute.xlu0 %819
      %821 = vrot.lane.b32.xlu0 %v795, 58
      %v822 = vpop.permute.xlu0 %821
      %823 = vrot.lane.b32.xlu0 %v796, 58
      %v824 = vpop.permute.xlu0 %823
      %825 = vrot.lane.b32.xlu0 %v797, 58
      %v826 = vpop.permute.xlu0 %825
      %827 = vrot.lane.b32.xlu0 %v798, 58
      %v828 = vpop.permute.xlu0 %827
      %829 = vrot.lane.b32.xlu0 %v799, 58
      %v830 = vpop.permute.xlu0 %829
      %831 = vrot.lane.b32.xlu0 %v800, 58
      %v832 = vpop.permute.xlu0 %831
      %833 = vrot.lane.b32.xlu0 %v801, 58
      %v834 = vpop.permute.xlu0 %833
      %vm835 = vcmask 474112
      %v836 = vsel %vm835, %v814, %v816
      %v837 = vsel %vm835, %v816, %v818
      %v838 = vsel %vm835, %v818, %v820
      %v839 = vsel %vm835, %v820, %v822
      %v840 = vsel %vm835, %v822, %v824
      %v841 = vsel %vm835, %v824, %v826
      %v842 = vsel %vm835, %v826, %v828
      %v843 = vsel %vm835, %v828, %v830
      %v844 = vsel %vm835, %v830, %v832
      %v845 = vsel %vm835, %v832, %v834
      %856 = vst [vmem:[#allocation2 + $0x280] sm:$0xff] %v836
      %857 = vst [vmem:[#allocation2 + $0x288] sm:$0xff] %v837
      %858 = vst [vmem:[#allocation2 + $0x290] sm:$0xff] %v838
      %859 = vst [vmem:[#allocation2 + $0x298] sm:$0xff] %v839
      %860 = vst [vmem:[#allocation2 + $0x2a0] sm:$0xff] %v840
      %861 = vst [vmem:[#allocation2 + $0x2a8] sm:$0xff] %v841
      %862 = vst [vmem:[#allocation2 + $0x2b0] sm:$0xff] %v842
      %863 = vst [vmem:[#allocation2 + $0x2b8] sm:$0xff] %v843
      %864 = vst [vmem:[#allocation2 + $0x2c0] sm:$0xff] %v844
      %865 = vst [vmem:[#allocation2 + $0x2c8] sm:$0xff] %v845
      %v866 = vld [vmem:[%s1] sm:$0xf]
      %v867 = vld [vmem:[#allocation2] sm:$0xff]
      %v868 = vld [vmem:[#allocation2 + $0x8] sm:$0xff]
      %v869 = vld [vmem:[#allocation2 + $0x10] sm:$0xff]
      %v870 = vld [vmem:[#allocation2 + $0x18] sm:$0xff]
      %v871 = vld [vmem:[#allocation2 + $0x20] sm:$0xff]
      %v872 = vld [vmem:[#allocation2 + $0x28] sm:$0xff]
      %v873 = vld [vmem:[#allocation2 + $0x30] sm:$0xff]
      %v874 = vld [vmem:[#allocation2 + $0x38] sm:$0xff]
      %v875 = vld [vmem:[#allocation2 + $0x40] sm:$0xff]
      %v876 = vld [vmem:[#allocation2 + $0x48] sm:$0xff]
      %v877 = vld [vmem:[#allocation2 + $0x50] sm:$0xff]
      %v878 = vld [vmem:[#allocation2 + $0x58] sm:$0xff]
      %v879 = vld [vmem:[#allocation2 + $0x60] sm:$0xff]
      %v880 = vld [vmem:[#allocation2 + $0x68] sm:$0xff]
      %v881 = vld [vmem:[#allocation2 + $0x70] sm:$0xff]
      %v882 = vld [vmem:[#allocation2 + $0x78] sm:$0xff]
      %v883 = vld [vmem:[#allocation2 + $0x80] sm:$0xff]
      %v884 = vld [vmem:[#allocation2 + $0x88] sm:$0xff]
      %v885 = vld [vmem:[#allocation2 + $0x90] sm:$0xff]
      %v886 = vld [vmem:[#allocation2 + $0x98] sm:$0xff]
      %v887 = vld [vmem:[#allocation2 + $0xa0] sm:$0xff]
      %v888 = vld [vmem:[#allocation2 + $0xa8] sm:$0xff]
      %v889 = vld [vmem:[#allocation2 + $0xb0] sm:$0xff]
      %v890 = vld [vmem:[#allocation2 + $0xb8] sm:$0xff]
      %v891 = vld [vmem:[#allocation2 + $0xc0] sm:$0xff]
      %v892 = vld [vmem:[#allocation2 + $0xc8] sm:$0xff]
      %v893 = vld [vmem:[#allocation2 + $0xd0] sm:$0xff]
      %v894 = vld [vmem:[#allocation2 + $0xd8] sm:$0xff]
      %v895 = vld [vmem:[#allocation2 + $0xe0] sm:$0xff]
      %v896 = vld [vmem:[#allocation2 + $0xe8] sm:$0xff]
      %v897 = vld [vmem:[#allocation2 + $0xf0] sm:$0xff]
      %v898 = vld [vmem:[#allocation2 + $0xf8] sm:$0xff]
      %v899 = vld [vmem:[#allocation2 + $0x100] sm:$0xff]
      %v900 = vld [vmem:[#allocation2 + $0x108] sm:$0xff]
      %v901 = vld [vmem:[#allocation2 + $0x110] sm:$0xff]
      %v902 = vld [vmem:[#allocation2 + $0x118] sm:$0xff]
      %v903 = vld [vmem:[#allocation2 + $0x120] sm:$0xff]
      %v904 = vld [vmem:[#allocation2 + $0x128] sm:$0xff]
      %v905 = vld [vmem:[#allocation2 + $0x130] sm:$0xff]
      %v906 = vld [vmem:[#allocation2 + $0x138] sm:$0xff]
      %v907 = vld [vmem:[#allocation2 + $0x140] sm:$0xff]
      %v908 = vld [vmem:[#allocation2 + $0x148] sm:$0xff]
      %v909 = vld [vmem:[#allocation2 + $0x150] sm:$0xff]
      %v910 = vld [vmem:[#allocation2 + $0x158] sm:$0xff]
      %v911 = vld [vmem:[#allocation2 + $0x160] sm:$0xff]
      %v912 = vld [vmem:[#allocation2 + $0x168] sm:$0xff]
      %v913 = vld [vmem:[#allocation2 + $0x170] sm:$0xff]
      %v914 = vld [vmem:[#allocation2 + $0x178] sm:$0xff]
      %v915 = vld [vmem:[#allocation2 + $0x180] sm:$0xff]
      %v916 = vld [vmem:[#allocation2 + $0x188] sm:$0xff]
      %v917 = vld [vmem:[#allocation2 + $0x190] sm:$0xff]
      %v918 = vld [vmem:[#allocation2 + $0x198] sm:$0xff]
      %v919 = vld [vmem:[#allocation2 + $0x1a0] sm:$0xff]
      %v920 = vld [vmem:[#allocation2 + $0x1a8] sm:$0xff]
      %v921 = vld [vmem:[#allocation2 + $0x1b0] sm:$0xff]
      %v922 = vld [vmem:[#allocation2 + $0x1b8] sm:$0xff]
      %v923 = vld [vmem:[#allocation2 + $0x1c0] sm:$0xff]
      %v924 = vld [vmem:[#allocation2 + $0x1c8] sm:$0xff]
      %v925 = vld [vmem:[#allocation2 + $0x1d0] sm:$0xff]
      %v926 = vld [vmem:[#allocation2 + $0x1d8] sm:$0xff]
      %v927 = vld [vmem:[#allocation2 + $0x1e0] sm:$0xff]
      %v928 = vld [vmem:[#allocation2 + $0x1e8] sm:$0xff]
      %v929 = vld [vmem:[#allocation2 + $0x1f0] sm:$0xff]
      %v930 = vld [vmem:[#allocation2 + $0x1f8] sm:$0xff]
      %v931 = vld [vmem:[#allocation2 + $0x200] sm:$0xff]
      %v932 = vld [vmem:[#allocation2 + $0x208] sm:$0xff]
      %v933 = vld [vmem:[#allocation2 + $0x210] sm:$0xff]
      %v934 = vld [vmem:[#allocation2 + $0x218] sm:$0xff]
      %v935 = vld [vmem:[#allocation2 + $0x220] sm:$0xff]
      %v936 = vld [vmem:[#allocation2 + $0x228] sm:$0xff]
      %v937 = vld [vmem:[#allocation2 + $0x230] sm:$0xff]
      %v938 = vld [vmem:[#allocation2 + $0x238] sm:$0xff]
      %v939 = vld [vmem:[#allocation2 + $0x240] sm:$0xff]
      %v940 = vld [vmem:[#allocation2 + $0x248] sm:$0xff]
      %v941 = vld [vmem:[#allocation2 + $0x250] sm:$0xff]
      %v942 = vld [vmem:[#allocation2 + $0x258] sm:$0xff]
      %v943 = vld [vmem:[#allocation2 + $0x260] sm:$0xff]
      %v944 = vld [vmem:[#allocation2 + $0x268] sm:$0xff]
      %v945 = vld [vmem:[#allocation2 + $0x270] sm:$0xff]
      %v946 = vld [vmem:[#allocation2 + $0x278] sm:$0xff]
      %v947 = vld [vmem:[#allocation2 + $0x280] sm:$0xff]
      %v948 = vld [vmem:[#allocation2 + $0x288] sm:$0xff]
      %v949 = vld [vmem:[#allocation2 + $0x290] sm:$0xff]
      %v950 = vld [vmem:[#allocation2 + $0x298] sm:$0xff]
      %v951 = vld [vmem:[#allocation2 + $0x2a0] sm:$0xff]
      %v952 = vld [vmem:[#allocation2 + $0x2a8] sm:$0xff]
      %v953 = vld [vmem:[#allocation2 + $0x2b0] sm:$0xff]
      %v954 = vld [vmem:[#allocation2 + $0x2b8] sm:$0xff]
      %v955 = vld [vmem:[#allocation2 + $0x2c0] sm:$0xff]
      %v956 = vld [vmem:[#allocation2 + $0x2c8] sm:$0xff]
      %v957 = vld [vmem:[%s2] sm:$0xf]
      %959 = vset.pattern.permute.xlu0 0
      %960 = vperm.xlu0 %959, %v957
      %v961 = vpop.permute.xlu0 %960
      %vm963 = vcmask 588800
      %v965 = vsel %vm963, %v866, 0
      %967 = vmatpush.msra.mxu0 0.0
      %968 = vmatpush.msra.mxu0 0.0
      %969 = vmatpush.msra.mxu0 0.0
      %970 = vmatpush.msra.mxu0 0.0
      %971 = vmatpush.msra.mxu0 0.0
      %972 = vmatpush.msra.mxu0 0.0
      %973 = vmatpush.msra.mxu0 0.0
      %974 = vmatpush.msra.mxu0 %v947
      %975 = vmatpush.msra.mxu0 %v937
      %976 = vmatpush.msra.mxu0 %v927
      %977 = vmatpush.msra.mxu0 %v917
      %978 = vmatpush.msra.mxu0 %v907
      %979 = vmatpush.msra.mxu0 %v897
      %980 = vmatpush.msra.mxu0 %v887
      %981 = vmatpush.msra.mxu0 %v877
      %982 = vmatpush.msra.mxu0 %v867
      %983 = vmatmul.f32.gmra.mxu0 %v965
      %v984 = vpop.f32.mrf.mxu0
      %v985 = vadd.f32 %v961, %v984
      %986 = vdwg.mxu0
      %987 = vmatpush.msra.mxu0 0.0
      %988 = vmatpush.msra.mxu0 0.0
      %989 = vmatpush.msra.mxu0 0.0
      %990 = vmatpush.msra.mxu0 0.0
      %991 = vmatpush.msra.mxu0 0.0
      %992 = vmatpush.msra.mxu0 0.0
      %993 = vmatpush.msra.mxu0 0.0
      %994 = vmatpush.msra.mxu0 %v948
      %995 = vmatpush.msra.mxu0 %v938
      %996 = vmatpush.msra.mxu0 %v928
      %997 = vmatpush.msra.mxu0 %v918
      %998 = vmatpush.msra.mxu0 %v908
      %999 = vmatpush.msra.mxu0 %v898
      %1000 = vmatpush.msra.mxu0 %v888
      %1001 = vmatpush.msra.mxu0 %v878
      %1002 = vmatpush.msra.mxu0 %v868
      %1003 = vmatmul.f32.gmra.mxu0 %v965
      %v1004 = vpop.f32.mrf.mxu0
      %v1005 = vadd.f32 %v961, %v1004
      %1006 = vdwg.mxu0
      %1007 = vmatpush.msra.mxu0 0.0
      %1008 = vmatpush.msra.mxu0 0.0
      %1009 = vmatpush.msra.mxu0 0.0
      %1010 = vmatpush.msra.mxu0 0.0
      %1011 = vmatpush.msra.mxu0 0.0
      %1012 = vmatpush.msra.mxu0 0.0
      %1013 = vmatpush.msra.mxu0 0.0
      %1014 = vmatpush.msra.mxu0 %v949
      %1015 = vmatpush.msra.mxu0 %v939
      %1016 = vmatpush.msra.mxu0 %v929
      %1017 = vmatpush.msra.mxu0 %v919
      %1018 = vmatpush.msra.mxu0 %v909
      %1019 = vmatpush.msra.mxu0 %v899
      %1020 = vmatpush.msra.mxu0 %v889
      %1021 = vmatpush.msra.mxu0 %v879
      %1022 = vmatpush.msra.mxu0 %v869
      %1023 = vmatmul.f32.gmra.mxu0 %v965
      %v1024 = vpop.f32.mrf.mxu0
      %v1025 = vadd.f32 %v961, %v1024
      %1026 = vdwg.mxu0
      %1027 = vmatpush.msra.mxu0 0.0
      %1028 = vmatpush.msra.mxu0 0.0
      %1029 = vmatpush.msra.mxu0 0.0
      %1030 = vmatpush.msra.mxu0 0.0
      %1031 = vmatpush.msra.mxu0 0.0
      %1032 = vmatpush.msra.mxu0 0.0
      %1033 = vmatpush.msra.mxu0 0.0
      %1034 = vmatpush.msra.mxu0 %v950
      %1035 = vmatpush.msra.mxu0 %v940
      %1036 = vmatpush.msra.mxu0 %v930
      %1037 = vmatpush.msra.mxu0 %v920
      %1038 = vmatpush.msra.mxu0 %v910
      %1039 = vmatpush.msra.mxu0 %v900
      %1040 = vmatpush.msra.mxu0 %v890
      %1041 = vmatpush.msra.mxu0 %v880
      %1042 = vmatpush.msra.mxu0 %v870
      %1043 = vmatmul.f32.gmra.mxu0 %v965
      %v1044 = vpop.f32.mrf.mxu0
      %v1045 = vadd.f32 %v961, %v1044
      %1046 = vdwg.mxu0
      %1047 = vmatpush.msra.mxu0 0.0
      %1048 = vmatpush.msra.mxu0 0.0
      %1049 = vmatpush.msra.mxu0 0.0
      %1050 = vmatpush.msra.mxu0 0.0
      %1051 = vmatpush.msra.mxu0 0.0
      %1052 = vmatpush.msra.mxu0 0.0
      %1053 = vmatpush.msra.mxu0 0.0
      %1054 = vmatpush.msra.mxu0 %v951
      %1055 = vmatpush.msra.mxu0 %v941
      %1056 = vmatpush.msra.mxu0 %v931
      %1057 = vmatpush.msra.mxu0 %v921
      %1058 = vmatpush.msra.mxu0 %v911
      %1059 = vmatpush.msra.mxu0 %v901
      %1060 = vmatpush.msra.mxu0 %v891
      %1061 = vmatpush.msra.mxu0 %v881
      %1062 = vmatpush.msra.mxu0 %v871
      %1063 = vmatmul.f32.gmra.mxu0 %v965
      %v1064 = vpop.f32.mrf.mxu0
      %v1065 = vadd.f32 %v961, %v1064
      %1066 = vdwg.mxu0
      %1067 = vmatpush.msra.mxu0 0.0
      %1068 = vmatpush.msra.mxu0 0.0
      %1069 = vmatpush.msra.mxu0 0.0
      %1070 = vmatpush.msra.mxu0 0.0
      %1071 = vmatpush.msra.mxu0 0.0
      %1072 = vmatpush.msra.mxu0 0.0
      %1073 = vmatpush.msra.mxu0 0.0
      %1074 = vmatpush.msra.mxu0 %v952
      %1075 = vmatpush.msra.mxu0 %v942
      %1076 = vmatpush.msra.mxu0 %v932
      %1077 = vmatpush.msra.mxu0 %v922
      %1078 = vmatpush.msra.mxu0 %v912
      %1079 = vmatpush.msra.mxu0 %v902
      %1080 = vmatpush.msra.mxu0 %v892
      %1081 = vmatpush.msra.mxu0 %v882
      %1082 = vmatpush.msra.mxu0 %v872
      %1083 = vmatmul.f32.gmra.mxu0 %v965
      %v1084 = vpop.f32.mrf.mxu0
      %v1085 = vadd.f32 %v961, %v1084
      %1086 = vdwg.mxu0
      %1087 = vmatpush.msra.mxu0 0.0
      %1088 = vmatpush.msra.mxu0 0.0
      %1089 = vmatpush.msra.mxu0 0.0
      %1090 = vmatpush.msra.mxu0 0.0
      %1091 = vmatpush.msra.mxu0 0.0
      %1092 = vmatpush.msra.mxu0 0.0
      %1093 = vmatpush.msra.mxu0 0.0
      %1094 = vmatpush.msra.mxu0 %v953
      %1095 = vmatpush.msra.mxu0 %v943
      %1096 = vmatpush.msra.mxu0 %v933
      %1097 = vmatpush.msra.mxu0 %v923
      %1098 = vmatpush.msra.mxu0 %v913
      %1099 = vmatpush.msra.mxu0 %v903
      %1100 = vmatpush.msra.mxu0 %v893
      %1101 = vmatpush.msra.mxu0 %v883
      %1102 = vmatpush.msra.mxu0 %v873
      %1103 = vmatmul.f32.gmra.mxu0 %v965
      %v1104 = vpop.f32.mrf.mxu0
      %v1105 = vadd.f32 %v961, %v1104
      %1106 = vdwg.mxu0
      %1107 = vmatpush.msra.mxu0 0.0
      %1108 = vmatpush.msra.mxu0 0.0
      %1109 = vmatpush.msra.mxu0 0.0
      %1110 = vmatpush.msra.mxu0 0.0
      %1111 = vmatpush.msra.mxu0 0.0
      %1112 = vmatpush.msra.mxu0 0.0
      %1113 = vmatpush.msra.mxu0 0.0
      %1114 = vmatpush.msra.mxu0 %v954
      %1115 = vmatpush.msra.mxu0 %v944
      %1116 = vmatpush.msra.mxu0 %v934
      %1117 = vmatpush.msra.mxu0 %v924
      %1118 = vmatpush.msra.mxu0 %v914
      %1119 = vmatpush.msra.mxu0 %v904
      %1120 = vmatpush.msra.mxu0 %v894
      %1121 = vmatpush.msra.mxu0 %v884
      %1122 = vmatpush.msra.mxu0 %v874
      %1123 = vmatmul.f32.gmra.mxu0 %v965
      %v1124 = vpop.f32.mrf.mxu0
      %v1125 = vadd.f32 %v961, %v1124
      %1126 = vdwg.mxu0
      %1127 = vmatpush.msra.mxu0 0.0
      %1128 = vmatpush.msra.mxu0 0.0
      %1129 = vmatpush.msra.mxu0 0.0
      %1130 = vmatpush.msra.mxu0 0.0
      %1131 = vmatpush.msra.mxu0 0.0
      %1132 = vmatpush.msra.mxu0 0.0
      %1133 = vmatpush.msra.mxu0 0.0
      %1134 = vmatpush.msra.mxu0 %v955
      %1135 = vmatpush.msra.mxu0 %v945
      %1136 = vmatpush.msra.mxu0 %v935
      %1137 = vmatpush.msra.mxu0 %v925
      %1138 = vmatpush.msra.mxu0 %v915
      %1139 = vmatpush.msra.mxu0 %v905
      %1140 = vmatpush.msra.mxu0 %v895
      %1141 = vmatpush.msra.mxu0 %v885
      %1142 = vmatpush.msra.mxu0 %v875
      %1143 = vmatmul.f32.gmra.mxu0 %v965
      %v1144 = vpop.f32.mrf.mxu0
      %v1145 = vadd.f32 %v961, %v1144
      %1146 = vdwg.mxu0
      %1147 = vmatpush.msra.mxu0 0.0
      %1148 = vmatpush.msra.mxu0 0.0
      %1149 = vmatpush.msra.mxu0 0.0
      %1150 = vmatpush.msra.mxu0 0.0
      %1151 = vmatpush.msra.mxu0 0.0
      %1152 = vmatpush.msra.mxu0 0.0
      %1153 = vmatpush.msra.mxu0 0.0
      %1154 = vmatpush.msra.mxu0 %v956
      %1155 = vmatpush.msra.mxu0 %v946
      %1156 = vmatpush.msra.mxu0 %v936
      %1157 = vmatpush.msra.mxu0 %v926
      %1158 = vmatpush.msra.mxu0 %v916
      %1159 = vmatpush.msra.mxu0 %v906
      %1160 = vmatpush.msra.mxu0 %v896
      %1161 = vmatpush.msra.mxu0 %v886
      %1162 = vmatpush.msra.mxu0 %v876
      %1163 = vmatmul.f32.gmra.mxu0 %v965
      %v1164 = vpop.f32.mrf.mxu0
      %v1165 = vadd.f32 %v961, %v1164
      %1166 = vdwg.mxu0
      %v1177 = vrot.slane %v1005, 4
      %v1178 = vrot.slane %v1045, 4
      %v1179 = vrot.slane %v1085, 4
      %v1180 = vrot.slane %v1125, 4
      %v1181 = vrot.slane %v1165, 4
      %vm1182 = vcmask 1043456
      %v1183 = vsel %vm1182, %v985, %v1177
      %v1184 = vsel %vm1182, %v1025, %v1178
      %v1185 = vsel %vm1182, %v1065, %v1179
      %v1186 = vsel %vm1182, %v1105, %v1180
      %v1187 = vsel %vm1182, %v1145, %v1181
      %1193 = vst [vmem:[%s237] sm:$0xff] %v1183
      %1194 = vst [vmem:[%s237 + $0x8] sm:$0xff] %v1184
      %1195 = vst [vmem:[%s237 + $0x10] sm:$0xff] %v1185
      %1196 = vst [vmem:[%s237 + $0x18] sm:$0xff] %v1186
      %1197 = vst [vmem:[%s237 + $0x20] sm:$0xff] %v1187
      %v1198 = vlaneseq
      %v1199 = vand.u32 %v1198, 127
      %v1200 = vadd.s32 %v1199, 128
      %v1201 = vadd.s32 %v1199, 256
      %v1202 = vadd.s32 %v1199, 384
      %v1203 = vadd.s32 %v1199, 512
      %v1204 = vadd.s32 %v1199, 640
      %v1205 = vadd.s32 %v1199, 768
      %v1206 = vadd.s32 %v1199, 896
      %v1207 = vadd.s32 %v1199, 1024
      %v1208 = vadd.s32 %v1199, 1152
      %v1209 = vmul.u32 %v1199, 241
      %v1210 = vmul.u32 %v1200, 241
      %v1211 = vmul.u32 %v1201, 241
      %v1212 = vmul.u32 %v1202, 241
      %v1213 = vmul.u32 %v1203, 241
      %v1214 = vmul.u32 %v1204, 241
      %v1215 = vmul.u32 %v1205, 241
      %v1216 = vmul.u32 %v1206, 241
      %v1217 = vmul.u32 %v1207, 241
      %v1218 = vmul.u32 %v1208, 241
      %v1219 = vshra.s32 %v1209, 13
      %v1220 = vshra.s32 %v1210, 13
      %v1221 = vshra.s32 %v1211, 13
      %v1222 = vshra.s32 %v1212, 13
      %v1223 = vshra.s32 %v1213, 13
      %v1224 = vshra.s32 %v1214, 13
      %v1225 = vshra.s32 %v1215, 13
      %v1226 = vshra.s32 %v1216, 13
      %v1227 = vshra.s32 %v1217, 13
      %v1228 = vshra.s32 %v1218, 13
      %v1229 = vmul.u32 %v1219, 34
      %v1230 = vmul.u32 %v1220, 34
      %v1231 = vmul.u32 %v1221, 34
      %v1232 = vmul.u32 %v1222, 34
      %v1233 = vmul.u32 %v1223, 34
      %v1234 = vmul.u32 %v1224, 34
      %v1235 = vmul.u32 %v1225, 34
      %v1236 = vmul.u32 %v1226, 34
      %v1237 = vmul.u32 %v1227, 34
      %v1238 = vmul.u32 %v1228, 34
      %v1239 = vsub.s32 %v1199, %v1229
      %v1240 = vsub.s32 %v1200, %v1230
      %v1241 = vsub.s32 %v1201, %v1231
      %v1242 = vsub.s32 %v1202, %v1232
      %v1243 = vsub.s32 %v1203, %v1233
      %v1244 = vsub.s32 %v1204, %v1234
      %v1245 = vsub.s32 %v1205, %v1235
      %v1246 = vsub.s32 %v1206, %v1236
      %v1247 = vsub.s32 %v1207, %v1237
      %v1248 = vsub.s32 %v1208, %v1238
      %vm1249 = vcmp.lt.s32.totalorder %v1219, 32
      %vm1250 = vcmp.lt.s32.totalorder %v1220, 32
      %vm1251 = vcmp.lt.s32.totalorder %v1221, 32
      %vm1252 = vcmp.lt.s32.totalorder %v1222, 32
      %vm1253 = vcmp.lt.s32.totalorder %v1223, 32
      %vm1254 = vcmp.lt.s32.totalorder %v1224, 32
      %vm1255 = vcmp.lt.s32.totalorder %v1225, 32
      %vm1256 = vcmp.lt.s32.totalorder %v1226, 32
      %vm1257 = vcmp.lt.s32.totalorder %v1227, 32
      %vm1258 = vcmp.lt.s32.totalorder %v1228, 32
      %vm1259 = vcmp.lt.s32.totalorder %v1239, 32
      %vm1260 = vcmp.lt.s32.totalorder %v1240, 32
      %vm1261 = vcmp.lt.s32.totalorder %v1241, 32
      %vm1262 = vcmp.lt.s32.totalorder %v1242, 32
      %vm1263 = vcmp.lt.s32.totalorder %v1243, 32
      %vm1264 = vcmp.lt.s32.totalorder %v1244, 32
      %vm1265 = vcmp.lt.s32.totalorder %v1245, 32
      %vm1266 = vcmp.lt.s32.totalorder %v1246, 32
      %vm1267 = vcmp.lt.s32.totalorder %v1247, 32
      %vm1268 = vcmp.lt.s32.totalorder %v1248, 32
      %vm1269 = vmand %vm1249, %vm1259
      %vm1270 = vmand %vm1250, %vm1260
      %vm1271 = vmand %vm1251, %vm1261
      %vm1272 = vmand %vm1252, %vm1262
      %vm1273 = vmand %vm1253, %vm1263
      %vm1274 = vmand %vm1254, %vm1264
      %vm1275 = vmand %vm1255, %vm1265
      %vm1276 = vmand %vm1256, %vm1266
      %vm1277 = vmand %vm1257, %vm1267
      %vm1278 = vmand %vm1258, %vm1268
      %v1279 = vsel %vm1269, 1, 0
      %v1280 = vsel %vm1270, 1, 0
      %v1281 = vsel %vm1271, 1, 0
      %v1282 = vsel %vm1272, 1, 0
      %v1283 = vsel %vm1273, 1, 0
      %v1284 = vsel %vm1274, 1, 0
      %v1285 = vsel %vm1275, 1, 0
      %v1286 = vsel %vm1276, 1, 0
      %v1287 = vsel %vm1277, 1, 0
      %v1288 = vsel %vm1278, 1, 0
      %v1289 = vcvt.s32.f32 %v1279
      %v1290 = vcvt.s32.f32 %v1280
      %v1291 = vcvt.s32.f32 %v1281
      %v1292 = vcvt.s32.f32 %v1282
      %v1293 = vcvt.s32.f32 %v1283
      %v1294 = vcvt.s32.f32 %v1284
      %v1295 = vcvt.s32.f32 %v1285
      %v1296 = vcvt.s32.f32 %v1286
      %v1297 = vcvt.s32.f32 %v1287
      %v1298 = vcvt.s32.f32 %v1288
      %v1299 = vmul.f32 %v985, %v1289
      %v1300 = vmul.f32 %v1005, %v1290
      %v1301 = vmul.f32 %v1025, %v1291
      %v1302 = vmul.f32 %v1045, %v1292
      %v1303 = vmul.f32 %v1065, %v1293
      %v1304 = vmul.f32 %v1085, %v1294
      %v1305 = vmul.f32 %v1105, %v1295
      %v1306 = vmul.f32 %v1125, %v1296
      %v1307 = vmul.f32 %v1145, %v1297
      %v1308 = vmul.f32 %v1165, %v1298
      %v1309 = vsel %vm1182, %v1299, 0.0
      %v1310 = vsel %vm1182, %v1300, 0.0
      %v1311 = vadd.f32 %v1309, %v1310
      %v1312 = vsel %vm1182, %v1301, 0.0
      %v1313 = vadd.f32 %v1311, %v1312
      %v1314 = vsel %vm1182, %v1302, 0.0
      %v1315 = vadd.f32 %v1313, %v1314
      %v1316 = vsel %vm1182, %v1303, 0.0
      %v1317 = vadd.f32 %v1315, %v1316
      %v1318 = vsel %vm1182, %v1304, 0.0
      %v1319 = vadd.f32 %v1317, %v1318
      %v1320 = vsel %vm1182, %v1305, 0.0
      %v1321 = vadd.f32 %v1319, %v1320
      %v1322 = vsel %vm1182, %v1306, 0.0
      %v1323 = vadd.f32 %v1321, %v1322
      %v1324 = vsel %vm1182, %v1307, 0.0
      %v1325 = vadd.f32 %v1323, %v1324
      %v1326 = vsel %vm1182, %v1308, 0.0
      %v1327 = vadd.f32 %v1325, %v1326
      %1328 = vadd.xlane.f32.xlu0 %v1327
      %v1329 = vpop.xlane.xlu0 %1328
      %vm1330 = vcmask 3072
      %1331 = vst.msk [vmem:[%s241] sm:$0xf] %vm1330, %v1329
      %v1332 = vmul.f32 %v1299, %v985
      %v1333 = vmul.f32 %v1300, %v1005
      %v1334 = vmul.f32 %v1301, %v1025
      %v1335 = vmul.f32 %v1302, %v1045
      %v1336 = vmul.f32 %v1303, %v1065
      %v1337 = vmul.f32 %v1304, %v1085
      %v1338 = vmul.f32 %v1305, %v1105
      %v1339 = vmul.f32 %v1306, %v1125
      %v1340 = vmul.f32 %v1307, %v1145
      %v1341 = vmul.f32 %v1308, %v1165
      %v1342 = vsel %vm1182, %v1332, 0.0
      %v1343 = vsel %vm1182, %v1333, 0.0
      %v1344 = vadd.f32 %v1342, %v1343
      %v1345 = vsel %vm1182, %v1334, 0.0
      %v1346 = vadd.f32 %v1344, %v1345
      %v1347 = vsel %vm1182, %v1335, 0.0
      %v1348 = vadd.f32 %v1346, %v1347
      %v1349 = vsel %vm1182, %v1336, 0.0
      %v1350 = vadd.f32 %v1348, %v1349
      %v1351 = vsel %vm1182, %v1337, 0.0
      %v1352 = vadd.f32 %v1350, %v1351
      %v1353 = vsel %vm1182, %v1338, 0.0
      %v1354 = vadd.f32 %v1352, %v1353
      %v1355 = vsel %vm1182, %v1339, 0.0
      %v1356 = vadd.f32 %v1354, %v1355
      %v1357 = vsel %vm1182, %v1340, 0.0
      %v1358 = vadd.f32 %v1356, %v1357
      %v1359 = vsel %vm1182, %v1341, 0.0
      %v1360 = vadd.f32 %v1358, %v1359
      %1361 = vadd.xlane.f32.xlu0 %v1360
      %v1362 = vpop.xlane.xlu0 %1361
      %1363 = vst.msk [vmem:[%s245] sm:$0xf] %vm1330, %v1362
      %p1364 = scmp.lt.s32.totalorder %s17, 1
      %s1365 = scalar_select %p1364, %s17, 1
      %s1366 = smul.addr %s1365, 10
      %s1367 = smul.addr %s1366, 4
      %s1368 = scalar_lea.vmem %s3, %s1367
      %p1369 = scmp.lt.s32.totalorder %s17, 1
      %s1370 = scalar_select %p1369, %s17, 1
      %s1371 = smul.addr %s1370, 4
      %s1372 = scalar_lea.vmem %s4, %s1371
      %p1373 = scmp.lt.s32.totalorder %s17, 1
      %s1374 = scalar_select %p1373, %s17, 1
      %s1375 = smul.addr %s1374, 4
      %s1376 = scalar_lea.vmem %s5, %s1375
      // Predicated region
      $region33: #{expander_forward.4} parent=31 // pred_check
        %p1377 = pneg %p103
      $region34: #{expander_forward.4} parent=31 // pred_check_branch
        %1379 = sbr.rel (%p1377) target = $region36
      $region35: #{expander_forward.4} parent=31 // pred_region
        _
      $region36: #{expander_forward.4} parent=31 // pred_fallthru
        _
      // Predicated region
      $region37: #{expander_forward.4} parent=31 // pred_check
        %p1380 = pneg %p129
      $region38: #{expander_forward.4} parent=31 // pred_check_branch
        %1382 = sbr.rel (%p1380) target = $region40
      $region39: #{expander_forward.4} parent=31 // pred_region
        _
      $region40: #{expander_forward.4} parent=31 // pred_fallthru
        _
      // Predicated region
      $region41: #{expander_forward.4} parent=31 // pred_check
        %p1383 = pneg %p155
      $region42: #{expander_forward.4} parent=31 // pred_check_branch
        %1385 = sbr.rel (%p1383) target = $region44
      $region43: #{expander_forward.4} parent=31 // pred_region
        _
      $region44: #{expander_forward.4} parent=31 // pred_fallthru
        _
    $region32: #{expander_forward.4} parent=5 // pred_fallthru
      _
    %p1386 = scmp.le.s32.totalorder 2, %s12
    // Predicated region
    $region45: #{expander_forward.4} parent=5 // pred_check
      %p1387 = pneg %p1386
    $region46: #{expander_forward.4} parent=5 // pred_check_branch
      %1389 = sbr.rel (%p1387) target = $region48
    $region47: #{expander_forward.4} parent=5 // pred_region
      %s1390 = ssub.s32 %s12, 2
      // Predicated region
      $region49: #{expander_forward.4} parent=47 // pred_check
        %p1391 = pneg %p109
      $region50: #{expander_forward.4} parent=47 // pred_check_branch
        %1393 = sbr.rel (%p1391) target = $region52
      $region51: #{expander_forward.4} parent=47 // pred_region
        %p1394 = scmp.lt.s32.totalorder %s18, 1
        %s1395 = scalar_select %p1394, %s18, 1
        %s1396 = smul.addr %s1395, 10
        %s1397 = smul.addr %s1396, 4
        %s1398 = scalar_lea.vmem %s3, %s1397
      $region52: #{expander_forward.4} parent=47 // pred_fallthru
        _
      // Predicated region
      $region53: #{expander_forward.4} parent=47 // pred_check
        %p1399 = pneg %p135
      $region54: #{expander_forward.4} parent=47 // pred_check_branch
        %1401 = sbr.rel (%p1399) target = $region56
      $region55: #{expander_forward.4} parent=47 // pred_region
        %p1402 = scmp.lt.s32.totalorder %s18, 1
        %s1403 = scalar_select %p1402, %s18, 1
        %s1404 = smul.addr %s1403, 4
        %s1405 = scalar_lea.vmem %s4, %s1404
      $region56: #{expander_forward.4} parent=47 // pred_fallthru
        _
      // Predicated region
      $region57: #{expander_forward.4} parent=47 // pred_check
        %p1406 = pneg %p161
      $region58: #{expander_forward.4} parent=47 // pred_check_branch
        %1408 = sbr.rel (%p1406) target = $region60
      $region59: #{expander_forward.4} parent=47 // pred_region
        %p1409 = scmp.lt.s32.totalorder %s18, 1
        %s1410 = scalar_select %p1409, %s18, 1
        %s1411 = smul.addr %s1410, 4
        %s1412 = scalar_lea.vmem %s5, %s1411
      $region60: #{expander_forward.4} parent=47 // pred_fallthru
        _
    $region48: #{expander_forward.4} parent=5 // pred_fallthru
      _
  $region6: #{expander_forward.4} parent=0 // loop_footer
    %s16 = sadd.s32 1, %s12
  $region7: #{expander_forward.4} parent=0 // loop_footer_branch
    %11 = sbr.rel target = $region3
  $region8: #{expander_forward.4} parent=0 // loop_exit
    _

// kernel: expander_forward.5
$region0: #{expander_forward.5}
  #allocation0 [shape = 'u32[]', space=smem, size = 0x4, offset = 0x4, fixed_abs, tag = 'smem constant byte address 0x4 - core index']
  #allocation1 [shape = 'u32[72,128]{1,0:T(1,128)}', space=vmem, size = 0x9000, scoped, tag = 'internal scratch']
  #allocation2 [shape = 'f32[2,4,1280]{2,1,0:T(4,128)}', space=vmem, size = 0xa000, scoped, tag = 'scratch operand']
  #allocation3 [shape = 'f32[36,1280]{1,0:T(8,128)}', space=vmem, size = 0x32000, scoped, tag = 'scratch operand']
  #allocation4 [shape = 'f32[4,1536]{1,0:T(4,128)}', space=vmem, size = 0x6000, scoped, tag = 'scratch operand']
  #allocation5 [shape = 'f32[4,2]{1,0:T(4,128)}', space=vmem, size = 0x800, scoped, tag = 'scratch operand']
  %s0 = inlined_call_operand.vmem [shape: f32[2,4,1280], index: 0, kind: input, shape index: {}]
  %s1 = inlined_call_operand.vmem [shape: f32[2,4,1], index: 1, kind: input, shape index: {}]
  %s2 = inlined_call_operand.vmem [shape: f32[2,4,1], index: 2, kind: input, shape index: {}]
  %s3 = inlined_call_operand.vmem [shape: f32[4,1], index: 3, kind: input, shape index: {}]
  %s4 = inlined_call_operand.vmem [shape: f32[4,1], index: 4, kind: input, shape index: {}]
  %s5 = inlined_call_operand.vmem [shape: f32[4,36], index: 5, kind: input, shape index: {}]
  %s6 = inlined_call_operand.vmem [shape: f32[4,1], index: 6, kind: input, shape index: {}]
  %s7 = inlined_call_operand.vmem [shape: f32[4,1], index: 7, kind: input, shape index: {}]
  %s8 = inlined_call_operand.vmem [shape: f32[4,1], index: 8, kind: input, shape index: {}]
  %s9 = inlined_call_operand.vmem [shape: f32[2,4,1280], index: 9, kind: output, shape index: {}]
  %s10 = sld [smem:[#allocation0]]
  $region81: #{expander_forward.5} parent=0
    _
  %s12 = ssub.s32 1, %s10
  %s13 = scalar_select 0, %s12, %s10
  loop: start=0, step=1, limit=6
  $region2: #{expander_forward.5} parent=0 // loop_pre_header
    _
  $region3: #{expander_forward.5} parent=0 // loop_header
    %s15 = sphi 0, %s19
    %p16 = scmp.ge.s32.totalorder %s15, 6
    %s22 = sphi 0, %s34
    %s23 = sphi 0, %s30
    %s24 = sphi 0, %s22
    %s25 = sphi 0, %s23
    %s26 = sphi 0, %s24
    %s27 = sphi 0, %s25
    %s41 = sphi 0, %s43
    %s44 = sphi 0, %s41
    %s45 = sphi 0, %s44
    %s61 = sphi 0, %s45
    %s65 = sphi 0, %s65
    %s67 = sphi 0, %s65
    %s68 = sphi 0, %s67
    %s82 = sphi 0, %s68
    %s86 = sphi 0, %s86
    %s88 = sphi 0, %s86
    %s89 = sphi 0, %s88
    %s103 = sphi 0, %s89
    %s107 = sphi 0, %s107
    %s109 = sphi 0, %s107
    %s110 = sphi 0, %s109
    %s124 = sphi 0, %s110
    %s128 = sphi 0, %s128
    %s130 = sphi 0, %s128
    %s131 = sphi 0, %s130
    %s145 = sphi 0, %s131
    %s149 = sphi 0, %s149
    %s151 = sphi 0, %s149
    %s152 = sphi 0, %s151
    %s166 = sphi 0, %s152
    %s170 = sphi 0, %s170
    %s172 = sphi 0, %s170
    %s173 = sphi 0, %s172
    %s187 = sphi 0, %s173
    %s191 = sphi 0, %s191
    %s193 = sphi 0, %s191
    %s194 = sphi 0, %s193
    %s208 = sphi 0, %s194
    %s212 = sphi 0, %s212
    %s214 = sphi 0, %s212
    %s215 = sphi 0, %s214
    %s229 = sphi 0, %s215
    %s237 = sphi 0, %s239
    %s240 = sphi 0, %s237
    %s241 = sphi 0, %s240
    %s257 = sphi 0, %s241
  $region4: #{expander_forward.5} parent=0 // loop_header_branch
    %18 = sbr.rel (%p16) target = $region8
  $region5: #{expander_forward.5} parent=0 // loop_body
    %s20 = ssub.s32 %s15, 1
    %s21 = ssub.s32 %s15, 2
    %s28 = sadd.s32 1, %s23
    %p29 = scmp.ge.s32.totalorder %s28, 2
    %s30 = scalar_select %p29, 0, %s28
    %s31 = sadd.s32 1, %s22
    %s32 = scalar_select %p29, %s31, %s22
    %p33 = scmp.ge.s32.totalorder %s32, 2
    %s34 = scalar_select %p33, 0, %s32
    %s35 = ssub.s32 1, %s22
    %s36 = smul.u32 %s23, %s35
    %s37 = ssub.s32 1, %s34
    %s38 = smul.u32 %s30, %s37
    %s39 = ssub.s32 %s36, %s38
    %p40 = scmp.eq.s32.totalorder %s39, 0
    %s42 = sadd.s32 %s41, 1
    %s43 = scalar_select %p40, %s41, %s42
    %p46 = pneg %p40
    %p47 = scmp.eq.s32.totalorder %s15, 3
    %p48 = por %p46, %p47
    %p49 = scmp.ne.s32.totalorder %s41, %s44
    %p50 = scmp.eq.s32.totalorder %s15, 0
    %p51 = por %p49, %p50
    %p52 = scmp.ne.s32.totalorder %s41, %s44
    %p53 = scmp.eq.s32.totalorder %s20, 3
    %p54 = por %p52, %p53
    %p55 = scmp.ne.s32.totalorder %s44, %s45
    %p56 = scmp.eq.s32.totalorder %s20, 0
    %p57 = por %p55, %p56
    %p58 = scmp.ne.s32.totalorder %s44, %s45
    %p59 = scmp.eq.s32.totalorder %s21, 3
    %p60 = por %p58, %p59
    %p62 = scmp.ne.s32.totalorder %s45, %s61
    %p63 = scmp.eq.s32.totalorder %s21, 0
    %p64 = por %p62, %p63
    %s66 = sadd.s32 %s65, 1
    %p69 = scmp.eq.s32.totalorder %s15, 3
    %p70 = scmp.ne.s32.totalorder %s65, %s67
    %p71 = scmp.eq.s32.totalorder %s15, 0
    %p72 = por %p70, %p71
    %p73 = scmp.ne.s32.totalorder %s65, %s67
    %p74 = scmp.eq.s32.totalorder %s20, 3
    %p75 = por %p73, %p74
    %p76 = scmp.ne.s32.totalorder %s67, %s68
    %p77 = scmp.eq.s32.totalorder %s20, 0
    %p78 = por %p76, %p77
    %p79 = scmp.ne.s32.totalorder %s67, %s68
    %p80 = scmp.eq.s32.totalorder %s21, 3
    %p81 = por %p79, %p80
    %p83 = scmp.ne.s32.totalorder %s68, %s82
    %p84 = scmp.eq.s32.totalorder %s21, 0
    %p85 = por %p83, %p84
    %s87 = sadd.s32 %s86, 1
    %p90 = scmp.eq.s32.totalorder %s15, 3
    %p91 = scmp.ne.s32.totalorder %s86, %s88
    %p92 = scmp.eq.s32.totalorder %s15, 0
    %p93 = por %p91, %p92
    %p94 = scmp.ne.s32.totalorder %s86, %s88
    %p95 = scmp.eq.s32.totalorder %s20, 3
    %p96 = por %p94, %p95
    %p97 = scmp.ne.s32.totalorder %s88, %s89
    %p98 = scmp.eq.s32.totalorder %s20, 0
    %p99 = por %p97, %p98
    %p100 = scmp.ne.s32.totalorder %s88, %s89
    %p101 = scmp.eq.s32.totalorder %s21, 3
    %p102 = por %p100, %p101
    %p104 = scmp.ne.s32.totalorder %s89, %s103
    %p105 = scmp.eq.s32.totalorder %s21, 0
    %p106 = por %p104, %p105
    %s108 = sadd.s32 %s107, 1
    %p111 = scmp.eq.s32.totalorder %s15, 3
    %p112 = scmp.ne.s32.totalorder %s107, %s109
    %p113 = scmp.eq.s32.totalorder %s15, 0
    %p114 = por %p112, %p113
    %p115 = scmp.ne.s32.totalorder %s107, %s109
    %p116 = scmp.eq.s32.totalorder %s20, 3
    %p117 = por %p115, %p116
    %p118 = scmp.ne.s32.totalorder %s109, %s110
    %p119 = scmp.eq.s32.totalorder %s20, 0
    %p120 = por %p118, %p119
    %p121 = scmp.ne.s32.totalorder %s109, %s110
    %p122 = scmp.eq.s32.totalorder %s21, 3
    %p123 = por %p121, %p122
    %p125 = scmp.ne.s32.totalorder %s110, %s124
    %p126 = scmp.eq.s32.totalorder %s21, 0
    %p127 = por %p125, %p126
    %s129 = sadd.s32 %s128, 1
    %p132 = scmp.eq.s32.totalorder %s15, 3
    %p133 = scmp.ne.s32.totalorder %s128, %s130
    %p134 = scmp.eq.s32.totalorder %s15, 0
    %p135 = por %p133, %p134
    %p136 = scmp.ne.s32.totalorder %s128, %s130
    %p137 = scmp.eq.s32.totalorder %s20, 3
    %p138 = por %p136, %p137
    %p139 = scmp.ne.s32.totalorder %s130, %s131
    %p140 = scmp.eq.s32.totalorder %s20, 0
    %p141 = por %p139, %p140
    %p142 = scmp.ne.s32.totalorder %s130, %s131
    %p143 = scmp.eq.s32.totalorder %s21, 3
    %p144 = por %p142, %p143
    %p146 = scmp.ne.s32.totalorder %s131, %s145
    %p147 = scmp.eq.s32.totalorder %s21, 0
    %p148 = por %p146, %p147
    %s150 = sadd.s32 %s149, 1
    %p153 = scmp.eq.s32.totalorder %s15, 3
    %p154 = scmp.ne.s32.totalorder %s149, %s151
    %p155 = scmp.eq.s32.totalorder %s15, 0
    %p156 = por %p154, %p155
    %p157 = scmp.ne.s32.totalorder %s149, %s151
    %p158 = scmp.eq.s32.totalorder %s20, 3
    %p159 = por %p157, %p158
    %p160 = scmp.ne.s32.totalorder %s151, %s152
    %p161 = scmp.eq.s32.totalorder %s20, 0
    %p162 = por %p160, %p161
    %p163 = scmp.ne.s32.totalorder %s151, %s152
    %p164 = scmp.eq.s32.totalorder %s21, 3
    %p165 = por %p163, %p164
    %p167 = scmp.ne.s32.totalorder %s152, %s166
    %p168 = scmp.eq.s32.totalorder %s21, 0
    %p169 = por %p167, %p168
    %s171 = sadd.s32 %s170, 1
    %p174 = scmp.eq.s32.totalorder %s15, 3
    %p175 = scmp.ne.s32.totalorder %s170, %s172
    %p176 = scmp.eq.s32.totalorder %s15, 0
    %p177 = por %p175, %p176
    %p178 = scmp.ne.s32.totalorder %s170, %s172
    %p179 = scmp.eq.s32.totalorder %s20, 3
    %p180 = por %p178, %p179
    %p181 = scmp.ne.s32.totalorder %s172, %s173
    %p182 = scmp.eq.s32.totalorder %s20, 0
    %p183 = por %p181, %p182
    %p184 = scmp.ne.s32.totalorder %s172, %s173
    %p185 = scmp.eq.s32.totalorder %s21, 3
    %p186 = por %p184, %p185
    %p188 = scmp.ne.s32.totalorder %s173, %s187
    %p189 = scmp.eq.s32.totalorder %s21, 0
    %p190 = por %p188, %p189
    %s192 = sadd.s32 %s191, 1
    %p195 = scmp.eq.s32.totalorder %s15, 3
    %p196 = scmp.ne.s32.totalorder %s191, %s193
    %p197 = scmp.eq.s32.totalorder %s15, 0
    %p198 = por %p196, %p197
    %p199 = scmp.ne.s32.totalorder %s191, %s193
    %p200 = scmp.eq.s32.totalorder %s20, 3
    %p201 = por %p199, %p200
    %p202 = scmp.ne.s32.totalorder %s193, %s194
    %p203 = scmp.eq.s32.totalorder %s20, 0
    %p204 = por %p202, %p203
    %p205 = scmp.ne.s32.totalorder %s193, %s194
    %p206 = scmp.eq.s32.totalorder %s21, 3
    %p207 = por %p205, %p206
    %p209 = scmp.ne.s32.totalorder %s194, %s208
    %p210 = scmp.eq.s32.totalorder %s21, 0
    %p211 = por %p209, %p210
    %s213 = sadd.s32 %s212, 1
    %p216 = scmp.eq.s32.totalorder %s15, 3
    %p217 = scmp.ne.s32.totalorder %s212, %s214
    %p218 = scmp.eq.s32.totalorder %s15, 0
    %p219 = por %p217, %p218
    %p220 = scmp.ne.s32.totalorder %s212, %s214
    %p221 = scmp.eq.s32.totalorder %s20, 3
    %p222 = por %p220, %p221
    %p223 = scmp.ne.s32.totalorder %s214, %s215
    %p224 = scmp.eq.s32.totalorder %s20, 0
    %p225 = por %p223, %p224
    %p226 = scmp.ne.s32.totalorder %s214, %s215
    %p227 = scmp.eq.s32.totalorder %s21, 3
    %p228 = por %p226, %p227
    %p230 = scmp.ne.s32.totalorder %s215, %s229
    %p231 = scmp.eq.s32.totalorder %s21, 0
    %p232 = por %p230, %p231
    %s233 = smul.u32 %s23, %s22
    %s234 = smul.u32 %s30, %s34
    %s235 = ssub.s32 %s233, %s234
    %p236 = scmp.eq.s32.totalorder %s235, 0
    %s238 = sadd.s32 %s237, 1
    %s239 = scalar_select %p236, %s237, %s238
    %p242 = pneg %p236
    %p243 = scmp.eq.s32.totalorder %s15, 3
    %p244 = por %p242, %p243
    %p245 = scmp.ne.s32.totalorder %s237, %s240
    %p246 = scmp.eq.s32.totalorder %s15, 0
    %p247 = por %p245, %p246
    %p248 = scmp.ne.s32.totalorder %s237, %s240
    %p249 = scmp.eq.s32.totalorder %s20, 3
    %p250 = por %p248, %p249
    %p251 = scmp.ne.s32.totalorder %s240, %s241
    %p252 = scmp.eq.s32.totalorder %s20, 0
    %p253 = por %p251, %p252
    %p254 = scmp.ne.s32.totalorder %s240, %s241
    %p255 = scmp.eq.s32.totalorder %s21, 3
    %p256 = por %p254, %p255
    %p258 = scmp.ne.s32.totalorder %s241, %s257
    %p259 = scmp.eq.s32.totalorder %s21, 0
    %p260 = por %p258, %p259
    %p261 = scmp.le.s32.totalorder 1, %s15
    %p262 = scmp.lt.s32.totalorder %s15, 5
    %p263 = pnand %p261, %p262
    %p264 = pneg %p263
    // Predicated region
    $region9: #{expander_forward.5} parent=5 // pred_check
      _
    $region10: #{expander_forward.5} parent=5 // pred_check_branch
      %266 = sbr.rel (%p263) target = $region12
    $region11: #{expander_forward.5} parent=5 // pred_region
      %s267 = ssub.s32 %s15, 1
      // Predicated region
      $region13: #{expander_forward.5} parent=11 // pred_check
        %p268 = pneg %p78
      $region14: #{expander_forward.5} parent=11 // pred_check_branch
        %270 = sbr.rel (%p268) target = $region16
      $region15: #{expander_forward.5} parent=11 // pred_region
        _
      $region16: #{expander_forward.5} parent=11 // pred_fallthru
        _
      // Predicated region
      $region17: #{expander_forward.5} parent=11 // pred_check
        %p271 = pneg %p99
      $region18: #{expander_forward.5} parent=11 // pred_check_branch
        %273 = sbr.rel (%p271) target = $region20
      $region19: #{expander_forward.5} parent=11 // pred_region
        _
      $region20: #{expander_forward.5} parent=11 // pred_fallthru
        _
      // Predicated region
      $region21: #{expander_forward.5} parent=11 // pred_check
        %p274 = pneg %p120
      $region22: #{expander_forward.5} parent=11 // pred_check_branch
        %276 = sbr.rel (%p274) target = $region24
      $region23: #{expander_forward.5} parent=11 // pred_region
        _
      $region24: #{expander_forward.5} parent=11 // pred_fallthru
        _
      // Predicated region
      $region25: #{expander_forward.5} parent=11 // pred_check
        %p277 = pneg %p141
      $region26: #{expander_forward.5} parent=11 // pred_check_branch
        %279 = sbr.rel (%p277) target = $region28
      $region27: #{expander_forward.5} parent=11 // pred_region
        _
      $region28: #{expander_forward.5} parent=11 // pred_fallthru
        _
      // Predicated region
      $region29: #{expander_forward.5} parent=11 // pred_check
        %p280 = pneg %p162
      $region30: #{expander_forward.5} parent=11 // pred_check_branch
        %282 = sbr.rel (%p280) target = $region32
      $region31: #{expander_forward.5} parent=11 // pred_region
        _
      $region32: #{expander_forward.5} parent=11 // pred_fallthru
        _
      // Predicated region
      $region33: #{expander_forward.5} parent=11 // pred_check
        %p283 = pneg %p183
      $region34: #{expander_forward.5} parent=11 // pred_check_branch
        %285 = sbr.rel (%p283) target = $region36
      $region35: #{expander_forward.5} parent=11 // pred_region
        _
      $region36: #{expander_forward.5} parent=11 // pred_fallthru
        _
      // Predicated region
      $region37: #{expander_forward.5} parent=11 // pred_check
        %p286 = pneg %p204
      $region38: #{expander_forward.5} parent=11 // pred_check_branch
        %288 = sbr.rel (%p286) target = $region40
      $region39: #{expander_forward.5} parent=11 // pred_region
        _
      $region40: #{expander_forward.5} parent=11 // pred_fallthru
        _
      // Predicated region
      $region41: #{expander_forward.5} parent=11 // pred_check
        %p289 = pneg %p225
      $region42: #{expander_forward.5} parent=11 // pred_check_branch
        %291 = sbr.rel (%p289) target = $region44
      $region43: #{expander_forward.5} parent=11 // pred_region
        _
      $region44: #{expander_forward.5} parent=11 // pred_fallthru
        _
    $region12: #{expander_forward.5} parent=5 // pred_fallthru
      _
    %p292 = scmp.lt.s32.totalorder %s15, 4
    // Predicated region
    $region45: #{expander_forward.5} parent=5 // pred_check
      %p293 = pneg %p292
    $region46: #{expander_forward.5} parent=5 // pred_check_branch
      %295 = sbr.rel (%p293) target = $region48
    $region47: #{expander_forward.5} parent=5 // pred_region
      // Predicated region
      $region49: #{expander_forward.5} parent=47 // pred_check
        %p296 = pneg %p51
      $region50: #{expander_forward.5} parent=47 // pred_check_branch
        %298 = sbr.rel (%p296) target = $region52
      $region51: #{expander_forward.5} parent=47 // pred_region
        %s299 = ssub.s32 1, %s22
        %s300 = smul.u32 %s23, %s299
        %p301 = scmp.lt.s32.totalorder %s300, 1
        %s302 = scalar_select %p301, %s300, 1
        %s303 = smul.addr %s302, 10
        %s304 = smul.addr %s303, 4
        %s305 = scalar_lea.vmem %s0, %s304
        %s306 = ssub.s32 1, %s22
        %s307 = smul.u32 %s23, %s306
      $region52: #{expander_forward.5} parent=47 // pred_fallthru
        _
    $region48: #{expander_forward.5} parent=5 // pred_fallthru
      _
    %p308 = scmp.le.s32.totalorder 1, %s15
    %p309 = scmp.lt.s32.totalorder %s15, 5
    %p310 = pnand %p308, %p309
    %p311 = pneg %p310
    // Predicated region
    $region53: #{expander_forward.5} parent=5 // pred_check
      _
    $region54: #{expander_forward.5} parent=5 // pred_check_branch
      %313 = sbr.rel (%p310) target = $region56
    $region55: #{expander_forward.5} parent=5 // pred_region
      %s314 = ssub.s32 %s15, 1
      %s315 = ssub.s32 1, %s24
      %s316 = smul.u32 %s25, %s315
      %p317 = scmp.lt.s32.totalorder %s316, 1
      %s318 = scalar_select %p317, %s316, 1
      %s319 = smul.addr %s318, 10
      %s320 = smul.addr %s319, 4
      %s321 = scalar_lea.vmem %s0, %s320
      %p322 = pneg %p57
      %p323 = pneg %p54
      %p324 = pneg %p78
      %p325 = pneg %p75
      %p326 = pneg %p99
      %p327 = pneg %p96
      %p328 = pneg %p120
      %p329 = pneg %p117
      %p330 = pneg %p141
      %p331 = pneg %p138
      %p332 = pneg %p162
      %p333 = pneg %p159
      %p334 = pneg %p183
      %p335 = pneg %p180
      %p336 = pneg %p204
      %p337 = pneg %p201
      %p338 = pneg %p225
      %p339 = pneg %p222
      %p340 = pneg %p253
      %p341 = pneg %p250
      %s342 = smul.u32 %s25, %s24
      %p343 = scmp.lt.s32.totalorder %s342, 1
      %s344 = scalar_select %p343, %s342, 1
      %s345 = smul.addr %s344, 10
      %s346 = smul.addr %s345, 4
      %s347 = scalar_lea.vmem %s9, %s346
      %s348 = ssub.s32 1, %s24
      %s349 = smul.u32 %s25, %s348
      %p350 = scmp.lt.s32.totalorder %s349, 1
      %s351 = scalar_select %p350, %s349, 1
      %s352 = smul.addr %s351, 10
      %s353 = smul.addr %s352, 4
      %s354 = scalar_lea.vmem %s0, %s353
      %s355 = ssub.s32 1, %s24
      %s356 = smul.u32 %s25, %s355
      %s357 = smul.u32 %s25, %s24
      %p358 = scmp.lt.s32.totalorder %s357, 1
      %s359 = scalar_select %p358, %s357, 1
      %s360 = smul.addr %s359, 10
      %s361 = smul.addr %s360, 4
      %s362 = scalar_lea.vmem %s9, %s361
      %s363 = smul.u32 %s25, %s24
      %p364 = scmp.eq.s32.totalorder %s24, 0
      %p365 = scmp.eq.s32.totalorder %s25, 0
      %p366 = pnand %p364, %p365
      %p367 = pneg %p366
      // Predicated region
      $region57: #{expander_forward.5} parent=55 // pred_check
        _
      $region58: #{expander_forward.5} parent=55 // pred_check_branch
        %369 = sbr.rel (%p366) target = $region60
      $region59: #{expander_forward.5} parent=55 // pred_region
        %370 = vst [vmem:[#allocation4] sm:$0xf] 0.0
        %371 = vst [vmem:[#allocation4 + $0x2c] sm:$0xf] 0.0
        %vm372 = vcmask 11264
        %373 = vst.msk [vmem:[#allocation5] sm:$0xf] %vm372, 0.0
      $region60: #{expander_forward.5} parent=55 // pred_fallthru
        _
      // Predicated region
      $region61: #{expander_forward.5} parent=55 // pred_check
        %p374 = pneg %p364
      $region62: #{expander_forward.5} parent=55 // pred_check_branch
        %376 = sbr.rel (%p374) target = $region64
      $region63: #{expander_forward.5} parent=55 // pred_region
        %v377 = vlaneseq
        %v378 = vand.u32 %v377, 127
        %v379 = vadd.s32 %v378, 128
        %v380 = vadd.s32 %v378, 256
        %v381 = vadd.s32 %v378, 384
        %v382 = vadd.s32 %v378, 512
        %v383 = vadd.s32 %v378, 640
        %v384 = vadd.s32 %v378, 768
        %v385 = vadd.s32 %v378, 896
        %v386 = vadd.s32 %v378, 1024
        %v387 = vadd.s32 %v378, 1152
        %v388 = vmul.u32 %v378, 241
        %v389 = vmul.u32 %v379, 241
        %v390 = vmul.u32 %v380, 241
        %v391 = vmul.u32 %v381, 241
        %v392 = vmul.u32 %v382, 241
        %v393 = vmul.u32 %v383, 241
        %v394 = vmul.u32 %v384, 241
        %v395 = vmul.u32 %v385, 241
        %v396 = vmul.u32 %v386, 241
        %v397 = vmul.u32 %v387, 241
        %v398 = vshra.s32 %v388, 13
        %v399 = vshra.s32 %v389, 13
        %v400 = vshra.s32 %v390, 13
        %v401 = vshra.s32 %v391, 13
        %v402 = vshra.s32 %v392, 13
        %v403 = vshra.s32 %v393, 13
        %v404 = vshra.s32 %v394, 13
        %v405 = vshra.s32 %v395, 13
        %v406 = vshra.s32 %v396, 13
        %v407 = vshra.s32 %v397, 13
        %v408 = vmul.u32 %v398, 34
        %v409 = vmul.u32 %v399, 34
        %v410 = vmul.u32 %v400, 34
        %v411 = vmul.u32 %v401, 34
        %v412 = vmul.u32 %v402, 34
        %v413 = vmul.u32 %v403, 34
        %v414 = vmul.u32 %v404, 34
        %v415 = vmul.u32 %v405, 34
        %v416 = vmul.u32 %v406, 34
        %v417 = vmul.u32 %v407, 34
        %v418 = vsub.s32 %v378, %v408
        %v419 = vsub.s32 %v379, %v409
        %v420 = vsub.s32 %v380, %v410
        %v421 = vsub.s32 %v381, %v411
        %v422 = vsub.s32 %v382, %v412
        %v423 = vsub.s32 %v383, %v413
        %v424 = vsub.s32 %v384, %v414
        %v425 = vsub.s32 %v385, %v415
        %v426 = vsub.s32 %v386, %v416
        %v427 = vsub.s32 %v387, %v417
        %vm428 = vcmp.lt.s32.totalorder %v398, 32
        %vm429 = vcmp.lt.s32.totalorder %v399, 32
        %vm430 = vcmp.lt.s32.totalorder %v400, 32
        %vm431 = vcmp.lt.s32.totalorder %v401, 32
        %vm432 = vcmp.lt.s32.totalorder %v402, 32
        %vm433 = vcmp.lt.s32.totalorder %v403, 32
        %vm434 = vcmp.lt.s32.totalorder %v404, 32
        %vm435 = vcmp.lt.s32.totalorder %v405, 32
        %vm436 = vcmp.lt.s32.totalorder %v406, 32
        %vm437 = vcmp.lt.s32.totalorder %v407, 32
        %vm438 = vcmp.lt.s32.totalorder %v418, 32
        %vm439 = vcmp.lt.s32.totalorder %v419, 32
        %vm440 = vcmp.lt.s32.totalorder %v420, 32
        %vm441 = vcmp.lt.s32.totalorder %v421, 32
        %vm442 = vcmp.lt.s32.totalorder %v422, 32
        %vm443 = vcmp.lt.s32.totalorder %v423, 32
        %vm444 = vcmp.lt.s32.totalorder %v424, 32
        %vm445 = vcmp.lt.s32.totalorder %v425, 32
        %vm446 = vcmp.lt.s32.totalorder %v426, 32
        %vm447 = vcmp.lt.s32.totalorder %v427, 32
        %vm448 = vmand %vm428, %vm438
        %vm449 = vmand %vm429, %vm439
        %vm450 = vmand %vm430, %vm440
        %vm451 = vmand %vm431, %vm441
        %vm452 = vmand %vm432, %vm442
        %vm453 = vmand %vm433, %vm443
        %vm454 = vmand %vm434, %vm444
        %vm455 = vmand %vm435, %vm445
        %vm456 = vmand %vm436, %vm446
        %vm457 = vmand %vm437, %vm447
        %v458 = vsel %vm448, 1, 0
        %v459 = vsel %vm449, 1, 0
        %v460 = vsel %vm450, 1, 0
        %v461 = vsel %vm451, 1, 0
        %v462 = vsel %vm452, 1, 0
        %v463 = vsel %vm453, 1, 0
        %v464 = vsel %vm454, 1, 0
        %v465 = vsel %vm455, 1, 0
        %v466 = vsel %vm456, 1, 0
        %v467 = vsel %vm457, 1, 0
        %v468 = vcvt.s32.f32 %v458
        %v469 = vcvt.s32.f32 %v459
        %v470 = vcvt.s32.f32 %v460
        %v471 = vcvt.s32.f32 %v461
        %v472 = vcvt.s32.f32 %v462
        %v473 = vcvt.s32.f32 %v463
        %v474 = vcvt.s32.f32 %v464
        %v475 = vcvt.s32.f32 %v465
        %v476 = vcvt.s32.f32 %v466
        %v477 = vcvt.s32.f32 %v467
        %v478 = vld [vmem:[%s1] sm:$0xf]
        %v479 = vld [vmem:[%s2] sm:$0xf]
        %s480 = scalar_lea.vmem %s1, 4
        %v481 = vld [vmem:[%s480] sm:$0xf]
        %v482 = vadd.f32 %v478, %v481
        %s483 = scalar_lea.vmem %s2, 4
        %v484 = vld [vmem:[%s483] sm:$0xf]
        %v485 = vadd.f32 %v479, %v484
        %v486 = vrcp.pop 2048.0
        %v487 = vmul.f32 2048.0, %v486
        %v488 = vsub.f32 1.0, %v487
        %v489 = vmul.f32 %v486, %v488
        %v490 = vadd.f32 %v486, %v489
        %vm491 = vweird.f32 %v486
        %v492 = vsel %vm491, %v486, %v490
        %v493 = vmul.f32 %v482, %v492
        %v494 = vmul.f32 %v485, %v492
        %v495 = vmul.f32 %v493, %v493
        %v496 = vsub.f32 %v494, %v495
        %v497 = vadd.f32 %v496, 1e-05
        %v498 = vrsqrt.pop %v497
        %v499 = vmul.f32 %v498, %v497
        %v500 = vmul.f32 %v499, %v498
        %v501 = vmul.f32 0.5, %v500
        %v502 = vsub.f32 1.5, %v501
        %v503 = vmul.f32 %v498, %v502
        %vm504 = vweird.f32 %v497
        %vm505 = vweird.f32 %v498
        %vm506 = vmor %vm504, %vm505
        %v507 = vsel %vm506, %v498, %v503
        %v508 = vld [vmem:[%s354] sm:$0xff]
        %v509 = vld [vmem:[%s354 + $0x8] sm:$0xff]
        %v510 = vld [vmem:[%s354 + $0x10] sm:$0xff]
        %v511 = vld [vmem:[%s354 + $0x18] sm:$0xff]
        %v512 = vld [vmem:[%s354 + $0x20] sm:$0xff]
        %514 = vset.pattern.permute.xlu0 0
        %515 = vperm.xlu0 %514, %v493
        %v516 = vpop.permute.xlu0 %515
        %v518 = vunpack.c.l.s4 839922192
        %v519 = vunpack.c.0.s8 %v518
        %v520 = vperm.slane %v516, %v519
        %v522 = vsub.f32 %v508, %v520
        %v523 = vsub.f32 %v509, %v520
        %v524 = vsub.f32 %v510, %v520
        %v525 = vsub.f32 %v511, %v520
        %v526 = vsub.f32 %v512, %v520
        %528 = vset.pattern.permute.xlu0 0
        %529 = vperm.xlu0 %528, %v507
        %v530 = vpop.permute.xlu0 %529
        %v532 = vunpack.c.l.s4 839922192
        %v533 = vunpack.c.0.s8 %v532
        %v534 = vperm.slane %v530, %v533
        %v536 = vmul.f32 %v522, %v534
        %v537 = vmul.f32 %v523, %v534
        %v538 = vmul.f32 %v524, %v534
        %v539 = vmul.f32 %v525, %v534
        %v540 = vmul.f32 %v526, %v534
        %v541 = vld [vmem:[%s3] sm:$0xf]
        %543 = vset.pattern.permute.xlu0 0
        %544 = vperm.xlu0 %543, %v541
        %v545 = vpop.permute.xlu0 %544
        %v547 = vunpack.c.l.s4 839922192
        %v548 = vunpack.c.0.s8 %v547
        %v549 = vperm.slane %v545, %v548
        %v551 = vmul.f32 %v536, %v549
        %v552 = vmul.f32 %v537, %v549
        %v553 = vmul.f32 %v538, %v549
        %v554 = vmul.f32 %v539, %v549
        %v555 = vmul.f32 %v540, %v549
        %v556 = vld [vmem:[%s4] sm:$0xf]
        %558 = vset.pattern.permute.xlu0 0
        %559 = vperm.xlu0 %558, %v556
        %v560 = vpop.permute.xlu0 %559
        %v562 = vunpack.c.l.s4 839922192
        %v563 = vunpack.c.0.s8 %v562
        %v564 = vperm.slane %v560, %v563
        %v566 = vadd.f32 %v551, %v564
        %v567 = vadd.f32 %v552, %v564
        %v568 = vadd.f32 %v553, %v564
        %v569 = vadd.f32 %v554, %v564
        %v570 = vadd.f32 %v555, %v564
        %v571 = vmax.f32 %v566, 0.0
        %v572 = vmax.f32 %v567, 0.0
        %v573 = vmax.f32 %v568, 0.0
        %v574 = vmax.f32 %v569, 0.0
        %v575 = vmax.f32 %v570, 0.0
        %v586 = vrot.slane %v469, 4
        %v587 = vrot.slane %v471, 4
        %v588 = vrot.slane %v473, 4
        %v589 = vrot.slane %v475, 4
        %v590 = vrot.slane %v477, 4
        %vm591 = vcmask 1043456
        %v592 = vsel %vm591, %v468, %v586
        %v593 = vsel %vm591, %v470, %v587
        %v594 = vsel %vm591, %v472, %v588
        %v595 = vsel %vm591, %v474, %v589
        %v596 = vsel %vm591, %v476, %v590
        %v602 = vmul.f32 %v571, %v592
        %v603 = vmul.f32 %v572, %v593
        %v604 = vmul.f32 %v573, %v594
        %v605 = vmul.f32 %v574, %v595
        %v606 = vmul.f32 %v575, %v596
        %607 = vst [vmem:[#allocation4 + $0x4] sm:$0xff] %v602
        %608 = vst [vmem:[#allocation4 + $0xc] sm:$0xff] %v603
        %609 = vst [vmem:[#allocation4 + $0x14] sm:$0xff] %v604
        %610 = vst [vmem:[#allocation4 + $0x1c] sm:$0xff] %v605
        %611 = vst [vmem:[#allocation4 + $0x24] sm:$0xff] %v606
        %v612 = vld [vmem:[#allocation4] sm:$0xff]
        %v613 = vld [vmem:[#allocation4 + $0x8] sm:$0xff]
        %v614 = vld [vmem:[#allocation4 + $0x10] sm:$0xff]
        %v615 = vld [vmem:[#allocation4 + $0x18] sm:$0xff]
        %v616 = vld [vmem:[#allocation4 + $0x20] sm:$0xff]
        %v617 = vld [vmem:[#allocation4 + $0x28] sm:$0xf]
        %624 = vst [vmem:[#allocation1] ss:$2 sm:$0xff] %v612
        %s625 = scalar_lea.vmem [#allocation1], 16
        %626 = vst [vmem:[%s625] ss:$2 sm:$0xff] %v613
        %s627 = scalar_lea.vmem [#allocation1], 32
        %628 = vst [vmem:[%s627] ss:$2 sm:$0xff] %v614
        %s629 = scalar_lea.vmem [#allocation1], 48
        %630 = vst [vmem:[%s629] ss:$2 sm:$0xff] %v615
        %v631 = vld.sshfl [vmem:[#allocation1] sm:$0xff pattern:$0x75316420]
        %v632 = vld.sshfl [vmem:[#allocation1 + $0x8] sm:$0xff pattern:$0x75316420]
        %v633 = vld.sshfl [vmem:[#allocation1 + $0x10] sm:$0xff pattern:$0x75316420]
        %v634 = vld.sshfl [vmem:[#allocation1 + $0x18] sm:$0xff pattern:$0x75316420]
        %v635 = vld.sshfl [vmem:[#allocation1 + $0x20] sm:$0xff pattern:$0x75316420]
        %v636 = vld.sshfl [vmem:[#allocation1 + $0x28] sm:$0xff pattern:$0x75316420]
        %v637 = vld.sshfl [vmem:[#allocation1 + $0x30] sm:$0xff pattern:$0x75316420]
        %v638 = vld.sshfl [vmem:[#allocation1 + $0x38] sm:$0xff pattern:$0x75316420]
        %639 = vst [vmem:[#allocation1] ss:$2 sm:$0xff] %v616
        %640 = vst [vmem:[%s625] ss:$2 sm:$0xff] %v617
        %v641 = vld.sshfl [vmem:[#allocation1] sm:$0xff pattern:$0x75316420]
        %v642 = vld.sshfl [vmem:[#allocation1 + $0x8] sm:$0xff pattern:$0x75316420]
        %v643 = vld.sshfl [vmem:[#allocation1 + $0x10] sm:$0xff pattern:$0x75316420]
        %644 = vrot.lane.b32.xlu0 %v631, 35
        %v645 = vpop.permute.xlu0 %644
        %646 = vrot.lane.b32.xlu0 %v632, 35
        %v647 = vpop.permute.xlu0 %646
        %648 = vrot.lane.b32.xlu0 %v633, 35
        %v649 = vpop.permute.xlu0 %648
        %650 = vrot.lane.b32.xlu0 %v634, 35
        %v651 = vpop.permute.xlu0 %650
        %652 = vrot.lane.b32.xlu0 %v635, 35
        %v653 = vpop.permute.xlu0 %652
        %654 = vrot.lane.b32.xlu0 %v636, 35
        %v655 = vpop.permute.xlu0 %654
        %656 = vrot.lane.b32.xlu0 %v637, 35
        %v657 = vpop.permute.xlu0 %656
        %658 = vrot.lane.b32.xlu0 %v638, 35
        %v659 = vpop.permute.xlu0 %658
        %660 = vrot.lane.b32.xlu0 %v641, 35
        %v661 = vpop.permute.xlu0 %660
        %662 = vrot.lane.b32.xlu0 %v642, 35
        %v663 = vpop.permute.xlu0 %662
        %664 = vrot.lane.b32.xlu0 %v643, 35
        %v665 = vpop.permute.xlu0 %664
        %vm666 = vcmask 285696
        %v667 = vsel %vm666, %v645, %v647
        %v668 = vsel %vm666, %v647, %v649
        %v669 = vsel %vm666, %v649, %v651
        %v670 = vsel %vm666, %v651, %v653
        %v671 = vsel %vm666, %v653, %v655
        %v672 = vsel %vm666, %v655, %v657
        %v673 = vsel %vm666, %v657, %v659
        %v674 = vsel %vm666, %v659, %v661
        %v675 = vsel %vm666, %v661, %v663
        %v676 = vsel %vm666, %v663, %v665
        %687 = vst [vmem:[#allocation3] sm:$0xf] %v667
        %688 = vst [vmem:[#allocation3 + $0x8] sm:$0xf] %v668
        %689 = vst [vmem:[#allocation3 + $0x10] sm:$0xf] %v669
        %690 = vst [vmem:[#allocation3 + $0x18] sm:$0xf] %v670
        %691 = vst [vmem:[#allocation3 + $0x20] sm:$0xf] %v671
        %692 = vst [vmem:[#allocation3 + $0x28] sm:$0xf] %v672
        %693 = vst [vmem:[#allocation3 + $0x30] sm:$0xf] %v673
        %694 = vst [vmem:[#allocation3 + $0x38] sm:$0xf] %v674
        %695 = vst [vmem:[#allocation3 + $0x40] sm:$0xf] %v675
        %696 = vst [vmem:[#allocation3 + $0x48] sm:$0xf] %v676
        %v697 = vld [vmem:[#allocation4] sm:$0xff]
        %v698 = vld [vmem:[#allocation4 + $0x8] sm:$0xff]
        %v699 = vld [vmem:[#allocation4 + $0x10] sm:$0xff]
        %v700 = vld [vmem:[#allocation4 + $0x18] sm:$0xff]
        %v701 = vld [vmem:[#allocation4 + $0x20] sm:$0xff]
        %v702 = vld [vmem:[#allocation4 + $0x28] sm:$0xf]
        %s709 = scalar_lea.vmem [#allocation1], 1
        %710 = vst [vmem:[%s709] ss:$2 sm:$0xff] %v697
        %s711 = scalar_lea.vmem [#allocation1], 17
        %712 = vst [vmem:[%s711] ss:$2 sm:$0xff] %v698
        %s713 = scalar_lea.vmem [#allocation1], 33
        %714 = vst [vmem:[%s713] ss:$2 sm:$0xff] %v699
        %s715 = scalar_lea.vmem [#allocation1], 49
        %716 = vst [vmem:[%s715] ss:$2 sm:$0xff] %v700
        %v717 = vld.sshfl [vmem:[#allocation1] sm:$0xff pattern:$0x75316420]
        %v718 = vld.sshfl [vmem:[#allocation1 + $0x8] sm:$0xff pattern:$0x75316420]
        %v719 = vld.sshfl [vmem:[#allocation1 + $0x10] sm:$0xff pattern:$0x75316420]
        %v720 = vld.sshfl [vmem:[#allocation1 + $0x18] sm:$0xff pattern:$0x75316420]
        %v721 = vld.sshfl [vmem:[#allocation1 + $0x20] sm:$0xff pattern:$0x75316420]
        %v722 = vld.sshfl [vmem:[#allocation1 + $0x28] sm:$0xff pattern:$0x75316420]
        %v723 = vld.sshfl [vmem:[#allocation1 + $0x30] sm:$0xff pattern:$0x75316420]
        %v724 = vld.sshfl [vmem:[#allocation1 + $0x38] sm:$0xff pattern:$0x75316420]
        %725 = vst [vmem:[%s709] ss:$2 sm:$0xff] %v701
        %726 = vst [vmem:[%s711] ss:$2 sm:$0xff] %v702
        %v727 = vld.sshfl [vmem:[#allocation1] sm:$0xff pattern:$0x75316420]
        %v728 = vld.sshfl [vmem:[#allocation1 + $0x8] sm:$0xff pattern:$0x75316420]
        %v729 = vld.sshfl [vmem:[#allocation1 + $0x10] sm:$0xff pattern:$0x75316420]
        %730 = vrot.lane.b32.xlu0 %v717, 34
        %v731 = vpop.permute.xlu0 %730
        %732 = vrot.lane.b32.xlu0 %v718, 34
        %v733 = vpop.permute.xlu0 %732
        %734 = vrot.lane.b32.xlu0 %v719, 34
        %v735 = vpop.permute.xlu0 %734
        %736 = vrot.lane.b32.xlu0 %v720, 34
        %v737 = vpop.permute.xlu0 %736
        %738 = vrot.lane.b32.xlu0 %v721, 34
        %v739 = vpop.permute.xlu0 %738
        %740 = vrot.lane.b32.xlu0 %v722, 34
        %v741 = vpop.permute.xlu0 %740
        %742 = vrot.lane.b32.xlu0 %v723, 34
        %v743 = vpop.permute.xlu0 %742
        %744 = vrot.lane.b32.xlu0 %v724, 34
        %v745 = vpop.permute.xlu0 %744
        %746 = vrot.lane.b32.xlu0 %v727, 34
        %v747 = vpop.permute.xlu0 %746
        %748 = vrot.lane.b32.xlu0 %v728, 34
        %v749 = vpop.permute.xlu0 %748
        %750 = vrot.lane.b32.xlu0 %v729, 34
        %v751 = vpop.permute.xlu0 %750
        %vm752 = vcmask 277504
        %v753 = vsel %vm752, %v731, %v733
        %v754 = vsel %vm752, %v733, %v735
        %v755 = vsel %vm752, %v735, %v737
        %v756 = vsel %vm752, %v737, %v739
        %v757 = vsel %vm752, %v739, %v741
        %v758 = vsel %vm752, %v741, %v743
        %v759 = vsel %vm752, %v743, %v745
        %v760 = vsel %vm752, %v745, %v747
        %v761 = vsel %vm752, %v747, %v749
        %v762 = vsel %vm752, %v749, %v751
        %773 = vst [vmem:[#allocation3] sm:$0xf0] %v753
        %774 = vst [vmem:[#allocation3 + $0x8] sm:$0xf0] %v754
        %775 = vst [vmem:[#allocation3 + $0x10] sm:$0xf0] %v755
        %776 = vst [vmem:[#allocation3 + $0x18] sm:$0xf0] %v756
        %777 = vst [vmem:[#allocation3 + $0x20] sm:$0xf0] %v757
        %778 = vst [vmem:[#allocation3 + $0x28] sm:$0xf0] %v758
        %779 = vst [vmem:[#allocation3 + $0x30] sm:$0xf0] %v759
        %780 = vst [vmem:[#allocation3 + $0x38] sm:$0xf0] %v760
        %781 = vst [vmem:[#allocation3 + $0x40] sm:$0xf0] %v761
        %782 = vst [vmem:[#allocation3 + $0x48] sm:$0xf0] %v762
        %v783 = vld [vmem:[#allocation4] sm:$0xff]
        %v784 = vld [vmem:[#allocation4 + $0x8] sm:$0xff]
        %v785 = vld [vmem:[#allocation4 + $0x10] sm:$0xff]
        %v786 = vld [vmem:[#allocation4 + $0x18] sm:$0xff]
        %v787 = vld [vmem:[#allocation4 + $0x20] sm:$0xff]
        %v788 = vld [vmem:[#allocation4 + $0x28] sm:$0xf]
        %795 = vst [vmem:[#allocation1] ss:$2 sm:$0xff] %v783
        %s796 = scalar_lea.vmem [#allocation1], 16
        %797 = vst [vmem:[%s796] ss:$2 sm:$0xff] %v784
        %s798 = scalar_lea.vmem [#allocation1], 32
        %799 = vst [vmem:[%s798] ss:$2 sm:$0xff] %v785
        %s800 = scalar_lea.vmem [#allocation1], 48
        %801 = vst [vmem:[%s800] ss:$2 sm:$0xff] %v786
        %v802 = vld.sshfl [vmem:[#allocation1] sm:$0xff pattern:$0x75316420]
        %v803 = vld.sshfl [vmem:[#allocation1 + $0x8] sm:$0xff pattern:$0x75316420]
        %v804 = vld.sshfl [vmem:[#allocation1 + $0x10] sm:$0xff pattern:$0x75316420]
        %v805 = vld.sshfl [vmem:[#allocation1 + $0x18] sm:$0xff pattern:$0x75316420]
        %v806 = vld.sshfl [vmem:[#allocation1 + $0x20] sm:$0xff pattern:$0x75316420]
        %v807 = vld.sshfl [vmem:[#allocation1 + $0x28] sm:$0xff pattern:$0x75316420]
        %v808 = vld.sshfl [vmem:[#allocation1 + $0x30] sm:$0xff pattern:$0x75316420]
        %v809 = vld.sshfl [vmem:[#allocation1 + $0x38] sm:$0xff pattern:$0x75316420]
        %810 = vst [vmem:[#allocation1] ss:$2 sm:$0xff] %v787
        %811 = vst [vmem:[%s796] ss:$2 sm:$0xff] %v788
        %v812 = vld.sshfl [vmem:[#allocation1] sm:$0xff pattern:$0x75316420]
        %v813 = vld.sshfl [vmem:[#allocation1 + $0x8] sm:$0xff pattern:$0x75316420]
        %v814 = vld.sshfl [vmem:[#allocation1 + $0x10] sm:$0xff pattern:$0x75316420]
        %815 = vrot.lane.b32.xlu0 %v802, 33
        %v816 = vpop.permute.xlu0 %815
        %817 = vrot.lane.b32.xlu0 %v803, 33
        %v818 = vpop.permute.xlu0 %817
        %819 = vrot.lane.b32.xlu0 %v804, 33
        %v820 = vpop.permute.xlu0 %819
        %821 = vrot.lane.b32.xlu0 %v805, 33
        %v822 = vpop.permute.xlu0 %821
        %823 = vrot.lane.b32.xlu0 %v806, 33
        %v824 = vpop.permute.xlu0 %823
        %825 = vrot.lane.b32.xlu0 %v807, 33
        %v826 = vpop.permute.xlu0 %825
        %827 = vrot.lane.b32.xlu0 %v808, 33
        %v828 = vpop.permute.xlu0 %827
        %829 = vrot.lane.b32.xlu0 %v809, 33
        %v830 = vpop.permute.xlu0 %829
        %831 = vrot.lane.b32.xlu0 %v812, 33
        %v832 = vpop.permute.xlu0 %831
        %833 = vrot.lane.b32.xlu0 %v813, 33
        %v834 = vpop.permute.xlu0 %833
        %835 = vrot.lane.b32.xlu0 %v814, 33
        %v836 = vpop.permute.xlu0 %835
        %vm837 = vcmask 269312
        %v838 = vsel %vm837, %v816, %v818
        %v839 = vsel %vm837, %v818, %v820
        %v840 = vsel %vm837, %v820, %v822
        %v841 = vsel %vm837, %v822, %v824
        %v842 = vsel %vm837, %v824, %v826
        %v843 = vsel %vm837, %v826, %v828
        %v844 = vsel %vm837, %v828, %v830
        %v845 = vsel %vm837, %v830, %v832
        %v846 = vsel %vm837, %v832, %v834
        %v847 = vsel %vm837, %v834, %v836
        %858 = vst [vmem:[#allocation3 + $0x50] sm:$0xf] %v838
        %859 = vst [vmem:[#allocation3 + $0x58] sm:$0xf] %v839
        %860 = vst [vmem:[#allocation3 + $0x60] sm:$0xf] %v840
        %861 = vst [vmem:[#allocation3 + $0x68] sm:$0xf] %v841
        %862 = vst [vmem:[#allocation3 + $0x70] sm:$0xf] %v842
        %863 = vst [vmem:[#allocation3 + $0x78] sm:$0xf] %v843
        %864 = vst [vmem:[#allocation3 + $0x80] sm:$0xf] %v844
        %865 = vst [vmem:[#allocation3 + $0x88] sm:$0xf] %v845
        %866 = vst [vmem:[#allocation3 + $0x90] sm:$0xf] %v846
        %867 = vst [vmem:[#allocation3 + $0x98] sm:$0xf] %v847
        %v868 = vld [vmem:[#allocation4] sm:$0xff]
        %v869 = vld [vmem:[#allocation4 + $0x8] sm:$0xff]
        %v870 = vld [vmem:[#allocation4 + $0x10] sm:$0xff]
        %v871 = vld [vmem:[#allocation4 + $0x18] sm:$0xff]
        %v872 = vld [vmem:[#allocation4 + $0x20] sm:$0xff]
        %v873 = vld [vmem:[#allocation4 + $0x28] sm:$0xf]
        %s880 = scalar_lea.vmem [#allocation1], 1
        %881 = vst [vmem:[%s880] ss:$2 sm:$0xff] %v868
        %s882 = scalar_lea.vmem [#allocation1], 17
        %883 = vst [vmem:[%s882] ss:$2 sm:$0xff] %v869
        %s884 = scalar_lea.vmem [#allocation1], 33
        %885 = vst [vmem:[%s884] ss:$2 sm:$0xff] %v870
        %s886 = scalar_lea.vmem [#allocation1], 49
        %887 = vst [vmem:[%s886] ss:$2 sm:$0xff] %v871
        %v888 = vld.sshfl [vmem:[#allocation1] sm:$0xff pattern:$0x75316420]
        %v889 = vld.sshfl [vmem:[#allocation1 + $0x8] sm:$0xff pattern:$0x75316420]
        %v890 = vld.sshfl [vmem:[#allocation1 + $0x10] sm:$0xff pattern:$0x75316420]
        %v891 = vld.sshfl [vmem:[#allocation1 + $0x18] sm:$0xff pattern:$0x75316420]
        %v892 = vld.sshfl [vmem:[#allocation1 + $0x20] sm:$0xff pattern:$0x75316420]
        %v893 = vld.sshfl [vmem:[#allocation1 + $0x28] sm:$0xff pattern:$0x75316420]
        %v894 = vld.sshfl [vmem:[#allocation1 + $0x30] sm:$0xff pattern:$0x75316420]
        %v895 = vld.sshfl [vmem:[#allocation1 + $0x38] sm:$0xff pattern:$0x75316420]
        %896 = vst [vmem:[%s880] ss:$2 sm:$0xff] %v872
        %897 = vst [vmem:[%s882] ss:$2 sm:$0xff] %v873
        %v898 = vld.sshfl [vmem:[#allocation1] sm:$0xff pattern:$0x75316420]
        %v899 = vld.sshfl [vmem:[#allocation1 + $0x8] sm:$0xff pattern:$0x75316420]
        %v900 = vld.sshfl [vmem:[#allocation1 + $0x10] sm:$0xff pattern:$0x75316420]
        %901 = vrot.lane.b32.xlu0 %v888, 1
        %v902 = vpop.permute.xlu0 %901
        %903 = vrot.lane.b32.xlu0 %v889, 1
        %v904 = vpop.permute.xlu0 %903
        %905 = vrot.lane.b32.xlu0 %v890, 1
        %v906 = vpop.permute.xlu0 %905
        %907 = vrot.lane.b32.xlu0 %v891, 1
        %v908 = vpop.permute.xlu0 %907
        %909 = vrot.lane.b32.xlu0 %v892, 1
        %v910 = vpop.permute.xlu0 %909
        %911 = vrot.lane.b32.xlu0 %v893, 1
        %v912 = vpop.permute.xlu0 %911
        %913 = vrot.lane.b32.xlu0 %v894, 1
        %v914 = vpop.permute.xlu0 %913
        %915 = vrot.lane.b32.xlu0 %v895, 1
        %v916 = vpop.permute.xlu0 %915
        %917 = vrot.lane.b32.xlu0 %v898, 1
        %v918 = vpop.permute.xlu0 %917
        %919 = vrot.lane.b32.xlu0 %v899, 1
        %v920 = vpop.permute.xlu0 %919
        %921 = vrot.lane.b32.xlu0 %v900, 1
        %v922 = vpop.permute.xlu0 %921
        %vm923 = vcmask 7168
        %v924 = vsel %vm923, %v902, %v904
        %v925 = vsel %vm923, %v904, %v906
        %v926 = vsel %vm923, %v906, %v908
        %v927 = vsel %vm923, %v908, %v910
        %v928 = vsel %vm923, %v910, %v912
        %v929 = vsel %vm923, %v912, %v914
        %v930 = vsel %vm923, %v914, %v916
        %v931 = vsel %vm923, %v916, %v918
        %v932 = vsel %vm923, %v918, %v920
        %v933 = vsel %vm923, %v920, %v922
        %944 = vst [vmem:[#allocation3 + $0x50] sm:$0xf0] %v924
        %945 = vst [vmem:[#allocation3 + $0x58] sm:$0xf0] %v925
        %946 = vst [vmem:[#allocation3 + $0x60] sm:$0xf0] %v926
        %947 = vst [vmem:[#allocation3 + $0x68] sm:$0xf0] %v927
        %948 = vst [vmem:[#allocation3 + $0x70] sm:$0xf0] %v928
        %949 = vst [vmem:[#allocation3 + $0x78] sm:$0xf0] %v929
        %950 = vst [vmem:[#allocation3 + $0x80] sm:$0xf0] %v930
        %951 = vst [vmem:[#allocation3 + $0x88] sm:$0xf0] %v931
        %952 = vst [vmem:[#allocation3 + $0x90] sm:$0xf0] %v932
        %953 = vst [vmem:[#allocation3 + $0x98] sm:$0xf0] %v933
        %v954 = vld [vmem:[#allocation4 + $0x4] sm:$0xff]
        %v955 = vld [vmem:[#allocation4 + $0xc] sm:$0xff]
        %v956 = vld [vmem:[#allocation4 + $0x14] sm:$0xff]
        %v957 = vld [vmem:[#allocation4 + $0x1c] sm:$0xff]
        %v958 = vld [vmem:[#allocation4 + $0x24] sm:$0xff]
        %964 = vst [vmem:[#allocation1] ss:$2 sm:$0xff] %v954
        %s965 = scalar_lea.vmem [#allocation1], 16
        %966 = vst [vmem:[%s965] ss:$2 sm:$0xff] %v955
        %s967 = scalar_lea.vmem [#allocation1], 32
        %968 = vst [vmem:[%s967] ss:$2 sm:$0xff] %v956
        %s969 = scalar_lea.vmem [#allocation1], 48
        %970 = vst [vmem:[%s969] ss:$2 sm:$0xff] %v957
        %v971 = vld.sshfl [vmem:[#allocation1] sm:$0xff pattern:$0x75316420]
        %v972 = vld.sshfl [vmem:[#allocation1 + $0x8] sm:$0xff pattern:$0x75316420]
        %v973 = vld.sshfl [vmem:[#allocation1 + $0x10] sm:$0xff pattern:$0x75316420]
        %v974 = vld.sshfl [vmem:[#allocation1 + $0x18] sm:$0xff pattern:$0x75316420]
        %v975 = vld.sshfl [vmem:[#allocation1 + $0x20] sm:$0xff pattern:$0x75316420]
        %v976 = vld.sshfl [vmem:[#allocation1 + $0x28] sm:$0xff pattern:$0x75316420]
        %v977 = vld.sshfl [vmem:[#allocation1 + $0x30] sm:$0xff pattern:$0x75316420]
        %v978 = vld.sshfl [vmem:[#allocation1 + $0x38] sm:$0xff pattern:$0x75316420]
        %979 = vst [vmem:[#allocation1] ss:$2 sm:$0xff] %v958
        %v980 = vld.sshfl [vmem:[#allocation1] sm:$0xff pattern:$0x75316420]
        %v981 = vld.sshfl [vmem:[#allocation1 + $0x8] sm:$0xff pattern:$0x75316420]
        %992 = vst [vmem:[#allocation3 + $0xa0] sm:$0xf] %v971
        %993 = vst [vmem:[#allocation3 + $0xa8] sm:$0xf] %v972
        %994 = vst [vmem:[#allocation3 + $0xb0] sm:$0xf] %v973
        %995 = vst [vmem:[#allocation3 + $0xb8] sm:$0xf] %v974
        %996 = vst [vmem:[#allocation3 + $0xc0] sm:$0xf] %v975
        %997 = vst [vmem:[#allocation3 + $0xc8] sm:$0xf] %v976
        %998 = vst [vmem:[#allocation3 + $0xd0] sm:$0xf] %v977
        %999 = vst [vmem:[#allocation3 + $0xd8] sm:$0xf] %v978
        %1000 = vst [vmem:[#allocation3 + $0xe0] sm:$0xf] %v980
        %1001 = vst [vmem:[#allocation3 + $0xe8] sm:$0xf] %v981
        %v1002 = vld [vmem:[#allocation4 + $0x4] sm:$0xff]
        %v1003 = vld [vmem:[#allocation4 + $0xc] sm:$0xff]
        %v1004 = vld [vmem:[#allocation4 + $0x14] sm:$0xff]
        %v1005 = vld [vmem:[#allocation4 + $0x1c] sm:$0xff]
        %v1006 = vld [vmem:[#allocation4 + $0x24] sm:$0xff]
        %v1007 = vld [vmem:[#allocation4 + $0x2c] sm:$0xf]
        %s1014 = scalar_lea.vmem [#allocation1], 1
        %1015 = vst [vmem:[%s1014] ss:$2 sm:$0xff] %v1002
        %s1016 = scalar_lea.vmem [#allocation1], 17
        %1017 = vst [vmem:[%s1016] ss:$2 sm:$0xff] %v1003
        %s1018 = scalar_lea.vmem [#allocation1], 33
        %1019 = vst [vmem:[%s1018] ss:$2 sm:$0xff] %v1004
        %s1020 = scalar_lea.vmem [#allocation1], 49
        %1021 = vst [vmem:[%s1020] ss:$2 sm:$0xff] %v1005
        %v1022 = vld.sshfl [vmem:[#allocation1] sm:$0xff pattern:$0x75316420]
        %v1023 = vld.sshfl [vmem:[#allocation1 + $0x8] sm:$0xff pattern:$0x75316420]
        %v1024 = vld.sshfl [vmem:[#allocation1 + $0x10] sm:$0xff pattern:$0x75316420]
        %v1025 = vld.sshfl [vmem:[#allocation1 + $0x18] sm:$0xff pattern:$0x75316420]
        %v1026 = vld.sshfl [vmem:[#allocation1 + $0x20] sm:$0xff pattern:$0x75316420]
        %v1027 = vld.sshfl [vmem:[#allocation1 + $0x28] sm:$0xff pattern:$0x75316420]
        %v1028 = vld.sshfl [vmem:[#allocation1 + $0x30] sm:$0xff pattern:$0x75316420]
        %v1029 = vld.sshfl [vmem:[#allocation1 + $0x38] sm:$0xff pattern:$0x75316420]
        %1030 = vst [vmem:[%s1014] ss:$2 sm:$0xff] %v1006
        %1031 = vst [vmem:[%s1016] ss:$2 sm:$0xff] %v1007
        %v1032 = vld.sshfl [vmem:[#allocation1] sm:$0xff pattern:$0x75316420]
        %v1033 = vld.sshfl [vmem:[#allocation1 + $0x8] sm:$0xff pattern:$0x75316420]
        %v1034 = vld.sshfl [vmem:[#allocation1 + $0x10] sm:$0xff pattern:$0x75316420]
        %1035 = vrot.lane.b32.xlu0 %v1022, 127
        %v1036 = vpop.permute.xlu0 %1035
        %1037 = vrot.lane.b32.xlu0 %v1023, 127
        %v1038 = vpop.permute.xlu0 %1037
        %1039 = vrot.lane.b32.xlu0 %v1024, 127
        %v1040 = vpop.permute.xlu0 %1039
        %1041 = vrot.lane.b32.xlu0 %v1025, 127
        %v1042 = vpop.permute.xlu0 %1041
        %1043 = vrot.lane.b32.xlu0 %v1026, 127
        %v1044 = vpop.permute.xlu0 %1043
        %1045 = vrot.lane.b32.xlu0 %v1027, 127
        %v1046 = vpop.permute.xlu0 %1045
        %1047 = vrot.lane.b32.xlu0 %v1028, 127
        %v1048 = vpop.permute.xlu0 %1047
        %1049 = vrot.lane.b32.xlu0 %v1029, 127
        %v1050 = vpop.permute.xlu0 %1049
        %1051 = vrot.lane.b32.xlu0 %v1032, 127
        %v1052 = vpop.permute.xlu0 %1051
        %1053 = vrot.lane.b32.xlu0 %v1033, 127
        %v1054 = vpop.permute.xlu0 %1053
        %1055 = vrot.lane.b32.xlu0 %v1034, 127
        %v1056 = vpop.permute.xlu0 %1055
        %vm1057 = vcmask 1039360
        %v1058 = vsel %vm1057, %v1036, %v1038
        %v1059 = vsel %vm1057, %v1038, %v1040
        %v1060 = vsel %vm1057, %v1040, %v1042
        %v1061 = vsel %vm1057, %v1042, %v1044
        %v1062 = vsel %vm1057, %v1044, %v1046
        %v1063 = vsel %vm1057, %v1046, %v1048
        %v1064 = vsel %vm1057, %v1048, %v1050
        %v1065 = vsel %vm1057, %v1050, %v1052
        %v1066 = vsel %vm1057, %v1052, %v1054
        %v1067 = vsel %vm1057, %v1054, %v1056
        %1078 = vst [vmem:[#allocation3 + $0xa0] sm:$0xf0] %v1058
        %1079 = vst [vmem:[#allocation3 + $0xa8] sm:$0xf0] %v1059
        %1080 = vst [vmem:[#allocation3 + $0xb0] sm:$0xf0] %v1060
        %1081 = vst [vmem:[#allocation3 + $0xb8] sm:$0xf0] %v1061
        %1082 = vst [vmem:[#allocation3 + $0xc0] sm:$0xf0] %v1062
        %1083 = vst [vmem:[#allocation3 + $0xc8] sm:$0xf0] %v1063
        %1084 = vst [vmem:[#allocation3 + $0xd0] sm:$0xf0] %v1064
        %1085 = vst [vmem:[#allocation3 + $0xd8] sm:$0xf0] %v1065
        %1086 = vst [vmem:[#allocation3 + $0xe0] sm:$0xf0] %v1066
        %1087 = vst [vmem:[#allocation3 + $0xe8] sm:$0xf0] %v1067
        %v1088 = vld [vmem:[#allocation4 + $0x4] sm:$0xff]
        %v1089 = vld [vmem:[#allocation4 + $0xc] sm:$0xff]
        %v1090 = vld [vmem:[#allocation4 + $0x14] sm:$0xff]
        %v1091 = vld [vmem:[#allocation4 + $0x1c] sm:$0xff]
        %v1092 = vld [vmem:[#allocation4 + $0x24] sm:$0xff]
        %v1093 = vld [vmem:[#allocation4 + $0x2c] sm:$0xf]
        %1100 = vst [vmem:[#allocation1] ss:$2 sm:$0xff] %v1088
        %s1101 = scalar_lea.vmem [#allocation1], 16
        %1102 = vst [vmem:[%s1101] ss:$2 sm:$0xff] %v1089
        %s1103 = scalar_lea.vmem [#allocation1], 32
        %1104 = vst [vmem:[%s1103] ss:$2 sm:$0xff] %v1090
        %s1105 = scalar_lea.vmem [#allocation1], 48
        %1106 = vst [vmem:[%s1105] ss:$2 sm:$0xff] %v1091
        %v1107 = vld.sshfl [vmem:[#allocation1] sm:$0xff pattern:$0x75316420]
        %v1108 = vld.sshfl [vmem:[#allocation1 + $0x8] sm:$0xff pattern:$0x75316420]
        %v1109 = vld.sshfl [vmem:[#allocation1 + $0x10] sm:$0xff pattern:$0x75316420]
        %v1110 = vld.sshfl [vmem:[#allocation1 + $0x18] sm:$0xff pattern:$0x75316420]
        %v1111 = vld.sshfl [vmem:[#allocation1 + $0x20] sm:$0xff pattern:$0x75316420]
        %v1112 = vld.sshfl [vmem:[#allocation1 + $0x28] sm:$0xff pattern:$0x75316420]
        %v1113 = vld.sshfl [vmem:[#allocation1 + $0x30] sm:$0xff pattern:$0x75316420]
        %v1114 = vld.sshfl [vmem:[#allocation1 + $0x38] sm:$0xff pattern:$0x75316420]
        %1115 = vst [vmem:[#allocation1] ss:$2 sm:$0xff] %v1092
        %1116 = vst [vmem:[%s1101] ss:$2 sm:$0xff] %v1093
        %v1117 = vld.sshfl [vmem:[#allocation1] sm:$0xff pattern:$0x75316420]
        %v1118 = vld.sshfl [vmem:[#allocation1 + $0x8] sm:$0xff pattern:$0x75316420]
        %v1119 = vld.sshfl [vmem:[#allocation1 + $0x10] sm:$0xff pattern:$0x75316420]
        %1120 = vrot.lane.b32.xlu0 %v1107, 95
        %v1121 = vpop.permute.xlu0 %1120
        %1122 = vrot.lane.b32.xlu0 %v1108, 95
        %v1123 = vpop.permute.xlu0 %1122
        %1124 = vrot.lane.b32.xlu0 %v1109, 95
        %v1125 = vpop.permute.xlu0 %1124
        %1126 = vrot.lane.b32.xlu0 %v1110, 95
        %v1127 = vpop.permute.xlu0 %1126
        %1128 = vrot.lane.b32.xlu0 %v1111, 95
        %v1129 = vpop.permute.xlu0 %1128
        %1130 = vrot.lane.b32.xlu0 %v1112, 95
        %v1131 = vpop.permute.xlu0 %1130
        %1132 = vrot.lane.b32.xlu0 %v1113, 95
        %v1133 = vpop.permute.xlu0 %1132
        %1134 = vrot.lane.b32.xlu0 %v1114, 95
        %v1135 = vpop.permute.xlu0 %1134
        %1136 = vrot.lane.b32.xlu0 %v1117, 95
        %v1137 = vpop.permute.xlu0 %1136
        %1138 = vrot.lane.b32.xlu0 %v1118, 95
        %v1139 = vpop.permute.xlu0 %1138
        %1140 = vrot.lane.b32.xlu0 %v1119, 95
        %v1141 = vpop.permute.xlu0 %1140
        %vm1142 = vcmask 777216
        %v1143 = vsel %vm1142, %v1121, %v1123
        %v1144 = vsel %vm1142, %v1123, %v1125
        %v1145 = vsel %vm1142, %v1125, %v1127
        %v1146 = vsel %vm1142, %v1127, %v1129
        %v1147 = vsel %vm1142, %v1129, %v1131
        %v1148 = vsel %vm1142, %v1131, %v1133
        %v1149 = vsel %vm1142, %v1133, %v1135
        %v1150 = vsel %vm1142, %v1135, %v1137
        %v1151 = vsel %vm1142, %v1137, %v1139
        %v1152 = vsel %vm1142, %v1139, %v1141
        %1163 = vst [vmem:[#allocation3 + $0xf0] sm:$0xf] %v1143
        %1164 = vst [vmem:[#allocation3 + $0xf8] sm:$0xf] %v1144
        %1165 = vst [vmem:[#allocation3 + $0x100] sm:$0xf] %v1145
        %1166 = vst [vmem:[#allocation3 + $0x108] sm:$0xf] %v1146
        %1167 = vst [vmem:[#allocation3 + $0x110] sm:$0xf] %v1147
        %1168 = vst [vmem:[#allocation3 + $0x118] sm:$0xf] %v1148
        %1169 = vst [vmem:[#allocation3 + $0x120] sm:$0xf] %v1149
        %1170 = vst [vmem:[#allocation3 + $0x128] sm:$0xf] %v1150
        %1171 = vst [vmem:[#allocation3 + $0x130] sm:$0xf] %v1151
        %1172 = vst [vmem:[#allocation3 + $0x138] sm:$0xf] %v1152
        %v1173 = vld [vmem:[#allocation4 + $0x4] sm:$0xff]
        %v1174 = vld [vmem:[#allocation4 + $0xc] sm:$0xff]
        %v1175 = vld [vmem:[#allocation4 + $0x14] sm:$0xff]
        %v1176 = vld [vmem:[#allocation4 + $0x1c] sm:$0xff]
        %v1177 = vld [vmem:[#allocation4 + $0x24] sm:$0xff]
        %v1178 = vld [vmem:[#allocation4 + $0x2c] sm:$0xf]
        %s1185 = scalar_lea.vmem [#allocation1], 1
        %1186 = vst [vmem:[%s1185] ss:$2 sm:$0xff] %v1173
        %s1187 = scalar_lea.vmem [#allocation1], 17
        %1188 = vst [vmem:[%s1187] ss:$2 sm:$0xff] %v1174
        %s1189 = scalar_lea.vmem [#allocation1], 33
        %1190 = vst [vmem:[%s1189] ss:$2 sm:$0xff] %v1175
        %s1191 = scalar_lea.vmem [#allocation1], 49
        %1192 = vst [vmem:[%s1191] ss:$2 sm:$0xff] %v1176
        %v1193 = vld.sshfl [vmem:[#allocation1] sm:$0xff pattern:$0x75316420]
        %v1194 = vld.sshfl [vmem:[#allocation1 + $0x8] sm:$0xff pattern:$0x75316420]
        %v1195 = vld.sshfl [vmem:[#allocation1 + $0x10] sm:$0xff pattern:$0x75316420]
        %v1196 = vld.sshfl [vmem:[#allocation1 + $0x18] sm:$0xff pattern:$0x75316420]
        %v1197 = vld.sshfl [vmem:[#allocation1 + $0x20] sm:$0xff pattern:$0x75316420]
        %v1198 = vld.sshfl [vmem:[#allocation1 + $0x28] sm:$0xff pattern:$0x75316420]
        %v1199 = vld.sshfl [vmem:[#allocation1 + $0x30] sm:$0xff pattern:$0x75316420]
        %v1200 = vld.sshfl [vmem:[#allocation1 + $0x38] sm:$0xff pattern:$0x75316420]
        %1201 = vst [vmem:[%s1185] ss:$2 sm:$0xff] %v1177
        %1202 = vst [vmem:[%s1187] ss:$2 sm:$0xff] %v1178
        %v1203 = vld.sshfl [vmem:[#allocation1] sm:$0xff pattern:$0x75316420]
        %v1204 = vld.sshfl [vmem:[#allocation1 + $0x8] sm:$0xff pattern:$0x75316420]
        %v1205 = vld.sshfl [vmem:[#allocation1 + $0x10] sm:$0xff pattern:$0x75316420]
        %1206 = vrot.lane.b32.xlu0 %v1193, 94
        %v1207 = vpop.permute.xlu0 %1206
        %1208 = vrot.lane.b32.xlu0 %v1194, 94
        %v1209 = vpop.permute.xlu0 %1208
        %1210 = vrot.lane.b32.xlu0 %v1195, 94
        %v1211 = vpop.permute.xlu0 %1210
        %1212 = vrot.lane.b32.xlu0 %v1196, 94
        %v1213 = vpop.permute.xlu0 %1212
        %1214 = vrot.lane.b32.xlu0 %v1197, 94
        %v1215 = vpop.permute.xlu0 %1214
        %1216 = vrot.lane.b32.xlu0 %v1198, 94
        %v1217 = vpop.permute.xlu0 %1216
        %1218 = vrot.lane.b32.xlu0 %v1199, 94
        %v1219 = vpop.permute.xlu0 %1218
        %1220 = vrot.lane.b32.xlu0 %v1200, 94
        %v1221 = vpop.permute.xlu0 %1220
        %1222 = vrot.lane.b32.xlu0 %v1203, 94
        %v1223 = vpop.permute.xlu0 %1222
        %1224 = vrot.lane.b32.xlu0 %v1204, 94
        %v1225 = vpop.permute.xlu0 %1224
        %1226 = vrot.lane.b32.xlu0 %v1205, 94
        %v1227 = vpop.permute.xlu0 %1226
        %vm1228 = vcmask 769024
        %v1229 = vsel %vm1228, %v1207, %v1209
        %v1230 = vsel %vm1228, %v1209, %v1211
        %v1231 = vsel %vm1228, %v1211, %v1213
        %v1232 = vsel %vm1228, %v1213, %v1215
        %v1233 = vsel %vm1228, %v1215, %v1217
        %v1234 = vsel %vm1228, %v1217, %v1219
        %v1235 = vsel %vm1228, %v1219, %v1221
        %v1236 = vsel %vm1228, %v1221, %v1223
        %v1237 = vsel %vm1228, %v1223, %v1225
        %v1238 = vsel %vm1228, %v1225, %v1227
        %1249 = vst [vmem:[#allocation3 + $0xf0] sm:$0xf0] %v1229
        %1250 = vst [vmem:[#allocation3 + $0xf8] sm:$0xf0] %v1230
        %1251 = vst [vmem:[#allocation3 + $0x100] sm:$0xf0] %v1231
        %1252 = vst [vmem:[#allocation3 + $0x108] sm:$0xf0] %v1232
        %1253 = vst [vmem:[#allocation3 + $0x110] sm:$0xf0] %v1233
        %1254 = vst [vmem:[#allocation3 + $0x118] sm:$0xf0] %v1234
        %1255 = vst [vmem:[#allocation3 + $0x120] sm:$0xf0] %v1235
        %1256 = vst [vmem:[#allocation3 + $0x128] sm:$0xf0] %v1236
        %1257 = vst [vmem:[#allocation3 + $0x130] sm:$0xf0] %v1237
        %1258 = vst [vmem:[#allocation3 + $0x138] sm:$0xf0] %v1238
        %v1259 = vld [vmem:[#allocation4 + $0x4] sm:$0xff]
        %v1260 = vld [vmem:[#allocation4 + $0xc] sm:$0xff]
        %v1261 = vld [vmem:[#allocation4 + $0x14] sm:$0xff]
        %v1262 = vld [vmem:[#allocation4 + $0x1c] sm:$0xff]
        %v1263 = vld [vmem:[#allocation4 + $0x24] sm:$0xff]
        %v1264 = vld [vmem:[#allocation4 + $0x2c] sm:$0xf]
        %1271 = vst [vmem:[#allocation1] ss:$2 sm:$0xff] %v1259
        %s1272 = scalar_lea.vmem [#allocation1], 16
        %1273 = vst [vmem:[%s1272] ss:$2 sm:$0xff] %v1260
        %s1274 = scalar_lea.vmem [#allocation1], 32
        %1275 = vst [vmem:[%s1274] ss:$2 sm:$0xff] %v1261
        %s1276 = scalar_lea.vmem [#allocation1], 48
        %1277 = vst [vmem:[%s1276] ss:$2 sm:$0xff] %v1262
        %v1278 = vld.sshfl [vmem:[#allocation1] sm:$0xff pattern:$0x75316420]
        %v1279 = vld.sshfl [vmem:[#allocation1 + $0x8] sm:$0xff pattern:$0x75316420]
        %v1280 = vld.sshfl [vmem:[#allocation1 + $0x10] sm:$0xff pattern:$0x75316420]
        %v1281 = vld.sshfl [vmem:[#allocation1 + $0x18] sm:$0xff pattern:$0x75316420]
        %v1282 = vld.sshfl [vmem:[#allocation1 + $0x20] sm:$0xff pattern:$0x75316420]
        %v1283 = vld.sshfl [vmem:[#allocation1 + $0x28] sm:$0xff pattern:$0x75316420]
        %v1284 = vld.sshfl [vmem:[#allocation1 + $0x30] sm:$0xff pattern:$0x75316420]
        %v1285 = vld.sshfl [vmem:[#allocation1 + $0x38] sm:$0xff pattern:$0x75316420]
        %1286 = vst [vmem:[#allocation1] ss:$2 sm:$0xff] %v1263
        %1287 = vst [vmem:[%s1272] ss:$2 sm:$0xff] %v1264
        %v1288 = vld.sshfl [vmem:[#allocation1] sm:$0xff pattern:$0x75316420]
        %v1289 = vld.sshfl [vmem:[#allocation1 + $0x8] sm:$0xff pattern:$0x75316420]
        %v1290 = vld.sshfl [vmem:[#allocation1 + $0x10] sm:$0xff pattern:$0x75316420]
        %1291 = vrot.lane.b32.xlu0 %v1278, 93
        %v1292 = vpop.permute.xlu0 %1291
        %1293 = vrot.lane.b32.xlu0 %v1279, 93
        %v1294 = vpop.permute.xlu0 %1293
        %1295 = vrot.lane.b32.xlu0 %v1280, 93
        %v1296 = vpop.permute.xlu0 %1295
        %1297 = vrot.lane.b32.xlu0 %v1281, 93
        %v1298 = vpop.permute.xlu0 %1297
        %1299 = vrot.lane.b32.xlu0 %v1282, 93
        %v1300 = vpop.permute.xlu0 %1299
        %1301 = vrot.lane.b32.xlu0 %v1283, 93
        %v1302 = vpop.permute.xlu0 %1301
        %1303 = vrot.lane.b32.xlu0 %v1284, 93
        %v1304 = vpop.permute.xlu0 %1303
        %1305 = vrot.lane.b32.xlu0 %v1285, 93
        %v1306 = vpop.permute.xlu0 %1305
        %1307 = vrot.lane.b32.xlu0 %v1288, 93
        %v1308 = vpop.permute.xlu0 %1307
        %1309 = vrot.lane.b32.xlu0 %v1289, 93
        %v1310 = vpop.permute.xlu0 %1309
        %1311 = vrot.lane.b32.xlu0 %v1290, 93
        %v1312 = vpop.permute.xlu0 %1311
        %vm1313 = vcmask 760832
        %v1314 = vsel %vm1313, %v1292, %v1294
        %v1315 = vsel %vm1313, %v1294, %v1296
        %v1316 = vsel %vm1313, %v1296, %v1298
        %v1317 = vsel %vm1313, %v1298, %v1300
        %v1318 = vsel %vm1313, %v1300, %v1302
        %v1319 = vsel %vm1313, %v1302, %v1304
        %v1320 = vsel %vm1313, %v1304, %v1306
        %v1321 = vsel %vm1313, %v1306, %v1308
        %v1322 = vsel %vm1313, %v1308, %v1310
        %v1323 = vsel %vm1313, %v1310, %v1312
        %1334 = vst [vmem:[#allocation3 + $0x140] sm:$0xf] %v1314
        %1335 = vst [vmem:[#allocation3 + $0x148] sm:$0xf] %v1315
        %1336 = vst [vmem:[#allocation3 + $0x150] sm:$0xf] %v1316
        %1337 = vst [vmem:[#allocation3 + $0x158] sm:$0xf] %v1317
        %1338 = vst [vmem:[#allocation3 + $0x160] sm:$0xf] %v1318
        %1339 = vst [vmem:[#allocation3 + $0x168] sm:$0xf] %v1319
        %1340 = vst [vmem:[#allocation3 + $0x170] sm:$0xf] %v1320
        %1341 = vst [vmem:[#allocation3 + $0x178] sm:$0xf] %v1321
        %1342 = vst [vmem:[#allocation3 + $0x180] sm:$0xf] %v1322
        %1343 = vst [vmem:[#allocation3 + $0x188] sm:$0xf] %v1323
        %v1344 = vld [vmem:[%s5] sm:$0xf]
        %v1345 = vld [vmem:[#allocation3] sm:$0xff]
        %v1346 = vld [vmem:[#allocation3 + $0x8] sm:$0xff]
        %v1347 = vld [vmem:[#allocation3 + $0x10] sm:$0xff]
        %v1348 = vld [vmem:[#allocation3 + $0x18] sm:$0xff]
        %v1349 = vld [vmem:[#allocation3 + $0x20] sm:$0xff]
        %v1350 = vld [vmem:[#allocation3 + $0x28] sm:$0xff]
        %v1351 = vld [vmem:[#allocation3 + $0x30] sm:$0xff]
        %v1352 = vld [vmem:[#allocation3 + $0x38] sm:$0xff]
        %v1353 = vld [vmem:[#allocation3 + $0x40] sm:$0xff]
        %v1354 = vld [vmem:[#allocation3 + $0x48] sm:$0xff]
        %v1355 = vld [vmem:[#allocation3 + $0x50] sm:$0xff]
        %v1356 = vld [vmem:[#allocation3 + $0x58] sm:$0xff]
        %v1357 = vld [vmem:[#allocation3 + $0x60] sm:$0xff]
        %v1358 = vld [vmem:[#allocation3 + $0x68] sm:$0xff]
        %v1359 = vld [vmem:[#allocation3 + $0x70] sm:$0xff]
        %v1360 = vld [vmem:[#allocation3 + $0x78] sm:$0xff]
        %v1361 = vld [vmem:[#allocation3 + $0x80] sm:$0xff]
        %v1362 = vld [vmem:[#allocation3 + $0x88] sm:$0xff]
        %v1363 = vld [vmem:[#allocation3 + $0x90] sm:$0xff]
        %v1364 = vld [vmem:[#allocation3 + $0x98] sm:$0xff]
        %v1365 = vld [vmem:[#allocation3 + $0xa0] sm:$0xff]
        %v1366 = vld [vmem:[#allocation3 + $0xa8] sm:$0xff]
        %v1367 = vld [vmem:[#allocation3 + $0xb0] sm:$0xff]
        %v1368 = vld [vmem:[#allocation3 + $0xb8] sm:$0xff]
        %v1369 = vld [vmem:[#allocation3 + $0xc0] sm:$0xff]
        %v1370 = vld [vmem:[#allocation3 + $0xc8] sm:$0xff]
        %v1371 = vld [vmem:[#allocation3 + $0xd0] sm:$0xff]
        %v1372 = vld [vmem:[#allocation3 + $0xd8] sm:$0xff]
        %v1373 = vld [vmem:[#allocation3 + $0xe0] sm:$0xff]
        %v1374 = vld [vmem:[#allocation3 + $0xe8] sm:$0xff]
        %v1375 = vld [vmem:[#allocation3 + $0xf0] sm:$0xff]
        %v1376 = vld [vmem:[#allocation3 + $0xf8] sm:$0xff]
        %v1377 = vld [vmem:[#allocation3 + $0x100] sm:$0xff]
        %v1378 = vld [vmem:[#allocation3 + $0x108] sm:$0xff]
        %v1379 = vld [vmem:[#allocation3 + $0x110] sm:$0xff]
        %v1380 = vld [vmem:[#allocation3 + $0x118] sm:$0xff]
        %v1381 = vld [vmem:[#allocation3 + $0x120] sm:$0xff]
        %v1382 = vld [vmem:[#allocation3 + $0x128] sm:$0xff]
        %v1383 = vld [vmem:[#allocation3 + $0x130] sm:$0xff]
        %v1384 = vld [vmem:[#allocation3 + $0x138] sm:$0xff]
        %v1385 = vld [vmem:[#allocation3 + $0x140] sm:$0xf]
        %v1386 = vld [vmem:[#allocation3 + $0x148] sm:$0xf]
        %v1387 = vld [vmem:[#allocation3 + $0x150] sm:$0xf]
        %v1388 = vld [vmem:[#allocation3 + $0x158] sm:$0xf]
        %v1389 = vld [vmem:[#allocation3 + $0x160] sm:$0xf]
        %v1390 = vld [vmem:[#allocation3 + $0x168] sm:$0xf]
        %v1391 = vld [vmem:[#allocation3 + $0x170] sm:$0xf]
        %v1392 = vld [vmem:[#allocation3 + $0x178] sm:$0xf]
        %v1393 = vld [vmem:[#allocation3 + $0x180] sm:$0xf]
        %v1394 = vld [vmem:[#allocation3 + $0x188] sm:$0xf]
        %v1395 = vld [vmem:[%s6] sm:$0xf]
        %1397 = vset.pattern.permute.xlu0 0
        %1398 = vperm.xlu0 %1397, %v1395
        %v1399 = vpop.permute.xlu0 %1398
        %vm1401 = vcmask 293888
        %v1403 = vsel %vm1401, %v1344, 0
        %v1406 = vsel %vm591, %v1385, 0
        %v1409 = vsel %vm591, %v1386, 0
        %v1412 = vsel %vm591, %v1387, 0
        %v1415 = vsel %vm591, %v1388, 0
        %v1418 = vsel %vm591, %v1389, 0
        %v1421 = vsel %vm591, %v1390, 0
        %v1424 = vsel %vm591, %v1391, 0
        %v1427 = vsel %vm591, %v1392, 0
        %v1430 = vsel %vm591, %v1393, 0
        %v1433 = vsel %vm591, %v1394, 0
        %1435 = vmatpush.msra.mxu0 0.0
        %1436 = vmatpush.msra.mxu0 0.0
        %1437 = vmatpush.msra.mxu0 0.0
        %1438 = vmatpush.msra.mxu0 0.0
        %1439 = vmatpush.msra.mxu0 0.0
        %1440 = vmatpush.msra.mxu0 0.0
        %1441 = vmatpush.msra.mxu0 0.0
        %1442 = vmatpush.msra.mxu0 0.0
        %1443 = vmatpush.msra.mxu0 0.0
        %1444 = vmatpush.msra.mxu0 0.0
        %1445 = vmatpush.msra.mxu0 0.0
        %1446 = vmatpush.msra.mxu0 %v1406
        %1447 = vmatpush.msra.mxu0 %v1375
        %1448 = vmatpush.msra.mxu0 %v1365
        %1449 = vmatpush.msra.mxu0 %v1355
        %1450 = vmatpush.msra.mxu0 %v1345
        %1451 = vmatmul.f32.gmra.mxu0 %v1403
        %v1452 = vpop.f32.mrf.mxu0
        %v1453 = vadd.f32 %v1399, %v1452
        %1454 = vdwg.mxu0
        %1455 = vmatpush.msra.mxu0 0.0
        %1456 = vmatpush.msra.mxu0 0.0
        %1457 = vmatpush.msra.mxu0 0.0
        %1458 = vmatpush.msra.mxu0 0.0
        %1459 = vmatpush.msra.mxu0 0.0
        %1460 = vmatpush.msra.mxu0 0.0
        %1461 = vmatpush.msra.mxu0 0.0
        %1462 = vmatpush.msra.mxu0 0.0
        %1463 = vmatpush.msra.mxu0 0.0
        %1464 = vmatpush.msra.mxu0 0.0
        %1465 = vmatpush.msra.mxu0 0.0
        %1466 = vmatpush.msra.mxu0 %v1409
        %1467 = vmatpush.msra.mxu0 %v1376
        %1468 = vmatpush.msra.mxu0 %v1366
        %1469 = vmatpush.msra.mxu0 %v1356
        %1470 = vmatpush.msra.mxu0 %v1346
        %1471 = vmatmul.f32.gmra.mxu0 %v1403
        %v1472 = vpop.f32.mrf.mxu0
        %v1473 = vadd.f32 %v1399, %v1472
        %1474 = vdwg.mxu0
        %1475 = vmatpush.msra.mxu0 0.0
        %1476 = vmatpush.msra.mxu0 0.0
        %1477 = vmatpush.msra.mxu0 0.0
        %1478 = vmatpush.msra.mxu0 0.0
        %1479 = vmatpush.msra.mxu0 0.0
        %1480 = vmatpush.msra.mxu0 0.0
        %1481 = vmatpush.msra.mxu0 0.0
        %1482 = vmatpush.msra.mxu0 0.0
        %1483 = vmatpush.msra.mxu0 0.0
        %1484 = vmatpush.msra.mxu0 0.0
        %1485 = vmatpush.msra.mxu0 0.0
        %1486 = vmatpush.msra.mxu0 %v1412
        %1487 = vmatpush.msra.mxu0 %v1377
        %1488 = vmatpush.msra.mxu0 %v1367
        %1489 = vmatpush.msra.mxu0 %v1357
        %1490 = vmatpush.msra.mxu0 %v1347
        %1491 = vmatmul.f32.gmra.mxu0 %v1403
        %v1492 = vpop.f32.mrf.mxu0
        %v1493 = vadd.f32 %v1399, %v1492
        %1494 = vdwg.mxu0
        %1495 = vmatpush.msra.mxu0 0.0
        %1496 = vmatpush.msra.mxu0 0.0
        %1497 = vmatpush.msra.mxu0 0.0
        %1498 = vmatpush.msra.mxu0 0.0
        %1499 = vmatpush.msra.mxu0 0.0
        %1500 = vmatpush.msra.mxu0 0.0
        %1501 = vmatpush.msra.mxu0 0.0
        %1502 = vmatpush.msra.mxu0 0.0
        %1503 = vmatpush.msra.mxu0 0.0
        %1504 = vmatpush.msra.mxu0 0.0
        %1505 = vmatpush.msra.mxu0 0.0
        %1506 = vmatpush.msra.mxu0 %v1415
        %1507 = vmatpush.msra.mxu0 %v1378
        %1508 = vmatpush.msra.mxu0 %v1368
        %1509 = vmatpush.msra.mxu0 %v1358
        %1510 = vmatpush.msra.mxu0 %v1348
        %1511 = vmatmul.f32.gmra.mxu0 %v1403
        %v1512 = vpop.f32.mrf.mxu0
        %v1513 = vadd.f32 %v1399, %v1512
        %1514 = vdwg.mxu0
        %1515 = vmatpush.msra.mxu0 0.0
        %1516 = vmatpush.msra.mxu0 0.0
        %1517 = vmatpush.msra.mxu0 0.0
        %1518 = vmatpush.msra.mxu0 0.0
        %1519 = vmatpush.msra.mxu0 0.0
        %1520 = vmatpush.msra.mxu0 0.0
        %1521 = vmatpush.msra.mxu0 0.0
        %1522 = vmatpush.msra.mxu0 0.0
        %1523 = vmatpush.msra.mxu0 0.0
        %1524 = vmatpush.msra.mxu0 0.0
        %1525 = vmatpush.msra.mxu0 0.0
        %1526 = vmatpush.msra.mxu0 %v1418
        %1527 = vmatpush.msra.mxu0 %v1379
        %1528 = vmatpush.msra.mxu0 %v1369
        %1529 = vmatpush.msra.mxu0 %v1359
        %1530 = vmatpush.msra.mxu0 %v1349
        %1531 = vmatmul.f32.gmra.mxu0 %v1403
        %v1532 = vpop.f32.mrf.mxu0
        %v1533 = vadd.f32 %v1399, %v1532
        %1534 = vdwg.mxu0
        %1535 = vmatpush.msra.mxu0 0.0
        %1536 = vmatpush.msra.mxu0 0.0
        %1537 = vmatpush.msra.mxu0 0.0
        %1538 = vmatpush.msra.mxu0 0.0
        %1539 = vmatpush.msra.mxu0 0.0
        %1540 = vmatpush.msra.mxu0 0.0
        %1541 = vmatpush.msra.mxu0 0.0
        %1542 = vmatpush.msra.mxu0 0.0
        %1543 = vmatpush.msra.mxu0 0.0
        %1544 = vmatpush.msra.mxu0 0.0
        %1545 = vmatpush.msra.mxu0 0.0
        %1546 = vmatpush.msra.mxu0 %v1421
        %1547 = vmatpush.msra.mxu0 %v1380
        %1548 = vmatpush.msra.mxu0 %v1370
        %1549 = vmatpush.msra.mxu0 %v1360
        %1550 = vmatpush.msra.mxu0 %v1350
        %1551 = vmatmul.f32.gmra.mxu0 %v1403
        %v1552 = vpop.f32.mrf.mxu0
        %v1553 = vadd.f32 %v1399, %v1552
        %1554 = vdwg.mxu0
        %1555 = vmatpush.msra.mxu0 0.0
        %1556 = vmatpush.msra.mxu0 0.0
        %1557 = vmatpush.msra.mxu0 0.0
        %1558 = vmatpush.msra.mxu0 0.0
        %1559 = vmatpush.msra.mxu0 0.0
        %1560 = vmatpush.msra.mxu0 0.0
        %1561 = vmatpush.msra.mxu0 0.0
        %1562 = vmatpush.msra.mxu0 0.0
        %1563 = vmatpush.msra.mxu0 0.0
        %1564 = vmatpush.msra.mxu0 0.0
        %1565 = vmatpush.msra.mxu0 0.0
        %1566 = vmatpush.msra.mxu0 %v1424
        %1567 = vmatpush.msra.mxu0 %v1381
        %1568 = vmatpush.msra.mxu0 %v1371
        %1569 = vmatpush.msra.mxu0 %v1361
        %1570 = vmatpush.msra.mxu0 %v1351
        %1571 = vmatmul.f32.gmra.mxu0 %v1403
        %v1572 = vpop.f32.mrf.mxu0
        %v1573 = vadd.f32 %v1399, %v1572
        %1574 = vdwg.mxu0
        %1575 = vmatpush.msra.mxu0 0.0
        %1576 = vmatpush.msra.mxu0 0.0
        %1577 = vmatpush.msra.mxu0 0.0
        %1578 = vmatpush.msra.mxu0 0.0
        %1579 = vmatpush.msra.mxu0 0.0
        %1580 = vmatpush.msra.mxu0 0.0
        %1581 = vmatpush.msra.mxu0 0.0
        %1582 = vmatpush.msra.mxu0 0.0
        %1583 = vmatpush.msra.mxu0 0.0
        %1584 = vmatpush.msra.mxu0 0.0
        %1585 = vmatpush.msra.mxu0 0.0
        %1586 = vmatpush.msra.mxu0 %v1427
        %1587 = vmatpush.msra.mxu0 %v1382
        %1588 = vmatpush.msra.mxu0 %v1372
        %1589 = vmatpush.msra.mxu0 %v1362
        %1590 = vmatpush.msra.mxu0 %v1352
        %1591 = vmatmul.f32.gmra.mxu0 %v1403
        %v1592 = vpop.f32.mrf.mxu0
        %v1593 = vadd.f32 %v1399, %v1592
        %1594 = vdwg.mxu0
        %1595 = vmatpush.msra.mxu0 0.0
        %1596 = vmatpush.msra.mxu0 0.0
        %1597 = vmatpush.msra.mxu0 0.0
        %1598 = vmatpush.msra.mxu0 0.0
        %1599 = vmatpush.msra.mxu0 0.0
        %1600 = vmatpush.msra.mxu0 0.0
        %1601 = vmatpush.msra.mxu0 0.0
        %1602 = vmatpush.msra.mxu0 0.0
        %1603 = vmatpush.msra.mxu0 0.0
        %1604 = vmatpush.msra.mxu0 0.0
        %1605 = vmatpush.msra.mxu0 0.0
        %1606 = vmatpush.msra.mxu0 %v1430
        %1607 = vmatpush.msra.mxu0 %v1383
        %1608 = vmatpush.msra.mxu0 %v1373
        %1609 = vmatpush.msra.mxu0 %v1363
        %1610 = vmatpush.msra.mxu0 %v1353
        %1611 = vmatmul.f32.gmra.mxu0 %v1403
        %v1612 = vpop.f32.mrf.mxu0
        %v1613 = vadd.f32 %v1399, %v1612
        %1614 = vdwg.mxu0
        %1615 = vmatpush.msra.mxu0 0.0
        %1616 = vmatpush.msra.mxu0 0.0
        %1617 = vmatpush.msra.mxu0 0.0
        %1618 = vmatpush.msra.mxu0 0.0
        %1619 = vmatpush.msra.mxu0 0.0
        %1620 = vmatpush.msra.mxu0 0.0
        %1621 = vmatpush.msra.mxu0 0.0
        %1622 = vmatpush.msra.mxu0 0.0
        %1623 = vmatpush.msra.mxu0 0.0
        %1624 = vmatpush.msra.mxu0 0.0
        %1625 = vmatpush.msra.mxu0 0.0
        %1626 = vmatpush.msra.mxu0 %v1433
        %1627 = vmatpush.msra.mxu0 %v1384
        %1628 = vmatpush.msra.mxu0 %v1374
        %1629 = vmatpush.msra.mxu0 %v1364
        %1630 = vmatpush.msra.mxu0 %v1354
        %1631 = vmatmul.f32.gmra.mxu0 %v1403
        %v1632 = vpop.f32.mrf.mxu0
        %v1633 = vadd.f32 %v1399, %v1632
        %1634 = vdwg.mxu0
        %v1645 = vrot.slane %v1473, 4
        %v1646 = vrot.slane %v1513, 4
        %v1647 = vrot.slane %v1553, 4
        %v1648 = vrot.slane %v1593, 4
        %v1649 = vrot.slane %v1633, 4
        %v1650 = vsel %vm591, %v1453, %v1645
        %v1651 = vsel %vm591, %v1493, %v1646
        %v1652 = vsel %vm591, %v1533, %v1647
        %v1653 = vsel %vm591, %v1573, %v1648
        %v1654 = vsel %vm591, %v1613, %v1649
        %s1660 = smul.u32 %s25, 10
        %s1661 = smul.addr %s1660, 4
        %s1662 = scalar_lea.vmem [#allocation2], %s1661
        %1663 = vst [vmem:[%s1662] sm:$0xff] %v1650
        %1664 = vst [vmem:[%s1662 + $0x8] sm:$0xff] %v1651
        %1665 = vst [vmem:[%s1662 + $0x10] sm:$0xff] %v1652
        %1666 = vst [vmem:[%s1662 + $0x18] sm:$0xff] %v1653
        %1667 = vst [vmem:[%s1662 + $0x20] sm:$0xff] %v1654
        %v1668 = vmul.f32 %v1453, %v468
        %v1669 = vmul.f32 %v1473, %v469
        %v1670 = vmul.f32 %v1493, %v470
        %v1671 = vmul.f32 %v1513, %v471
        %v1672 = vmul.f32 %v1533, %v472
        %v1673 = vmul.f32 %v1553, %v473
        %v1674 = vmul.f32 %v1573, %v474
        %v1675 = vmul.f32 %v1593, %v475
        %v1676 = vmul.f32 %v1613, %v476
        %v1677 = vmul.f32 %v1633, %v477
        %v1678 = vld [vmem:[#allocation5] sm:$0xf]
        %v1679 = vsel %vm591, %v1668, 0.0
        %v1680 = vsel %vm591, %v1669, 0.0
        %v1681 = vadd.f32 %v1679, %v1680
        %v1682 = vsel %vm591, %v1670, 0.0
        %v1683 = vadd.f32 %v1681, %v1682
        %v1684 = vsel %vm591, %v1671, 0.0
        %v1685 = vadd.f32 %v1683, %v1684
        %v1686 = vsel %vm591, %v1672, 0.0
        %v1687 = vadd.f32 %v1685, %v1686
        %v1688 = vsel %vm591, %v1673, 0.0
        %v1689 = vadd.f32 %v1687, %v1688
        %v1690 = vsel %vm591, %v1674, 0.0
        %v1691 = vadd.f32 %v1689, %v1690
        %v1692 = vsel %vm591, %v1675, 0.0
        %v1693 = vadd.f32 %v1691, %v1692
        %v1694 = vsel %vm591, %v1676, 0.0
        %v1695 = vadd.f32 %v1693, %v1694
        %v1696 = vsel %vm591, %v1677, 0.0
        %v1697 = vadd.f32 %v1695, %v1696
        %1698 = vadd.xlane.f32.xlu0 %v1697
        %v1699 = vpop.xlane.xlu0 %1698
        %v1700 = vadd.f32 %v1678, %v1699
        %vm1701 = vcmask 3072
        %1702 = vst.msk [vmem:[#allocation5] sm:$0xf] %vm1701, %v1700
        %v1703 = vld [vmem:[#allocation5] sm:$0xf]
        %v1704 = vmul.f32 %v1668, %v1453
        %v1705 = vmul.f32 %v1669, %v1473
        %v1706 = vmul.f32 %v1670, %v1493
        %v1707 = vmul.f32 %v1671, %v1513
        %v1708 = vmul.f32 %v1672, %v1533
        %v1709 = vmul.f32 %v1673, %v1553
        %v1710 = vmul.f32 %v1674, %v1573
        %v1711 = vmul.f32 %v1675, %v1593
        %v1712 = vmul.f32 %v1676, %v1613
        %v1713 = vmul.f32 %v1677, %v1633
        %v1714 = vsel %vm591, %v1704, 0.0
        %v1715 = vsel %vm591, %v1705, 0.0
        %v1716 = vadd.f32 %v1714, %v1715
        %v1717 = vsel %vm591, %v1706, 0.0
        %v1718 = vadd.f32 %v1716, %v1717
        %v1719 = vsel %vm591, %v1707, 0.0
        %v1720 = vadd.f32 %v1718, %v1719
        %v1721 = vsel %vm591, %v1708, 0.0
        %v1722 = vadd.f32 %v1720, %v1721
        %v1723 = vsel %vm591, %v1709, 0.0
        %v1724 = vadd.f32 %v1722, %v1723
        %v1725 = vsel %vm591, %v1710, 0.0
        %v1726 = vadd.f32 %v1724, %v1725
        %v1727 = vsel %vm591, %v1711, 0.0
        %v1728 = vadd.f32 %v1726, %v1727
        %v1729 = vsel %vm591, %v1712, 0.0
        %v1730 = vadd.f32 %v1728, %v1729
        %v1731 = vsel %vm591, %v1713, 0.0
        %v1732 = vadd.f32 %v1730, %v1731
        %1733 = vadd.xlane.f32.xlu0 %v1732
        %v1734 = vpop.xlane.xlu0 %1733
        %v1735 = vadd.f32 %v1703, %v1734
        %vm1736 = vcmask 11272
        %1737 = vst.msk [vmem:[#allocation5] sm:$0xf] %vm1736, %v1735
      $region64: #{expander_forward.5} parent=55 // pred_fallthru
        _
      %p1738 = scmp.eq.s32.totalorder %s24, 1
      // Predicated region
      $region65: #{expander_forward.5} parent=55 // pred_check
        %p1739 = pneg %p1738
      $region66: #{expander_forward.5} parent=55 // pred_check_branch
        %1741 = sbr.rel (%p1739) target = $region68
      $region67: #{expander_forward.5} parent=55 // pred_region
        %v1742 = vld [vmem:[#allocation5] sm:$0xf]
        %v1743 = vrcp.pop 2048.0
        %v1744 = vmul.f32 2048.0, %v1743
        %v1745 = vsub.f32 1.0, %v1744
        %v1746 = vmul.f32 %v1743, %v1745
        %v1747 = vadd.f32 %v1743, %v1746
        %vm1748 = vweird.f32 %v1743
        %v1749 = vsel %vm1748, %v1743, %v1747
        %v1750 = vmul.f32 %v1742, %v1749
        %v1751 = vmul.f32 %v1750, %v1750
        %1753 = vrot.lane.b32.xlu0 %v1751, 1
        %v1754 = vpop.permute.xlu0 %1753
        %v1756 = vsub.f32 %v1750, %v1754
        %v1757 = vadd.f32 %v1756, 1e-05
        %v1758 = vrsqrt.pop %v1757
        %v1759 = vmul.f32 %v1758, %v1757
        %v1760 = vmul.f32 %v1759, %v1758
        %v1761 = vmul.f32 0.5, %v1760
        %v1762 = vsub.f32 1.5, %v1761
        %v1763 = vmul.f32 %v1758, %v1762
        %vm1764 = vweird.f32 %v1757
        %vm1765 = vweird.f32 %v1758
        %vm1766 = vmor %vm1764, %vm1765
        %v1767 = vsel %vm1766, %v1758, %v1763
        %s1768 = smul.u32 %s25, 10
        %s1769 = smul.addr %s1768, 4
        %s1770 = scalar_lea.vmem [#allocation2], %s1769
        %v1771 = vld [vmem:[%s1770] sm:$0xff]
        %v1772 = vld [vmem:[%s1770 + $0x8] sm:$0xff]
        %v1773 = vld [vmem:[%s1770 + $0x10] sm:$0xff]
        %v1774 = vld [vmem:[%s1770 + $0x18] sm:$0xff]
        %v1775 = vld [vmem:[%s1770 + $0x20] sm:$0xff]
        %1777 = vset.pattern.permute.xlu0 0
        %1778 = vperm.xlu0 %1777, %v1750
        %v1779 = vpop.permute.xlu0 %1778
        %v1781 = vunpack.c.l.s4 839922192
        %v1782 = vunpack.c.0.s8 %v1781
        %v1783 = vperm.slane %v1779, %v1782
        %v1785 = vsub.f32 %v1771, %v1783
        %v1786 = vsub.f32 %v1772, %v1783
        %v1787 = vsub.f32 %v1773, %v1783
        %v1788 = vsub.f32 %v1774, %v1783
        %v1789 = vsub.f32 %v1775, %v1783
        %1791 = vset.pattern.permute.xlu0 1
        %1792 = vperm.xlu0 %1791, %v1767
        %v1793 = vpop.permute.xlu0 %1792
        %v1795 = vunpack.c.l.s4 839922192
        %v1796 = vunpack.c.0.s8 %v1795
        %v1797 = vperm.slane %v1793, %v1796
        %v1799 = vmul.f32 %v1785, %v1797
        %v1800 = vmul.f32 %v1786, %v1797
        %v1801 = vmul.f32 %v1787, %v1797
        %v1802 = vmul.f32 %v1788, %v1797
        %v1803 = vmul.f32 %v1789, %v1797
        %v1804 = vld [vmem:[%s7] sm:$0xf]
        %1806 = vset.pattern.permute.xlu0 0
        %1807 = vperm.xlu0 %1806, %v1804
        %v1808 = vpop.permute.xlu0 %1807
        %v1810 = vunpack.c.l.s4 839922192
        %v1811 = vunpack.c.0.s8 %v1810
        %v1812 = vperm.slane %v1808, %v1811
        %v1814 = vmul.f32 %v1799, %v1812
        %v1815 = vmul.f32 %v1800, %v1812
        %v1816 = vmul.f32 %v1801, %v1812
        %v1817 = vmul.f32 %v1802, %v1812
        %v1818 = vmul.f32 %v1803, %v1812
        %v1819 = vld [vmem:[%s8] sm:$0xf]
        %1821 = vset.pattern.permute.xlu0 0
        %1822 = vperm.xlu0 %1821, %v1819
        %v1823 = vpop.permute.xlu0 %1822
        %v1825 = vunpack.c.l.s4 839922192
        %v1826 = vunpack.c.0.s8 %v1825
        %v1827 = vperm.slane %v1823, %v1826
        %v1829 = vadd.f32 %v1814, %v1827
        %v1830 = vadd.f32 %v1815, %v1827
        %v1831 = vadd.f32 %v1816, %v1827
        %v1832 = vadd.f32 %v1817, %v1827
        %v1833 = vadd.f32 %v1818, %v1827
        %v1834 = vmax.f32 %v1829, 0.0
        %v1835 = vmax.f32 %v1830, 0.0
        %v1836 = vmax.f32 %v1831, 0.0
        %v1837 = vmax.f32 %v1832, 0.0
        %v1838 = vmax.f32 %v1833, 0.0
        %1839 = vst [vmem:[%s362] sm:$0xff] %v1834
        %1840 = vst [vmem:[%s362 + $0x8] sm:$0xff] %v1835
        %1841 = vst [vmem:[%s362 + $0x10] sm:$0xff] %v1836
        %1842 = vst [vmem:[%s362 + $0x18] sm:$0xff] %v1837
        %1843 = vst [vmem:[%s362 + $0x20] sm:$0xff] %v1838
      $region68: #{expander_forward.5} parent=55 // pred_fallthru
        _
      %s1844 = smul.u32 %s25, %s24
      %p1845 = scmp.lt.s32.totalorder %s1844, 1
      %s1846 = scalar_select %p1845, %s1844, 1
      %s1847 = smul.addr %s1846, 10
      %s1848 = smul.addr %s1847, 4
      %s1849 = scalar_lea.vmem %s9, %s1848
      // Predicated region
      $region69: #{expander_forward.5} parent=55 // pred_check
        %p1850 = pneg %p250
      $region70: #{expander_forward.5} parent=55 // pred_check_branch
        %1852 = sbr.rel (%p1850) target = $region72
      $region71: #{expander_forward.5} parent=55 // pred_region
        %s1853 = smul.u32 %s25, %s24
      $region72: #{expander_forward.5} parent=55 // pred_fallthru
        _
    $region56: #{expander_forward.5} parent=5 // pred_fallthru
      _
    %p1854 = scmp.le.s32.totalorder 2, %s15
    // Predicated region
    $region73: #{expander_forward.5} parent=5 // pred_check
      %p1855 = pneg %p1854
    $region74: #{expander_forward.5} parent=5 // pred_check_branch
      %1857 = sbr.rel (%p1855) target = $region76
    $region75: #{expander_forward.5} parent=5 // pred_region
      %s1858 = ssub.s32 %s15, 2
      // Predicated region
      $region77: #{expander_forward.5} parent=75 // pred_check
        %p1859 = pneg %p256
      $region78: #{expander_forward.5} parent=75 // pred_check_branch
        %1861 = sbr.rel (%p1859) target = $region80
      $region79: #{expander_forward.5} parent=75 // pred_region
        %s1862 = smul.u32 %s27, %s26
        %p1863 = scmp.lt.s32.totalorder %s1862, 1
        %s1864 = scalar_select %p1863, %s1862, 1
        %s1865 = smul.addr %s1864, 10
        %s1866 = smul.addr %s1865, 4
        %s1867 = scalar_lea.vmem %s9, %s1866
      $region80: #{expander_forward.5} parent=75 // pred_fallthru
        _
    $region76: #{expander_forward.5} parent=5 // pred_fallthru
      _
  $region6: #{expander_forward.5} parent=0 // loop_footer
    %s19 = sadd.s32 1, %s15
  $region7: #{expander_forward.5} parent=0 // loop_footer_branch
    %14 = sbr.rel target = $region3
  $region8: #{expander_forward.5} parent=0 // loop_exit
    _

</llo_original>
